<compile_context>
chip_gen: v6e
topology: v6e:2x2x1
jax: 0.10.0
libtpu: 0.0.40
codegen_flags: <defaults>
</compile_context>

<pallas_src>
import functools

import numpy as np

import jax
import jax.numpy as jnp
from jax.experimental import pallas as pl
from jax.experimental.pallas import tpu as pltpu


def _down_kernel(x_ref, pool_src_ref, conv_mask_ref,
                 w1_ref, b1_ref, g1_ref, be1_ref,
                 w2_ref, b2_ref, g2_ref, be2_ref,
                 o_ref, *, n_batch, ph, pw, hw_in, eps):
    """x_ref: (N, C_in, H*W); weights tap-major (9, C_out, C_in); out (N, C_out, ph*pw)."""
    hw_p = ph * pw                     # pooled spatial, lives on lanes
    padl = (ph + 2) * pw + 2           # H-zero-padded flattened length (+2 guard cols)

    # ---- fused 2x2 max-pool -------------------------------------------------
    # pooled_pad[c, 1 + (h+1)*pw + w] = max_{i,j} x[c, (2h+i)*W + (2w+j)]
    # Implemented as 4 exact 0/1 selection matmuls; unmapped columns give the
    # zero padding rows the conv needs.
    s_idx = jax.lax.broadcasted_iota(jnp.int32, (hw_in, padl), 0)
    pooled = [None] * n_batch
    for tap in range(4):
        sel = jnp.where(s_idx == pool_src_ref[tap],
                        jnp.float32(1.0), jnp.float32(0.0))      # (hw_in, padl)
        for n in range(n_batch):
            part = jnp.dot(x_ref[n], sel, preferred_element_type=jnp.float32)
            pooled[n] = part if pooled[n] is None else jnp.maximum(pooled[n], part)

    mask_l = conv_mask_ref[0]          # (1, hw_p)  valid when w >= 1   (dx == 0)
    mask_r = conv_mask_ref[1]          # (1, hw_p)  valid when w <= pw-2 (dx == 2)

    def conv3x3(padded, w_ref, bias):
        # padded: (C_in, padl); returns (C_out, hw_p) = W * x + b (9 shifted matmuls)
        c_o = w_ref.shape[1]
        acc = jnp.zeros((c_o, hw_p), jnp.float32)
        for t in range(9):
            dy, dx = t // 3, t % 3
            off = dy * pw + dx                       # lane offset of this tap's window
            win = padded[:, off:off + hw_p]
            if dx == 0:
                win = win * mask_l
            elif dx == 2:
                win = win * mask_r
            acc = acc + jnp.dot(w_ref[t], win, preferred_element_type=jnp.float32)
        return acc + bias

    def bn_relu(ys, gamma, beta):
        # PyTorch training-mode BN forward: batch stats over (N, H, W), biased var.
        count = float(len(ys) * hw_p)
        mean = sum(jnp.sum(y, axis=1, keepdims=True) for y in ys) / count
        var = sum(jnp.sum((y - mean) ** 2, axis=1, keepdims=True) for y in ys) / count
        scale = gamma * jax.lax.rsqrt(var + eps)
        shift = beta - mean * scale
        return [jnp.maximum(y * scale + shift, 0.0) for y in ys]

    def pad_rows(a):
        # (C, hw_p) -> (C, padl): add the zero top/bottom pad rows (+ guards) in-register.
        z = jnp.zeros((a.shape[0], pw + 1), jnp.float32)
        return jnp.concatenate([z, a, z], axis=1)

    # ---- conv1 -> BN1 -> ReLU -> conv2 -> BN2 -> ReLU ------------------------
    y1 = [conv3x3(pooled[n], w1_ref, b1_ref[...]) for n in range(n_batch)]
    a1 = bn_relu(y1, g1_ref[...], be1_ref[...])
    y2 = [conv3x3(pad_rows(a1[n]), w2_ref, b2_ref[...]) for n in range(n_batch)]
    a2 = bn_relu(y2, g2_ref[...], be2_ref[...])

    for n in range(n_batch):
        o_ref[n, :, :] = a2[n]


def down_forward(x, w1, b1, g1, be1, w2, b2, g2, be2, *, eps=1e-5):
    """Forward of Down(in_ch, out_ch): maxpool(2) then (conv3x3+BN+ReLU)*2.

    x  : (N, C_in, H, W) float32
    w1 : (C_mid, C_in, 3, 3), b1/g1/be1 : (C_mid,)
    w2 : (C_out, C_mid, 3, 3), b2/g2/be2 : (C_out,)
    returns (N, C_out, H//2, W//2)
    """
    N, C_in, H, W = x.shape
    C_mid = w1.shape[0]
    C_out = w2.shape[0]
    assert H % 2 == 0 and W % 2 == 0
    ph, pw = H // 2, W // 2
    hw_in = H * W
    hw_p = ph * pw
    padl = (ph + 2) * pw + 2

    # Activations: only free, contiguous reshapes (no transposes, no pads).
    x3 = x.reshape(N, C_in, hw_in).astype(jnp.float32)

    # Parameters: tiny one-off shuffle to tap-major form / column vectors.
    w1t = jnp.transpose(w1, (2, 3, 0, 1)).reshape(9, C_mid, C_in)
    w2t = jnp.transpose(w2, (2, 3, 0, 1)).reshape(9, C_out, C_mid)
    b1c, g1c, be1c = (v.reshape(C_mid, 1) for v in (b1, g1, be1))
    b2c, g2c, be2c = (v.reshape(C_out, 1) for v in (b2, g2, be2))

    # Trace-time index tables (keep integer div/mod out of the kernel).
    d = np.arange(padl)
    r = d - (pw + 1)
    hh = r // pw
    ww = r - hh * pw
    valid = (r >= 0) & (r < hw_p)
    pool_src = np.full((4, 1, padl), -1, np.int32)
    for tap, (i, j) in enumerate(((0, 0), (0, 1), (1, 0), (1, 1))):
        src = (2 * hh + i) * W + (2 * ww + j)
        pool_src[tap, 0, :] = np.where(valid, src, -1)
    wcol = np.arange(hw_p) % pw
    conv_mask = np.stack([(wcol >= 1), (wcol <= pw - 2)]).astype(np.float32)
    conv_mask = conv_mask.reshape(2, 1, hw_p)

    pool_src = jnp.asarray(pool_src)
    conv_mask = jnp.asarray(conv_mask)

    kernel = functools.partial(_down_kernel, n_batch=N, ph=ph, pw=pw,
                               hw_in=hw_in, eps=float(eps))

    flops = 2 * N * (4 * C_in * hw_in * padl
                     + 9 * C_mid * C_in * hw_p
                     + 9 * C_out * C_mid * hw_p)
    bytes_accessed = 4 * (x3.size + pool_src.size + conv_mask.size
                          + w1t.size + w2t.size + 3 * (C_mid + C_out)
                          + N * C_out * hw_p)

    vmem_spec = pl.BlockSpec(memory_space=pltpu.MemorySpace.VMEM)
    out = pl.pallas_call(
        kernel,
        out_shape=jax.ShapeDtypeStruct((N, C_out, hw_p), jnp.float32),
        in_specs=[vmem_spec] * 11,
        out_specs=vmem_spec,
        cost_estimate=pl.CostEstimate(flops=flops,
                                      transcendentals=2 * (C_mid + C_out),
                                      bytes_accessed=bytes_accessed),
    )(x3, pool_src, conv_mask, w1t, b1c, g1c, be1c, w2t, b2c, g2c, be2c)

    # Free reshape back to NCHW.
    return out.reshape(N, C_out, ph, pw)


def _reference(x, w1, b1, g1, be1, w2, b2, g2, be2, eps=1e-5):
    """Plain-JAX reference for Down.forward (PyTorch training-mode BN)."""
    N, C, H, W = x.shape
    xp = jnp.max(x.reshape(N, C, H // 2, 2, W // 2, 2), axis=(3, 5))

    def conv_bn_relu(a, w, b, g, be):
        y = jax.lax.conv_general_dilated(
            a, w, window_strides=(1, 1), padding=((1, 1), (1, 1)),
            dimension_numbers=("NCHW", "OIHW", "NCHW"),
            precision=jax.lax.Precision.HIGHEST)
        y = y + b[None, :, None, None]
        m = jnp.mean(y, axis=(0, 2, 3), keepdims=True)
        v = jnp.mean((y - m) ** 2, axis=(0, 2, 3), keepdims=True)
        yhat = (y - m) * jax.lax.rsqrt(v + eps)
        return jnp.maximum(yhat * g[None, :, None, None] + be[None, :, None, None], 0.0)

    return conv_bn_relu(conv_bn_relu(xp, w1, b1, g1, be1), w2, b2, g2, be2)


if __name__ == "__main__":
    # Small shapes consistent with Down(in_channels=4, out_channels=8):
    # batch=2, spatial 16x16 -> pooled 8x8. DoubleConv => mid_channels = out_channels.
    N, C_in, C_out, H, W = 2, 4, 8, 16, 16

    key = jax.random.PRNGKey(0)
    ks = jax.random.split(key, 9)

    x = jax.random.normal(ks[0], (N, C_in, H, W), dtype=jnp.float32)

    bound1 = 1.0 / np.sqrt(C_in * 9)
    w1 = jax.random.uniform(ks[1], (C_out, C_in, 3, 3), jnp.float32, -bound1, bound1)
    b1 = jax.random.uniform(ks[2], (C_out,), jnp.float32, -bound1, bound1)
    g1 = 1.0 + 0.1 * jax.random.normal(ks[3], (C_out,), jnp.float32)
    be1 = 0.1 * jax.random.normal(ks[4], (C_out,), jnp.float32)

    bound2 = 1.0 / np.sqrt(C_out * 9)
    w2 = jax.random.uniform(ks[5], (C_out, C_out, 3, 3), jnp.float32, -bound2, bound2)
    b2 = jax.random.uniform(ks[6], (C_out,), jnp.float32, -bound2, bound2)
    g2 = 1.0 + 0.1 * jax.random.normal(ks[7], (C_out,), jnp.float32)
    be2 = 0.1 * jax.random.normal(ks[8], (C_out,), jnp.float32)

    out = down_forward(x, w1, b1, g1, be1, w2, b2, g2, be2)
    out = jax.block_until_ready(out)

    ref = _reference(x, w1, b1, g1, be1, w2, b2, g2, be2)
    assert out.shape == (N, C_out, H // 2, W // 2)
    assert jnp.allclose(out, ref, atol=1e-3, rtol=1e-3), float(jnp.max(jnp.abs(out - ref)))

    print("KERNEL_OK")
</pallas_src>

<mosaic_0001>
module attributes {stable_mosaic.version = 11 : i64} {
  func.func @_down_kernel(%arg0: memref<2x4x256xf32, #tpu.memory_space<vmem>>, %arg1: memref<4x1x82xi32, #tpu.memory_space<vmem>>, %arg2: memref<2x1x64xf32, #tpu.memory_space<vmem>>, %arg3: memref<9x8x4xf32, #tpu.memory_space<vmem>>, %arg4: memref<8x1xf32, #tpu.memory_space<vmem>>, %arg5: memref<8x1xf32, #tpu.memory_space<vmem>>, %arg6: memref<8x1xf32, #tpu.memory_space<vmem>>, %arg7: memref<9x8x8xf32, #tpu.memory_space<vmem>>, %arg8: memref<8x1xf32, #tpu.memory_space<vmem>>, %arg9: memref<8x1xf32, #tpu.memory_space<vmem>>, %arg10: memref<8x1xf32, #tpu.memory_space<vmem>>, %arg11: memref<2x8x64xf32, #tpu.memory_space<vmem>>) attributes {dimension_semantics = [], scalar_prefetch = 0 : i64, scratch_operands = 0 : i64, tpu.core_type = #tpu.core_type<tc>} {
    %0 = tpu.iota {dimensions = array<i32: 0>} : vector<256x82xi32>
    %c0 = arith.constant 0 : index
    %c0_0 = arith.constant 0 : index
    %c0_1 = arith.constant 0 : index
    %1 = vector.load %arg1[%c0, %c0_0, %c0_1] : memref<4x1x82xi32, #tpu.memory_space<vmem>>, vector<1x1x82xi32>
    %2 = vector.shape_cast %1 : vector<1x1x82xi32> to vector<1x82xi32>
    %3 = vector.broadcast %2 : vector<1x82xi32> to vector<256x82xi32>
    %4 = arith.cmpi eq, %0, %3 : vector<256x82xi32>
    %cst = arith.constant 1.000000e+00 : f32
    %cst_2 = arith.constant 0.000000e+00 : f32
    %5 = vector.broadcast %cst : f32 to vector<256x82xf32>
    %6 = vector.broadcast %cst_2 : f32 to vector<256x82xf32>
    %7 = arith.select %4, %5, %6 : vector<256x82xi1>, vector<256x82xf32>
    %c0_3 = arith.constant 0 : index
    %c0_4 = arith.constant 0 : index
    %c0_5 = arith.constant 0 : index
    %8 = vector.load %arg0[%c0_3, %c0_4, %c0_5] : memref<2x4x256xf32, #tpu.memory_space<vmem>>, vector<1x4x256xf32>
    %9 = vector.shape_cast %8 : vector<1x4x256xf32> to vector<4x256xf32>
    %cst_6 = arith.constant dense<0.000000e+00> : vector<4x82xf32>
    %10 = tpu.matmul %9, %7, %cst_6 {dimension_numbers = #tpu.dot_dimension_numbers<[1], [0], [0], [1], [0, 0, 1, 1], [], []>} : vector<4x256xf32>, vector<256x82xf32>, vector<4x82xf32> -> vector<4x82xf32>
    %c1 = arith.constant 1 : index
    %c0_7 = arith.constant 0 : index
    %c0_8 = arith.constant 0 : index
    %11 = vector.load %arg0[%c1, %c0_7, %c0_8] : memref<2x4x256xf32, #tpu.memory_space<vmem>>, vector<1x4x256xf32>
    %12 = vector.shape_cast %11 : vector<1x4x256xf32> to vector<4x256xf32>
    %cst_9 = arith.constant dense<0.000000e+00> : vector<4x82xf32>
    %13 = tpu.matmul %12, %7, %cst_9 {dimension_numbers = #tpu.dot_dimension_numbers<[1], [0], [0], [1], [0, 0, 1, 1], [], []>} : vector<4x256xf32>, vector<256x82xf32>, vector<4x82xf32> -> vector<4x82xf32>
    %c1_10 = arith.constant 1 : index
    %c0_11 = arith.constant 0 : index
    %c0_12 = arith.constant 0 : index
    %14 = vector.load %arg1[%c1_10, %c0_11, %c0_12] : memref<4x1x82xi32, #tpu.memory_space<vmem>>, vector<1x1x82xi32>
    %15 = vector.shape_cast %14 : vector<1x1x82xi32> to vector<1x82xi32>
    %16 = vector.broadcast %15 : vector<1x82xi32> to vector<256x82xi32>
    %17 = arith.cmpi eq, %0, %16 : vector<256x82xi32>
    %cst_13 = arith.constant 1.000000e+00 : f32
    %cst_14 = arith.constant 0.000000e+00 : f32
    %18 = vector.broadcast %cst_13 : f32 to vector<256x82xf32>
    %19 = vector.broadcast %cst_14 : f32 to vector<256x82xf32>
    %20 = arith.select %17, %18, %19 : vector<256x82xi1>, vector<256x82xf32>
    %c0_15 = arith.constant 0 : index
    %c0_16 = arith.constant 0 : index
    %c0_17 = arith.constant 0 : index
    %21 = vector.load %arg0[%c0_15, %c0_16, %c0_17] : memref<2x4x256xf32, #tpu.memory_space<vmem>>, vector<1x4x256xf32>
    %22 = vector.shape_cast %21 : vector<1x4x256xf32> to vector<4x256xf32>
    %cst_18 = arith.constant dense<0.000000e+00> : vector<4x82xf32>
    %23 = tpu.matmul %22, %20, %cst_18 {dimension_numbers = #tpu.dot_dimension_numbers<[1], [0], [0], [1], [0, 0, 1, 1], [], []>} : vector<4x256xf32>, vector<256x82xf32>, vector<4x82xf32> -> vector<4x82xf32>
    %24 = arith.maximumf %10, %23 : vector<4x82xf32>
    %c1_19 = arith.constant 1 : index
    %c0_20 = arith.constant 0 : index
    %c0_21 = arith.constant 0 : index
    %25 = vector.load %arg0[%c1_19, %c0_20, %c0_21] : memref<2x4x256xf32, #tpu.memory_space<vmem>>, vector<1x4x256xf32>
    %26 = vector.shape_cast %25 : vector<1x4x256xf32> to vector<4x256xf32>
    %cst_22 = arith.constant dense<0.000000e+00> : vector<4x82xf32>
    %27 = tpu.matmul %26, %20, %cst_22 {dimension_numbers = #tpu.dot_dimension_numbers<[1], [0], [0], [1], [0, 0, 1, 1], [], []>} : vector<4x256xf32>, vector<256x82xf32>, vector<4x82xf32> -> vector<4x82xf32>
    %28 = arith.maximumf %13, %27 : vector<4x82xf32>
    %c2 = arith.constant 2 : index
    %c0_23 = arith.constant 0 : index
    %c0_24 = arith.constant 0 : index
    %29 = vector.load %arg1[%c2, %c0_23, %c0_24] : memref<4x1x82xi32, #tpu.memory_space<vmem>>, vector<1x1x82xi32>
    %30 = vector.shape_cast %29 : vector<1x1x82xi32> to vector<1x82xi32>
    %31 = vector.broadcast %30 : vector<1x82xi32> to vector<256x82xi32>
    %32 = arith.cmpi eq, %0, %31 : vector<256x82xi32>
    %cst_25 = arith.constant 1.000000e+00 : f32
    %cst_26 = arith.constant 0.000000e+00 : f32
    %33 = vector.broadcast %cst_25 : f32 to vector<256x82xf32>
    %34 = vector.broadcast %cst_26 : f32 to vector<256x82xf32>
    %35 = arith.select %32, %33, %34 : vector<256x82xi1>, vector<256x82xf32>
    %c0_27 = arith.constant 0 : index
    %c0_28 = arith.constant 0 : index
    %c0_29 = arith.constant 0 : index
    %36 = vector.load %arg0[%c0_27, %c0_28, %c0_29] : memref<2x4x256xf32, #tpu.memory_space<vmem>>, vector<1x4x256xf32>
    %37 = vector.shape_cast %36 : vector<1x4x256xf32> to vector<4x256xf32>
    %cst_30 = arith.constant dense<0.000000e+00> : vector<4x82xf32>
    %38 = tpu.matmul %37, %35, %cst_30 {dimension_numbers = #tpu.dot_dimension_numbers<[1], [0], [0], [1], [0, 0, 1, 1], [], []>} : vector<4x256xf32>, vector<256x82xf32>, vector<4x82xf32> -> vector<4x82xf32>
    %39 = arith.maximumf %24, %38 : vector<4x82xf32>
    %c1_31 = arith.constant 1 : index
    %c0_32 = arith.constant 0 : index
    %c0_33 = arith.constant 0 : index
    %40 = vector.load %arg0[%c1_31, %c0_32, %c0_33] : memref<2x4x256xf32, #tpu.memory_space<vmem>>, vector<1x4x256xf32>
    %41 = vector.shape_cast %40 : vector<1x4x256xf32> to vector<4x256xf32>
    %cst_34 = arith.constant dense<0.000000e+00> : vector<4x82xf32>
    %42 = tpu.matmul %41, %35, %cst_34 {dimension_numbers = #tpu.dot_dimension_numbers<[1], [0], [0], [1], [0, 0, 1, 1], [], []>} : vector<4x256xf32>, vector<256x82xf32>, vector<4x82xf32> -> vector<4x82xf32>
    %43 = arith.maximumf %28, %42 : vector<4x82xf32>
    %c3 = arith.constant 3 : index
    %c0_35 = arith.constant 0 : index
    %c0_36 = arith.constant 0 : index
    %44 = vector.load %arg1[%c3, %c0_35, %c0_36] : memref<4x1x82xi32, #tpu.memory_space<vmem>>, vector<1x1x82xi32>
    %45 = vector.shape_cast %44 : vector<1x1x82xi32> to vector<1x82xi32>
    %46 = vector.broadcast %45 : vector<1x82xi32> to vector<256x82xi32>
    %47 = arith.cmpi eq, %0, %46 : vector<256x82xi32>
    %cst_37 = arith.constant 1.000000e+00 : f32
    %cst_38 = arith.constant 0.000000e+00 : f32
    %48 = vector.broadcast %cst_37 : f32 to vector<256x82xf32>
    %49 = vector.broadcast %cst_38 : f32 to vector<256x82xf32>
    %50 = arith.select %47, %48, %49 : vector<256x82xi1>, vector<256x82xf32>
    %c0_39 = arith.constant 0 : index
    %c0_40 = arith.constant 0 : index
    %c0_41 = arith.constant 0 : index
    %51 = vector.load %arg0[%c0_39, %c0_40, %c0_41] : memref<2x4x256xf32, #tpu.memory_space<vmem>>, vector<1x4x256xf32>
    %52 = vector.shape_cast %51 : vector<1x4x256xf32> to vector<4x256xf32>
    %cst_42 = arith.constant dense<0.000000e+00> : vector<4x82xf32>
    %53 = tpu.matmul %52, %50, %cst_42 {dimension_numbers = #tpu.dot_dimension_numbers<[1], [0], [0], [1], [0, 0, 1, 1], [], []>} : vector<4x256xf32>, vector<256x82xf32>, vector<4x82xf32> -> vector<4x82xf32>
    %54 = arith.maximumf %39, %53 : vector<4x82xf32>
    %c1_43 = arith.constant 1 : index
    %c0_44 = arith.constant 0 : index
    %c0_45 = arith.constant 0 : index
    %55 = vector.load %arg0[%c1_43, %c0_44, %c0_45] : memref<2x4x256xf32, #tpu.memory_space<vmem>>, vector<1x4x256xf32>
    %56 = vector.shape_cast %55 : vector<1x4x256xf32> to vector<4x256xf32>
    %cst_46 = arith.constant dense<0.000000e+00> : vector<4x82xf32>
    %57 = tpu.matmul %56, %50, %cst_46 {dimension_numbers = #tpu.dot_dimension_numbers<[1], [0], [0], [1], [0, 0, 1, 1], [], []>} : vector<4x256xf32>, vector<256x82xf32>, vector<4x82xf32> -> vector<4x82xf32>
    %58 = arith.maximumf %43, %57 : vector<4x82xf32>
    %c0_47 = arith.constant 0 : index
    %c0_48 = arith.constant 0 : index
    %c0_49 = arith.constant 0 : index
    %59 = vector.load %arg2[%c0_47, %c0_48, %c0_49] : memref<2x1x64xf32, #tpu.memory_space<vmem>>, vector<1x1x64xf32>
    %60 = vector.shape_cast %59 : vector<1x1x64xf32> to vector<1x64xf32>
    %c1_50 = arith.constant 1 : index
    %c0_51 = arith.constant 0 : index
    %c0_52 = arith.constant 0 : index
    %61 = vector.load %arg2[%c1_50, %c0_51, %c0_52] : memref<2x1x64xf32, #tpu.memory_space<vmem>>, vector<1x1x64xf32>
    %62 = vector.shape_cast %61 : vector<1x1x64xf32> to vector<1x64xf32>
    %c0_53 = arith.constant 0 : index
    %c0_54 = arith.constant 0 : index
    %63 = vector.load %arg4[%c0_53, %c0_54] : memref<8x1xf32, #tpu.memory_space<vmem>>, vector<8x1xf32>
    %cst_55 = arith.constant 0.000000e+00 : f32
    %64 = vector.broadcast %cst_55 : f32 to vector<8x64xf32>
    %65 = vector.extract_strided_slice %54 {offsets = [0, 0], sizes = [4, 64], strides = [1, 1]} : vector<4x82xf32> to vector<4x64xf32>
    %66 = vector.broadcast %60 : vector<1x64xf32> to vector<4x64xf32>
    %67 = arith.mulf %65, %66 : vector<4x64xf32>
    %c0_56 = arith.constant 0 : index
    %c0_57 = arith.constant 0 : index
    %c0_58 = arith.constant 0 : index
    %68 = vector.load %arg3[%c0_56, %c0_57, %c0_58] : memref<9x8x4xf32, #tpu.memory_space<vmem>>, vector<1x8x4xf32>
    %69 = vector.shape_cast %68 : vector<1x8x4xf32> to vector<8x4xf32>
    %cst_59 = arith.constant dense<0.000000e+00> : vector<8x64xf32>
    %70 = tpu.matmul %69, %67, %cst_59 {dimension_numbers = #tpu.dot_dimension_numbers<[1], [0], [0], [1], [0, 0, 1, 1], [], []>} : vector<8x4xf32>, vector<4x64xf32>, vector<8x64xf32> -> vector<8x64xf32>
    %71 = arith.addf %64, %70 : vector<8x64xf32>
    %72 = vector.extract_strided_slice %54 {offsets = [0, 1], sizes = [4, 64], strides = [1, 1]} : vector<4x82xf32> to vector<4x64xf32>
    %c1_60 = arith.constant 1 : index
    %c0_61 = arith.constant 0 : index
    %c0_62 = arith.constant 0 : index
    %73 = vector.load %arg3[%c1_60, %c0_61, %c0_62] : memref<9x8x4xf32, #tpu.memory_space<vmem>>, vector<1x8x4xf32>
    %74 = vector.shape_cast %73 : vector<1x8x4xf32> to vector<8x4xf32>
    %cst_63 = arith.constant dense<0.000000e+00> : vector<8x64xf32>
    %75 = tpu.matmul %74, %72, %cst_63 {dimension_numbers = #tpu.dot_dimension_numbers<[1], [0], [0], [1], [0, 0, 1, 1], [], []>} : vector<8x4xf32>, vector<4x64xf32>, vector<8x64xf32> -> vector<8x64xf32>
    %76 = arith.addf %71, %75 : vector<8x64xf32>
    %77 = vector.extract_strided_slice %54 {offsets = [0, 2], sizes = [4, 64], strides = [1, 1]} : vector<4x82xf32> to vector<4x64xf32>
    %78 = vector.broadcast %62 : vector<1x64xf32> to vector<4x64xf32>
    %79 = arith.mulf %77, %78 : vector<4x64xf32>
    %c2_64 = arith.constant 2 : index
    %c0_65 = arith.constant 0 : index
    %c0_66 = arith.constant 0 : index
    %80 = vector.load %arg3[%c2_64, %c0_65, %c0_66] : memref<9x8x4xf32, #tpu.memory_space<vmem>>, vector<1x8x4xf32>
    %81 = vector.shape_cast %80 : vector<1x8x4xf32> to vector<8x4xf32>
    %cst_67 = arith.constant dense<0.000000e+00> : vector<8x64xf32>
    %82 = tpu.matmul %81, %79, %cst_67 {dimension_numbers = #tpu.dot_dimension_numbers<[1], [0], [0], [1], [0, 0, 1, 1], [], []>} : vector<8x4xf32>, vector<4x64xf32>, vector<8x64xf32> -> vector<8x64xf32>
    %83 = arith.addf %76, %82 : vector<8x64xf32>
    %84 = vector.extract_strided_slice %54 {offsets = [0, 8], sizes = [4, 64], strides = [1, 1]} : vector<4x82xf32> to vector<4x64xf32>
    %85 = vector.broadcast %60 : vector<1x64xf32> to vector<4x64xf32>
    %86 = arith.mulf %84, %85 : vector<4x64xf32>
    %c3_68 = arith.constant 3 : index
    %c0_69 = arith.constant 0 : index
    %c0_70 = arith.constant 0 : index
    %87 = vector.load %arg3[%c3_68, %c0_69, %c0_70] : memref<9x8x4xf32, #tpu.memory_space<vmem>>, vector<1x8x4xf32>
    %88 = vector.shape_cast %87 : vector<1x8x4xf32> to vector<8x4xf32>
    %cst_71 = arith.constant dense<0.000000e+00> : vector<8x64xf32>
    %89 = tpu.matmul %88, %86, %cst_71 {dimension_numbers = #tpu.dot_dimension_numbers<[1], [0], [0], [1], [0, 0, 1, 1], [], []>} : vector<8x4xf32>, vector<4x64xf32>, vector<8x64xf32> -> vector<8x64xf32>
    %90 = arith.addf %83, %89 : vector<8x64xf32>
    %91 = vector.extract_strided_slice %54 {offsets = [0, 9], sizes = [4, 64], strides = [1, 1]} : vector<4x82xf32> to vector<4x64xf32>
    %c4 = arith.constant 4 : index
    %c0_72 = arith.constant 0 : index
    %c0_73 = arith.constant 0 : index
    %92 = vector.load %arg3[%c4, %c0_72, %c0_73] : memref<9x8x4xf32, #tpu.memory_space<vmem>>, vector<1x8x4xf32>
    %93 = vector.shape_cast %92 : vector<1x8x4xf32> to vector<8x4xf32>
    %cst_74 = arith.constant dense<0.000000e+00> : vector<8x64xf32>
    %94 = tpu.matmul %93, %91, %cst_74 {dimension_numbers = #tpu.dot_dimension_numbers<[1], [0], [0], [1], [0, 0, 1, 1], [], []>} : vector<8x4xf32>, vector<4x64xf32>, vector<8x64xf32> -> vector<8x64xf32>
    %95 = arith.addf %90, %94 : vector<8x64xf32>
    %96 = vector.extract_strided_slice %54 {offsets = [0, 10], sizes = [4, 64], strides = [1, 1]} : vector<4x82xf32> to vector<4x64xf32>
    %97 = vector.broadcast %62 : vector<1x64xf32> to vector<4x64xf32>
    %98 = arith.mulf %96, %97 : vector<4x64xf32>
    %c5 = arith.constant 5 : index
    %c0_75 = arith.constant 0 : index
    %c0_76 = arith.constant 0 : index
    %99 = vector.load %arg3[%c5, %c0_75, %c0_76] : memref<9x8x4xf32, #tpu.memory_space<vmem>>, vector<1x8x4xf32>
    %100 = vector.shape_cast %99 : vector<1x8x4xf32> to vector<8x4xf32>
    %cst_77 = arith.constant dense<0.000000e+00> : vector<8x64xf32>
    %101 = tpu.matmul %100, %98, %cst_77 {dimension_numbers = #tpu.dot_dimension_numbers<[1], [0], [0], [1], [0, 0, 1, 1], [], []>} : vector<8x4xf32>, vector<4x64xf32>, vector<8x64xf32> -> vector<8x64xf32>
    %102 = arith.addf %95, %101 : vector<8x64xf32>
    %103 = vector.extract_strided_slice %54 {offsets = [0, 16], sizes = [4, 64], strides = [1, 1]} : vector<4x82xf32> to vector<4x64xf32>
    %104 = vector.broadcast %60 : vector<1x64xf32> to vector<4x64xf32>
    %105 = arith.mulf %103, %104 : vector<4x64xf32>
    %c6 = arith.constant 6 : index
    %c0_78 = arith.constant 0 : index
    %c0_79 = arith.constant 0 : index
    %106 = vector.load %arg3[%c6, %c0_78, %c0_79] : memref<9x8x4xf32, #tpu.memory_space<vmem>>, vector<1x8x4xf32>
    %107 = vector.shape_cast %106 : vector<1x8x4xf32> to vector<8x4xf32>
    %cst_80 = arith.constant dense<0.000000e+00> : vector<8x64xf32>
    %108 = tpu.matmul %107, %105, %cst_80 {dimension_numbers = #tpu.dot_dimension_numbers<[1], [0], [0], [1], [0, 0, 1, 1], [], []>} : vector<8x4xf32>, vector<4x64xf32>, vector<8x64xf32> -> vector<8x64xf32>
    %109 = arith.addf %102, %108 : vector<8x64xf32>
    %110 = vector.extract_strided_slice %54 {offsets = [0, 17], sizes = [4, 64], strides = [1, 1]} : vector<4x82xf32> to vector<4x64xf32>
    %c7 = arith.constant 7 : index
    %c0_81 = arith.constant 0 : index
    %c0_82 = arith.constant 0 : index
    %111 = vector.load %arg3[%c7, %c0_81, %c0_82] : memref<9x8x4xf32, #tpu.memory_space<vmem>>, vector<1x8x4xf32>
    %112 = vector.shape_cast %111 : vector<1x8x4xf32> to vector<8x4xf32>
    %cst_83 = arith.constant dense<0.000000e+00> : vector<8x64xf32>
    %113 = tpu.matmul %112, %110, %cst_83 {dimension_numbers = #tpu.dot_dimension_numbers<[1], [0], [0], [1], [0, 0, 1, 1], [], []>} : vector<8x4xf32>, vector<4x64xf32>, vector<8x64xf32> -> vector<8x64xf32>
    %114 = arith.addf %109, %113 : vector<8x64xf32>
    %115 = vector.extract_strided_slice %54 {offsets = [0, 18], sizes = [4, 64], strides = [1, 1]} : vector<4x82xf32> to vector<4x64xf32>
    %116 = vector.broadcast %62 : vector<1x64xf32> to vector<4x64xf32>
    %117 = arith.mulf %115, %116 : vector<4x64xf32>
    %c8 = arith.constant 8 : index
    %c0_84 = arith.constant 0 : index
    %c0_85 = arith.constant 0 : index
    %118 = vector.load %arg3[%c8, %c0_84, %c0_85] : memref<9x8x4xf32, #tpu.memory_space<vmem>>, vector<1x8x4xf32>
    %119 = vector.shape_cast %118 : vector<1x8x4xf32> to vector<8x4xf32>
    %cst_86 = arith.constant dense<0.000000e+00> : vector<8x64xf32>
    %120 = tpu.matmul %119, %117, %cst_86 {dimension_numbers = #tpu.dot_dimension_numbers<[1], [0], [0], [1], [0, 0, 1, 1], [], []>} : vector<8x4xf32>, vector<4x64xf32>, vector<8x64xf32> -> vector<8x64xf32>
    %121 = arith.addf %114, %120 : vector<8x64xf32>
    %122 = vector.broadcast %63 : vector<8x1xf32> to vector<8x64xf32>
    %123 = arith.addf %121, %122 : vector<8x64xf32>
    %c0_87 = arith.constant 0 : index
    %c0_88 = arith.constant 0 : index
    %124 = vector.load %arg4[%c0_87, %c0_88] : memref<8x1xf32, #tpu.memory_space<vmem>>, vector<8x1xf32>
    %cst_89 = arith.constant 0.000000e+00 : f32
    %125 = vector.broadcast %cst_89 : f32 to vector<8x64xf32>
    %126 = vector.extract_strided_slice %58 {offsets = [0, 0], sizes = [4, 64], strides = [1, 1]} : vector<4x82xf32> to vector<4x64xf32>
    %127 = vector.broadcast %60 : vector<1x64xf32> to vector<4x64xf32>
    %128 = arith.mulf %126, %127 : vector<4x64xf32>
    %c0_90 = arith.constant 0 : index
    %c0_91 = arith.constant 0 : index
    %c0_92 = arith.constant 0 : index
    %129 = vector.load %arg3[%c0_90, %c0_91, %c0_92] : memref<9x8x4xf32, #tpu.memory_space<vmem>>, vector<1x8x4xf32>
    %130 = vector.shape_cast %129 : vector<1x8x4xf32> to vector<8x4xf32>
    %cst_93 = arith.constant dense<0.000000e+00> : vector<8x64xf32>
    %131 = tpu.matmul %130, %128, %cst_93 {dimension_numbers = #tpu.dot_dimension_numbers<[1], [0], [0], [1], [0, 0, 1, 1], [], []>} : vector<8x4xf32>, vector<4x64xf32>, vector<8x64xf32> -> vector<8x64xf32>
    %132 = arith.addf %125, %131 : vector<8x64xf32>
    %133 = vector.extract_strided_slice %58 {offsets = [0, 1], sizes = [4, 64], strides = [1, 1]} : vector<4x82xf32> to vector<4x64xf32>
    %c1_94 = arith.constant 1 : index
    %c0_95 = arith.constant 0 : index
    %c0_96 = arith.constant 0 : index
    %134 = vector.load %arg3[%c1_94, %c0_95, %c0_96] : memref<9x8x4xf32, #tpu.memory_space<vmem>>, vector<1x8x4xf32>
    %135 = vector.shape_cast %134 : vector<1x8x4xf32> to vector<8x4xf32>
    %cst_97 = arith.constant dense<0.000000e+00> : vector<8x64xf32>
    %136 = tpu.matmul %135, %133, %cst_97 {dimension_numbers = #tpu.dot_dimension_numbers<[1], [0], [0], [1], [0, 0, 1, 1], [], []>} : vector<8x4xf32>, vector<4x64xf32>, vector<8x64xf32> -> vector<8x64xf32>
    %137 = arith.addf %132, %136 : vector<8x64xf32>
    %138 = vector.extract_strided_slice %58 {offsets = [0, 2], sizes = [4, 64], strides = [1, 1]} : vector<4x82xf32> to vector<4x64xf32>
    %139 = vector.broadcast %62 : vector<1x64xf32> to vector<4x64xf32>
    %140 = arith.mulf %138, %139 : vector<4x64xf32>
    %c2_98 = arith.constant 2 : index
    %c0_99 = arith.constant 0 : index
    %c0_100 = arith.constant 0 : index
    %141 = vector.load %arg3[%c2_98, %c0_99, %c0_100] : memref<9x8x4xf32, #tpu.memory_space<vmem>>, vector<1x8x4xf32>
    %142 = vector.shape_cast %141 : vector<1x8x4xf32> to vector<8x4xf32>
    %cst_101 = arith.constant dense<0.000000e+00> : vector<8x64xf32>
    %143 = tpu.matmul %142, %140, %cst_101 {dimension_numbers = #tpu.dot_dimension_numbers<[1], [0], [0], [1], [0, 0, 1, 1], [], []>} : vector<8x4xf32>, vector<4x64xf32>, vector<8x64xf32> -> vector<8x64xf32>
    %144 = arith.addf %137, %143 : vector<8x64xf32>
    %145 = vector.extract_strided_slice %58 {offsets = [0, 8], sizes = [4, 64], strides = [1, 1]} : vector<4x82xf32> to vector<4x64xf32>
    %146 = vector.broadcast %60 : vector<1x64xf32> to vector<4x64xf32>
    %147 = arith.mulf %145, %146 : vector<4x64xf32>
    %c3_102 = arith.constant 3 : index
    %c0_103 = arith.constant 0 : index
    %c0_104 = arith.constant 0 : index
    %148 = vector.load %arg3[%c3_102, %c0_103, %c0_104] : memref<9x8x4xf32, #tpu.memory_space<vmem>>, vector<1x8x4xf32>
    %149 = vector.shape_cast %148 : vector<1x8x4xf32> to vector<8x4xf32>
    %cst_105 = arith.constant dense<0.000000e+00> : vector<8x64xf32>
    %150 = tpu.matmul %149, %147, %cst_105 {dimension_numbers = #tpu.dot_dimension_numbers<[1], [0], [0], [1], [0, 0, 1, 1], [], []>} : vector<8x4xf32>, vector<4x64xf32>, vector<8x64xf32> -> vector<8x64xf32>
    %151 = arith.addf %144, %150 : vector<8x64xf32>
    %152 = vector.extract_strided_slice %58 {offsets = [0, 9], sizes = [4, 64], strides = [1, 1]} : vector<4x82xf32> to vector<4x64xf32>
    %c4_106 = arith.constant 4 : index
    %c0_107 = arith.constant 0 : index
    %c0_108 = arith.constant 0 : index
    %153 = vector.load %arg3[%c4_106, %c0_107, %c0_108] : memref<9x8x4xf32, #tpu.memory_space<vmem>>, vector<1x8x4xf32>
    %154 = vector.shape_cast %153 : vector<1x8x4xf32> to vector<8x4xf32>
    %cst_109 = arith.constant dense<0.000000e+00> : vector<8x64xf32>
    %155 = tpu.matmul %154, %152, %cst_109 {dimension_numbers = #tpu.dot_dimension_numbers<[1], [0], [0], [1], [0, 0, 1, 1], [], []>} : vector<8x4xf32>, vector<4x64xf32>, vector<8x64xf32> -> vector<8x64xf32>
    %156 = arith.addf %151, %155 : vector<8x64xf32>
    %157 = vector.extract_strided_slice %58 {offsets = [0, 10], sizes = [4, 64], strides = [1, 1]} : vector<4x82xf32> to vector<4x64xf32>
    %158 = vector.broadcast %62 : vector<1x64xf32> to vector<4x64xf32>
    %159 = arith.mulf %157, %158 : vector<4x64xf32>
    %c5_110 = arith.constant 5 : index
    %c0_111 = arith.constant 0 : index
    %c0_112 = arith.constant 0 : index
    %160 = vector.load %arg3[%c5_110, %c0_111, %c0_112] : memref<9x8x4xf32, #tpu.memory_space<vmem>>, vector<1x8x4xf32>
    %161 = vector.shape_cast %160 : vector<1x8x4xf32> to vector<8x4xf32>
    %cst_113 = arith.constant dense<0.000000e+00> : vector<8x64xf32>
    %162 = tpu.matmul %161, %159, %cst_113 {dimension_numbers = #tpu.dot_dimension_numbers<[1], [0], [0], [1], [0, 0, 1, 1], [], []>} : vector<8x4xf32>, vector<4x64xf32>, vector<8x64xf32> -> vector<8x64xf32>
    %163 = arith.addf %156, %162 : vector<8x64xf32>
    %164 = vector.extract_strided_slice %58 {offsets = [0, 16], sizes = [4, 64], strides = [1, 1]} : vector<4x82xf32> to vector<4x64xf32>
    %165 = vector.broadcast %60 : vector<1x64xf32> to vector<4x64xf32>
    %166 = arith.mulf %164, %165 : vector<4x64xf32>
    %c6_114 = arith.constant 6 : index
    %c0_115 = arith.constant 0 : index
    %c0_116 = arith.constant 0 : index
    %167 = vector.load %arg3[%c6_114, %c0_115, %c0_116] : memref<9x8x4xf32, #tpu.memory_space<vmem>>, vector<1x8x4xf32>
    %168 = vector.shape_cast %167 : vector<1x8x4xf32> to vector<8x4xf32>
    %cst_117 = arith.constant dense<0.000000e+00> : vector<8x64xf32>
    %169 = tpu.matmul %168, %166, %cst_117 {dimension_numbers = #tpu.dot_dimension_numbers<[1], [0], [0], [1], [0, 0, 1, 1], [], []>} : vector<8x4xf32>, vector<4x64xf32>, vector<8x64xf32> -> vector<8x64xf32>
    %170 = arith.addf %163, %169 : vector<8x64xf32>
    %171 = vector.extract_strided_slice %58 {offsets = [0, 17], sizes = [4, 64], strides = [1, 1]} : vector<4x82xf32> to vector<4x64xf32>
    %c7_118 = arith.constant 7 : index
    %c0_119 = arith.constant 0 : index
    %c0_120 = arith.constant 0 : index
    %172 = vector.load %arg3[%c7_118, %c0_119, %c0_120] : memref<9x8x4xf32, #tpu.memory_space<vmem>>, vector<1x8x4xf32>
    %173 = vector.shape_cast %172 : vector<1x8x4xf32> to vector<8x4xf32>
    %cst_121 = arith.constant dense<0.000000e+00> : vector<8x64xf32>
    %174 = tpu.matmul %173, %171, %cst_121 {dimension_numbers = #tpu.dot_dimension_numbers<[1], [0], [0], [1], [0, 0, 1, 1], [], []>} : vector<8x4xf32>, vector<4x64xf32>, vector<8x64xf32> -> vector<8x64xf32>
    %175 = arith.addf %170, %174 : vector<8x64xf32>
    %176 = vector.extract_strided_slice %58 {offsets = [0, 18], sizes = [4, 64], strides = [1, 1]} : vector<4x82xf32> to vector<4x64xf32>
    %177 = vector.broadcast %62 : vector<1x64xf32> to vector<4x64xf32>
    %178 = arith.mulf %176, %177 : vector<4x64xf32>
    %c8_122 = arith.constant 8 : index
    %c0_123 = arith.constant 0 : index
    %c0_124 = arith.constant 0 : index
    %179 = vector.load %arg3[%c8_122, %c0_123, %c0_124] : memref<9x8x4xf32, #tpu.memory_space<vmem>>, vector<1x8x4xf32>
    %180 = vector.shape_cast %179 : vector<1x8x4xf32> to vector<8x4xf32>
    %cst_125 = arith.constant dense<0.000000e+00> : vector<8x64xf32>
    %181 = tpu.matmul %180, %178, %cst_125 {dimension_numbers = #tpu.dot_dimension_numbers<[1], [0], [0], [1], [0, 0, 1, 1], [], []>} : vector<8x4xf32>, vector<4x64xf32>, vector<8x64xf32> -> vector<8x64xf32>
    %182 = arith.addf %175, %181 : vector<8x64xf32>
    %183 = vector.broadcast %124 : vector<8x1xf32> to vector<8x64xf32>
    %184 = arith.addf %182, %183 : vector<8x64xf32>
    %c0_126 = arith.constant 0 : index
    %c0_127 = arith.constant 0 : index
    %185 = vector.load %arg5[%c0_126, %c0_127] : memref<8x1xf32, #tpu.memory_space<vmem>>, vector<8x1xf32>
    %c0_128 = arith.constant 0 : index
    %c0_129 = arith.constant 0 : index
    %186 = vector.load %arg6[%c0_128, %c0_129] : memref<8x1xf32, #tpu.memory_space<vmem>>, vector<8x1xf32>
    %cst_130 = arith.constant dense<0.000000e+00> : vector<8xf32>
    %187 = vector.multi_reduction <add>, %123, %cst_130 [1] : vector<8x64xf32> to vector<8xf32>
    %188 = vector.shape_cast %187 : vector<8xf32> to vector<8x1xf32>
    %cst_131 = arith.constant 0.000000e+00 : f32
    %189 = vector.broadcast %cst_131 : f32 to vector<8x1xf32>
    %190 = arith.addf %189, %188 : vector<8x1xf32>
    %cst_132 = arith.constant dense<0.000000e+00> : vector<8xf32>
    %191 = vector.multi_reduction <add>, %184, %cst_132 [1] : vector<8x64xf32> to vector<8xf32>
    %192 = vector.shape_cast %191 : vector<8xf32> to vector<8x1xf32>
    %193 = arith.addf %190, %192 : vector<8x1xf32>
    %cst_133 = arith.constant 1.280000e+02 : f32
    %194 = vector.broadcast %cst_133 : f32 to vector<8x1xf32>
    %195 = arith.divf %193, %194 : vector<8x1xf32>
    %196 = vector.broadcast %195 : vector<8x1xf32> to vector<8x64xf32>
    %197 = arith.subf %123, %196 : vector<8x64xf32>
    %198 = arith.mulf %197, %197 : vector<8x64xf32>
    %cst_134 = arith.constant dense<0.000000e+00> : vector<8xf32>
    %199 = vector.multi_reduction <add>, %198, %cst_134 [1] : vector<8x64xf32> to vector<8xf32>
    %200 = vector.shape_cast %199 : vector<8xf32> to vector<8x1xf32>
    %cst_135 = arith.constant 0.000000e+00 : f32
    %201 = vector.broadcast %cst_135 : f32 to vector<8x1xf32>
    %202 = arith.addf %201, %200 : vector<8x1xf32>
    %203 = vector.broadcast %195 : vector<8x1xf32> to vector<8x64xf32>
    %204 = arith.subf %184, %203 : vector<8x64xf32>
    %205 = arith.mulf %204, %204 : vector<8x64xf32>
    %cst_136 = arith.constant dense<0.000000e+00> : vector<8xf32>
    %206 = vector.multi_reduction <add>, %205, %cst_136 [1] : vector<8x64xf32> to vector<8xf32>
    %207 = vector.shape_cast %206 : vector<8xf32> to vector<8x1xf32>
    %208 = arith.addf %202, %207 : vector<8x1xf32>
    %cst_137 = arith.constant 1.280000e+02 : f32
    %209 = vector.broadcast %cst_137 : f32 to vector<8x1xf32>
    %210 = arith.divf %208, %209 : vector<8x1xf32>
    %cst_138 = arith.constant 9.99999974E-6 : f32
    %211 = vector.broadcast %cst_138 : f32 to vector<8x1xf32>
    %212 = arith.addf %210, %211 : vector<8x1xf32>
    %213 = math.rsqrt %212 : vector<8x1xf32>
    %214 = arith.mulf %185, %213 : vector<8x1xf32>
    %215 = arith.mulf %195, %214 : vector<8x1xf32>
    %216 = arith.subf %186, %215 : vector<8x1xf32>
    %217 = vector.broadcast %214 : vector<8x1xf32> to vector<8x64xf32>
    %218 = arith.mulf %123, %217 : vector<8x64xf32>
    %219 = vector.broadcast %216 : vector<8x1xf32> to vector<8x64xf32>
    %220 = arith.addf %218, %219 : vector<8x64xf32>
    %cst_139 = arith.constant 0.000000e+00 : f32
    %221 = vector.broadcast %cst_139 : f32 to vector<8x64xf32>
    %222 = arith.maximumf %220, %221 : vector<8x64xf32>
    %223 = vector.broadcast %214 : vector<8x1xf32> to vector<8x64xf32>
    %224 = arith.mulf %184, %223 : vector<8x64xf32>
    %225 = vector.broadcast %216 : vector<8x1xf32> to vector<8x64xf32>
    %226 = arith.addf %224, %225 : vector<8x64xf32>
    %cst_140 = arith.constant 0.000000e+00 : f32
    %227 = vector.broadcast %cst_140 : f32 to vector<8x64xf32>
    %228 = arith.maximumf %226, %227 : vector<8x64xf32>
    %cst_141 = arith.constant 0.000000e+00 : f32
    %229 = vector.broadcast %cst_141 : f32 to vector<8x9xf32>
    %230 = tpu.concatenate %229, %222, %229 in 1 : vector<8x9xf32>, vector<8x64xf32>, vector<8x9xf32> -> vector<8x82xf32>
    %c0_142 = arith.constant 0 : index
    %c0_143 = arith.constant 0 : index
    %231 = vector.load %arg8[%c0_142, %c0_143] : memref<8x1xf32, #tpu.memory_space<vmem>>, vector<8x1xf32>
    %cst_144 = arith.constant 0.000000e+00 : f32
    %232 = vector.broadcast %cst_144 : f32 to vector<8x64xf32>
    %233 = vector.extract_strided_slice %230 {offsets = [0, 0], sizes = [8, 64], strides = [1, 1]} : vector<8x82xf32> to vector<8x64xf32>
    %234 = vector.broadcast %60 : vector<1x64xf32> to vector<8x64xf32>
    %235 = arith.mulf %233, %234 : vector<8x64xf32>
    %c0_145 = arith.constant 0 : index
    %c0_146 = arith.constant 0 : index
    %c0_147 = arith.constant 0 : index
    %236 = vector.load %arg7[%c0_145, %c0_146, %c0_147] : memref<9x8x8xf32, #tpu.memory_space<vmem>>, vector<1x8x8xf32>
    %237 = vector.shape_cast %236 : vector<1x8x8xf32> to vector<8x8xf32>
    %cst_148 = arith.constant dense<0.000000e+00> : vector<8x64xf32>
    %238 = tpu.matmul %237, %235, %cst_148 {dimension_numbers = #tpu.dot_dimension_numbers<[1], [0], [0], [1], [0, 0, 1, 1], [], []>} : vector<8x8xf32>, vector<8x64xf32>, vector<8x64xf32> -> vector<8x64xf32>
    %239 = arith.addf %232, %238 : vector<8x64xf32>
    %240 = vector.extract_strided_slice %230 {offsets = [0, 1], sizes = [8, 64], strides = [1, 1]} : vector<8x82xf32> to vector<8x64xf32>
    %c1_149 = arith.constant 1 : index
    %c0_150 = arith.constant 0 : index
    %c0_151 = arith.constant 0 : index
    %241 = vector.load %arg7[%c1_149, %c0_150, %c0_151] : memref<9x8x8xf32, #tpu.memory_space<vmem>>, vector<1x8x8xf32>
    %242 = vector.shape_cast %241 : vector<1x8x8xf32> to vector<8x8xf32>
    %cst_152 = arith.constant dense<0.000000e+00> : vector<8x64xf32>
    %243 = tpu.matmul %242, %240, %cst_152 {dimension_numbers = #tpu.dot_dimension_numbers<[1], [0], [0], [1], [0, 0, 1, 1], [], []>} : vector<8x8xf32>, vector<8x64xf32>, vector<8x64xf32> -> vector<8x64xf32>
    %244 = arith.addf %239, %243 : vector<8x64xf32>
    %245 = vector.extract_strided_slice %230 {offsets = [0, 2], sizes = [8, 64], strides = [1, 1]} : vector<8x82xf32> to vector<8x64xf32>
    %246 = vector.broadcast %62 : vector<1x64xf32> to vector<8x64xf32>
    %247 = arith.mulf %245, %246 : vector<8x64xf32>
    %c2_153 = arith.constant 2 : index
    %c0_154 = arith.constant 0 : index
    %c0_155 = arith.constant 0 : index
    %248 = vector.load %arg7[%c2_153, %c0_154, %c0_155] : memref<9x8x8xf32, #tpu.memory_space<vmem>>, vector<1x8x8xf32>
    %249 = vector.shape_cast %248 : vector<1x8x8xf32> to vector<8x8xf32>
    %cst_156 = arith.constant dense<0.000000e+00> : vector<8x64xf32>
    %250 = tpu.matmul %249, %247, %cst_156 {dimension_numbers = #tpu.dot_dimension_numbers<[1], [0], [0], [1], [0, 0, 1, 1], [], []>} : vector<8x8xf32>, vector<8x64xf32>, vector<8x64xf32> -> vector<8x64xf32>
    %251 = arith.addf %244, %250 : vector<8x64xf32>
    %252 = vector.extract_strided_slice %230 {offsets = [0, 8], sizes = [8, 64], strides = [1, 1]} : vector<8x82xf32> to vector<8x64xf32>
    %253 = vector.broadcast %60 : vector<1x64xf32> to vector<8x64xf32>
    %254 = arith.mulf %252, %253 : vector<8x64xf32>
    %c3_157 = arith.constant 3 : index
    %c0_158 = arith.constant 0 : index
    %c0_159 = arith.constant 0 : index
    %255 = vector.load %arg7[%c3_157, %c0_158, %c0_159] : memref<9x8x8xf32, #tpu.memory_space<vmem>>, vector<1x8x8xf32>
    %256 = vector.shape_cast %255 : vector<1x8x8xf32> to vector<8x8xf32>
    %cst_160 = arith.constant dense<0.000000e+00> : vector<8x64xf32>
    %257 = tpu.matmul %256, %254, %cst_160 {dimension_numbers = #tpu.dot_dimension_numbers<[1], [0], [0], [1], [0, 0, 1, 1], [], []>} : vector<8x8xf32>, vector<8x64xf32>, vector<8x64xf32> -> vector<8x64xf32>
    %258 = arith.addf %251, %257 : vector<8x64xf32>
    %259 = vector.extract_strided_slice %230 {offsets = [0, 9], sizes = [8, 64], strides = [1, 1]} : vector<8x82xf32> to vector<8x64xf32>
    %c4_161 = arith.constant 4 : index
    %c0_162 = arith.constant 0 : index
    %c0_163 = arith.constant 0 : index
    %260 = vector.load %arg7[%c4_161, %c0_162, %c0_163] : memref<9x8x8xf32, #tpu.memory_space<vmem>>, vector<1x8x8xf32>
    %261 = vector.shape_cast %260 : vector<1x8x8xf32> to vector<8x8xf32>
    %cst_164 = arith.constant dense<0.000000e+00> : vector<8x64xf32>
    %262 = tpu.matmul %261, %259, %cst_164 {dimension_numbers = #tpu.dot_dimension_numbers<[1], [0], [0], [1], [0, 0, 1, 1], [], []>} : vector<8x8xf32>, vector<8x64xf32>, vector<8x64xf32> -> vector<8x64xf32>
    %263 = arith.addf %258, %262 : vector<8x64xf32>
    %264 = vector.extract_strided_slice %230 {offsets = [0, 10], sizes = [8, 64], strides = [1, 1]} : vector<8x82xf32> to vector<8x64xf32>
    %265 = vector.broadcast %62 : vector<1x64xf32> to vector<8x64xf32>
    %266 = arith.mulf %264, %265 : vector<8x64xf32>
    %c5_165 = arith.constant 5 : index
    %c0_166 = arith.constant 0 : index
    %c0_167 = arith.constant 0 : index
    %267 = vector.load %arg7[%c5_165, %c0_166, %c0_167] : memref<9x8x8xf32, #tpu.memory_space<vmem>>, vector<1x8x8xf32>
    %268 = vector.shape_cast %267 : vector<1x8x8xf32> to vector<8x8xf32>
    %cst_168 = arith.constant dense<0.000000e+00> : vector<8x64xf32>
    %269 = tpu.matmul %268, %266, %cst_168 {dimension_numbers = #tpu.dot_dimension_numbers<[1], [0], [0], [1], [0, 0, 1, 1], [], []>} : vector<8x8xf32>, vector<8x64xf32>, vector<8x64xf32> -> vector<8x64xf32>
    %270 = arith.addf %263, %269 : vector<8x64xf32>
    %271 = vector.extract_strided_slice %230 {offsets = [0, 16], sizes = [8, 64], strides = [1, 1]} : vector<8x82xf32> to vector<8x64xf32>
    %272 = vector.broadcast %60 : vector<1x64xf32> to vector<8x64xf32>
    %273 = arith.mulf %271, %272 : vector<8x64xf32>
    %c6_169 = arith.constant 6 : index
    %c0_170 = arith.constant 0 : index
    %c0_171 = arith.constant 0 : index
    %274 = vector.load %arg7[%c6_169, %c0_170, %c0_171] : memref<9x8x8xf32, #tpu.memory_space<vmem>>, vector<1x8x8xf32>
    %275 = vector.shape_cast %274 : vector<1x8x8xf32> to vector<8x8xf32>
    %cst_172 = arith.constant dense<0.000000e+00> : vector<8x64xf32>
    %276 = tpu.matmul %275, %273, %cst_172 {dimension_numbers = #tpu.dot_dimension_numbers<[1], [0], [0], [1], [0, 0, 1, 1], [], []>} : vector<8x8xf32>, vector<8x64xf32>, vector<8x64xf32> -> vector<8x64xf32>
    %277 = arith.addf %270, %276 : vector<8x64xf32>
    %278 = vector.extract_strided_slice %230 {offsets = [0, 17], sizes = [8, 64], strides = [1, 1]} : vector<8x82xf32> to vector<8x64xf32>
    %c7_173 = arith.constant 7 : index
    %c0_174 = arith.constant 0 : index
    %c0_175 = arith.constant 0 : index
    %279 = vector.load %arg7[%c7_173, %c0_174, %c0_175] : memref<9x8x8xf32, #tpu.memory_space<vmem>>, vector<1x8x8xf32>
    %280 = vector.shape_cast %279 : vector<1x8x8xf32> to vector<8x8xf32>
    %cst_176 = arith.constant dense<0.000000e+00> : vector<8x64xf32>
    %281 = tpu.matmul %280, %278, %cst_176 {dimension_numbers = #tpu.dot_dimension_numbers<[1], [0], [0], [1], [0, 0, 1, 1], [], []>} : vector<8x8xf32>, vector<8x64xf32>, vector<8x64xf32> -> vector<8x64xf32>
    %282 = arith.addf %277, %281 : vector<8x64xf32>
    %283 = vector.extract_strided_slice %230 {offsets = [0, 18], sizes = [8, 64], strides = [1, 1]} : vector<8x82xf32> to vector<8x64xf32>
    %284 = vector.broadcast %62 : vector<1x64xf32> to vector<8x64xf32>
    %285 = arith.mulf %283, %284 : vector<8x64xf32>
    %c8_177 = arith.constant 8 : index
    %c0_178 = arith.constant 0 : index
    %c0_179 = arith.constant 0 : index
    %286 = vector.load %arg7[%c8_177, %c0_178, %c0_179] : memref<9x8x8xf32, #tpu.memory_space<vmem>>, vector<1x8x8xf32>
    %287 = vector.shape_cast %286 : vector<1x8x8xf32> to vector<8x8xf32>
    %cst_180 = arith.constant dense<0.000000e+00> : vector<8x64xf32>
    %288 = tpu.matmul %287, %285, %cst_180 {dimension_numbers = #tpu.dot_dimension_numbers<[1], [0], [0], [1], [0, 0, 1, 1], [], []>} : vector<8x8xf32>, vector<8x64xf32>, vector<8x64xf32> -> vector<8x64xf32>
    %289 = arith.addf %282, %288 : vector<8x64xf32>
    %290 = vector.broadcast %231 : vector<8x1xf32> to vector<8x64xf32>
    %291 = arith.addf %289, %290 : vector<8x64xf32>
    %cst_181 = arith.constant 0.000000e+00 : f32
    %292 = vector.broadcast %cst_181 : f32 to vector<8x9xf32>
    %293 = tpu.concatenate %292, %228, %292 in 1 : vector<8x9xf32>, vector<8x64xf32>, vector<8x9xf32> -> vector<8x82xf32>
    %c0_182 = arith.constant 0 : index
    %c0_183 = arith.constant 0 : index
    %294 = vector.load %arg8[%c0_182, %c0_183] : memref<8x1xf32, #tpu.memory_space<vmem>>, vector<8x1xf32>
    %cst_184 = arith.constant 0.000000e+00 : f32
    %295 = vector.broadcast %cst_184 : f32 to vector<8x64xf32>
    %296 = vector.extract_strided_slice %293 {offsets = [0, 0], sizes = [8, 64], strides = [1, 1]} : vector<8x82xf32> to vector<8x64xf32>
    %297 = vector.broadcast %60 : vector<1x64xf32> to vector<8x64xf32>
    %298 = arith.mulf %296, %297 : vector<8x64xf32>
    %c0_185 = arith.constant 0 : index
    %c0_186 = arith.constant 0 : index
    %c0_187 = arith.constant 0 : index
    %299 = vector.load %arg7[%c0_185, %c0_186, %c0_187] : memref<9x8x8xf32, #tpu.memory_space<vmem>>, vector<1x8x8xf32>
    %300 = vector.shape_cast %299 : vector<1x8x8xf32> to vector<8x8xf32>
    %cst_188 = arith.constant dense<0.000000e+00> : vector<8x64xf32>
    %301 = tpu.matmul %300, %298, %cst_188 {dimension_numbers = #tpu.dot_dimension_numbers<[1], [0], [0], [1], [0, 0, 1, 1], [], []>} : vector<8x8xf32>, vector<8x64xf32>, vector<8x64xf32> -> vector<8x64xf32>
    %302 = arith.addf %295, %301 : vector<8x64xf32>
    %303 = vector.extract_strided_slice %293 {offsets = [0, 1], sizes = [8, 64], strides = [1, 1]} : vector<8x82xf32> to vector<8x64xf32>
    %c1_189 = arith.constant 1 : index
    %c0_190 = arith.constant 0 : index
    %c0_191 = arith.constant 0 : index
    %304 = vector.load %arg7[%c1_189, %c0_190, %c0_191] : memref<9x8x8xf32, #tpu.memory_space<vmem>>, vector<1x8x8xf32>
    %305 = vector.shape_cast %304 : vector<1x8x8xf32> to vector<8x8xf32>
    %cst_192 = arith.constant dense<0.000000e+00> : vector<8x64xf32>
    %306 = tpu.matmul %305, %303, %cst_192 {dimension_numbers = #tpu.dot_dimension_numbers<[1], [0], [0], [1], [0, 0, 1, 1], [], []>} : vector<8x8xf32>, vector<8x64xf32>, vector<8x64xf32> -> vector<8x64xf32>
    %307 = arith.addf %302, %306 : vector<8x64xf32>
    %308 = vector.extract_strided_slice %293 {offsets = [0, 2], sizes = [8, 64], strides = [1, 1]} : vector<8x82xf32> to vector<8x64xf32>
    %309 = vector.broadcast %62 : vector<1x64xf32> to vector<8x64xf32>
    %310 = arith.mulf %308, %309 : vector<8x64xf32>
    %c2_193 = arith.constant 2 : index
    %c0_194 = arith.constant 0 : index
    %c0_195 = arith.constant 0 : index
    %311 = vector.load %arg7[%c2_193, %c0_194, %c0_195] : memref<9x8x8xf32, #tpu.memory_space<vmem>>, vector<1x8x8xf32>
    %312 = vector.shape_cast %311 : vector<1x8x8xf32> to vector<8x8xf32>
    %cst_196 = arith.constant dense<0.000000e+00> : vector<8x64xf32>
    %313 = tpu.matmul %312, %310, %cst_196 {dimension_numbers = #tpu.dot_dimension_numbers<[1], [0], [0], [1], [0, 0, 1, 1], [], []>} : vector<8x8xf32>, vector<8x64xf32>, vector<8x64xf32> -> vector<8x64xf32>
    %314 = arith.addf %307, %313 : vector<8x64xf32>
    %315 = vector.extract_strided_slice %293 {offsets = [0, 8], sizes = [8, 64], strides = [1, 1]} : vector<8x82xf32> to vector<8x64xf32>
    %316 = vector.broadcast %60 : vector<1x64xf32> to vector<8x64xf32>
    %317 = arith.mulf %315, %316 : vector<8x64xf32>
    %c3_197 = arith.constant 3 : index
    %c0_198 = arith.constant 0 : index
    %c0_199 = arith.constant 0 : index
    %318 = vector.load %arg7[%c3_197, %c0_198, %c0_199] : memref<9x8x8xf32, #tpu.memory_space<vmem>>, vector<1x8x8xf32>
    %319 = vector.shape_cast %318 : vector<1x8x8xf32> to vector<8x8xf32>
    %cst_200 = arith.constant dense<0.000000e+00> : vector<8x64xf32>
    %320 = tpu.matmul %319, %317, %cst_200 {dimension_numbers = #tpu.dot_dimension_numbers<[1], [0], [0], [1], [0, 0, 1, 1], [], []>} : vector<8x8xf32>, vector<8x64xf32>, vector<8x64xf32> -> vector<8x64xf32>
    %321 = arith.addf %314, %320 : vector<8x64xf32>
    %322 = vector.extract_strided_slice %293 {offsets = [0, 9], sizes = [8, 64], strides = [1, 1]} : vector<8x82xf32> to vector<8x64xf32>
    %c4_201 = arith.constant 4 : index
    %c0_202 = arith.constant 0 : index
    %c0_203 = arith.constant 0 : index
    %323 = vector.load %arg7[%c4_201, %c0_202, %c0_203] : memref<9x8x8xf32, #tpu.memory_space<vmem>>, vector<1x8x8xf32>
    %324 = vector.shape_cast %323 : vector<1x8x8xf32> to vector<8x8xf32>
    %cst_204 = arith.constant dense<0.000000e+00> : vector<8x64xf32>
    %325 = tpu.matmul %324, %322, %cst_204 {dimension_numbers = #tpu.dot_dimension_numbers<[1], [0], [0], [1], [0, 0, 1, 1], [], []>} : vector<8x8xf32>, vector<8x64xf32>, vector<8x64xf32> -> vector<8x64xf32>
    %326 = arith.addf %321, %325 : vector<8x64xf32>
    %327 = vector.extract_strided_slice %293 {offsets = [0, 10], sizes = [8, 64], strides = [1, 1]} : vector<8x82xf32> to vector<8x64xf32>
    %328 = vector.broadcast %62 : vector<1x64xf32> to vector<8x64xf32>
    %329 = arith.mulf %327, %328 : vector<8x64xf32>
    %c5_205 = arith.constant 5 : index
    %c0_206 = arith.constant 0 : index
    %c0_207 = arith.constant 0 : index
    %330 = vector.load %arg7[%c5_205, %c0_206, %c0_207] : memref<9x8x8xf32, #tpu.memory_space<vmem>>, vector<1x8x8xf32>
    %331 = vector.shape_cast %330 : vector<1x8x8xf32> to vector<8x8xf32>
    %cst_208 = arith.constant dense<0.000000e+00> : vector<8x64xf32>
    %332 = tpu.matmul %331, %329, %cst_208 {dimension_numbers = #tpu.dot_dimension_numbers<[1], [0], [0], [1], [0, 0, 1, 1], [], []>} : vector<8x8xf32>, vector<8x64xf32>, vector<8x64xf32> -> vector<8x64xf32>
    %333 = arith.addf %326, %332 : vector<8x64xf32>
    %334 = vector.extract_strided_slice %293 {offsets = [0, 16], sizes = [8, 64], strides = [1, 1]} : vector<8x82xf32> to vector<8x64xf32>
    %335 = vector.broadcast %60 : vector<1x64xf32> to vector<8x64xf32>
    %336 = arith.mulf %334, %335 : vector<8x64xf32>
    %c6_209 = arith.constant 6 : index
    %c0_210 = arith.constant 0 : index
    %c0_211 = arith.constant 0 : index
    %337 = vector.load %arg7[%c6_209, %c0_210, %c0_211] : memref<9x8x8xf32, #tpu.memory_space<vmem>>, vector<1x8x8xf32>
    %338 = vector.shape_cast %337 : vector<1x8x8xf32> to vector<8x8xf32>
    %cst_212 = arith.constant dense<0.000000e+00> : vector<8x64xf32>
    %339 = tpu.matmul %338, %336, %cst_212 {dimension_numbers = #tpu.dot_dimension_numbers<[1], [0], [0], [1], [0, 0, 1, 1], [], []>} : vector<8x8xf32>, vector<8x64xf32>, vector<8x64xf32> -> vector<8x64xf32>
    %340 = arith.addf %333, %339 : vector<8x64xf32>
    %341 = vector.extract_strided_slice %293 {offsets = [0, 17], sizes = [8, 64], strides = [1, 1]} : vector<8x82xf32> to vector<8x64xf32>
    %c7_213 = arith.constant 7 : index
    %c0_214 = arith.constant 0 : index
    %c0_215 = arith.constant 0 : index
    %342 = vector.load %arg7[%c7_213, %c0_214, %c0_215] : memref<9x8x8xf32, #tpu.memory_space<vmem>>, vector<1x8x8xf32>
    %343 = vector.shape_cast %342 : vector<1x8x8xf32> to vector<8x8xf32>
    %cst_216 = arith.constant dense<0.000000e+00> : vector<8x64xf32>
    %344 = tpu.matmul %343, %341, %cst_216 {dimension_numbers = #tpu.dot_dimension_numbers<[1], [0], [0], [1], [0, 0, 1, 1], [], []>} : vector<8x8xf32>, vector<8x64xf32>, vector<8x64xf32> -> vector<8x64xf32>
    %345 = arith.addf %340, %344 : vector<8x64xf32>
    %346 = vector.extract_strided_slice %293 {offsets = [0, 18], sizes = [8, 64], strides = [1, 1]} : vector<8x82xf32> to vector<8x64xf32>
    %347 = vector.broadcast %62 : vector<1x64xf32> to vector<8x64xf32>
    %348 = arith.mulf %346, %347 : vector<8x64xf32>
    %c8_217 = arith.constant 8 : index
    %c0_218 = arith.constant 0 : index
    %c0_219 = arith.constant 0 : index
    %349 = vector.load %arg7[%c8_217, %c0_218, %c0_219] : memref<9x8x8xf32, #tpu.memory_space<vmem>>, vector<1x8x8xf32>
    %350 = vector.shape_cast %349 : vector<1x8x8xf32> to vector<8x8xf32>
    %cst_220 = arith.constant dense<0.000000e+00> : vector<8x64xf32>
    %351 = tpu.matmul %350, %348, %cst_220 {dimension_numbers = #tpu.dot_dimension_numbers<[1], [0], [0], [1], [0, 0, 1, 1], [], []>} : vector<8x8xf32>, vector<8x64xf32>, vector<8x64xf32> -> vector<8x64xf32>
    %352 = arith.addf %345, %351 : vector<8x64xf32>
    %353 = vector.broadcast %294 : vector<8x1xf32> to vector<8x64xf32>
    %354 = arith.addf %352, %353 : vector<8x64xf32>
    %c0_221 = arith.constant 0 : index
    %c0_222 = arith.constant 0 : index
    %355 = vector.load %arg9[%c0_221, %c0_222] : memref<8x1xf32, #tpu.memory_space<vmem>>, vector<8x1xf32>
    %c0_223 = arith.constant 0 : index
    %c0_224 = arith.constant 0 : index
    %356 = vector.load %arg10[%c0_223, %c0_224] : memref<8x1xf32, #tpu.memory_space<vmem>>, vector<8x1xf32>
    %cst_225 = arith.constant dense<0.000000e+00> : vector<8xf32>
    %357 = vector.multi_reduction <add>, %291, %cst_225 [1] : vector<8x64xf32> to vector<8xf32>
    %358 = vector.shape_cast %357 : vector<8xf32> to vector<8x1xf32>
    %cst_226 = arith.constant 0.000000e+00 : f32
    %359 = vector.broadcast %cst_226 : f32 to vector<8x1xf32>
    %360 = arith.addf %359, %358 : vector<8x1xf32>
    %cst_227 = arith.constant dense<0.000000e+00> : vector<8xf32>
    %361 = vector.multi_reduction <add>, %354, %cst_227 [1] : vector<8x64xf32> to vector<8xf32>
    %362 = vector.shape_cast %361 : vector<8xf32> to vector<8x1xf32>
    %363 = arith.addf %360, %362 : vector<8x1xf32>
    %cst_228 = arith.constant 1.280000e+02 : f32
    %364 = vector.broadcast %cst_228 : f32 to vector<8x1xf32>
    %365 = arith.divf %363, %364 : vector<8x1xf32>
    %366 = vector.broadcast %365 : vector<8x1xf32> to vector<8x64xf32>
    %367 = arith.subf %291, %366 : vector<8x64xf32>
    %368 = arith.mulf %367, %367 : vector<8x64xf32>
    %cst_229 = arith.constant dense<0.000000e+00> : vector<8xf32>
    %369 = vector.multi_reduction <add>, %368, %cst_229 [1] : vector<8x64xf32> to vector<8xf32>
    %370 = vector.shape_cast %369 : vector<8xf32> to vector<8x1xf32>
    %cst_230 = arith.constant 0.000000e+00 : f32
    %371 = vector.broadcast %cst_230 : f32 to vector<8x1xf32>
    %372 = arith.addf %371, %370 : vector<8x1xf32>
    %373 = vector.broadcast %365 : vector<8x1xf32> to vector<8x64xf32>
    %374 = arith.subf %354, %373 : vector<8x64xf32>
    %375 = arith.mulf %374, %374 : vector<8x64xf32>
    %cst_231 = arith.constant dense<0.000000e+00> : vector<8xf32>
    %376 = vector.multi_reduction <add>, %375, %cst_231 [1] : vector<8x64xf32> to vector<8xf32>
    %377 = vector.shape_cast %376 : vector<8xf32> to vector<8x1xf32>
    %378 = arith.addf %372, %377 : vector<8x1xf32>
    %cst_232 = arith.constant 1.280000e+02 : f32
    %379 = vector.broadcast %cst_232 : f32 to vector<8x1xf32>
    %380 = arith.divf %378, %379 : vector<8x1xf32>
    %cst_233 = arith.constant 9.99999974E-6 : f32
    %381 = vector.broadcast %cst_233 : f32 to vector<8x1xf32>
    %382 = arith.addf %380, %381 : vector<8x1xf32>
    %383 = math.rsqrt %382 : vector<8x1xf32>
    %384 = arith.mulf %355, %383 : vector<8x1xf32>
    %385 = arith.mulf %365, %384 : vector<8x1xf32>
    %386 = arith.subf %356, %385 : vector<8x1xf32>
    %387 = vector.broadcast %384 : vector<8x1xf32> to vector<8x64xf32>
    %388 = arith.mulf %291, %387 : vector<8x64xf32>
    %389 = vector.broadcast %386 : vector<8x1xf32> to vector<8x64xf32>
    %390 = arith.addf %388, %389 : vector<8x64xf32>
    %cst_234 = arith.constant 0.000000e+00 : f32
    %391 = vector.broadcast %cst_234 : f32 to vector<8x64xf32>
    %392 = arith.maximumf %390, %391 : vector<8x64xf32>
    %393 = vector.broadcast %384 : vector<8x1xf32> to vector<8x64xf32>
    %394 = arith.mulf %354, %393 : vector<8x64xf32>
    %395 = vector.broadcast %386 : vector<8x1xf32> to vector<8x64xf32>
    %396 = arith.addf %394, %395 : vector<8x64xf32>
    %cst_235 = arith.constant 0.000000e+00 : f32
    %397 = vector.broadcast %cst_235 : f32 to vector<8x64xf32>
    %398 = arith.maximumf %396, %397 : vector<8x64xf32>
    %c0_236 = arith.constant 0 : index
    %c0_237 = arith.constant 0 : index
    %c0_238 = arith.constant 0 : index
    %399 = vector.load %arg11[%c0_236, %c0_237, %c0_238] : memref<2x8x64xf32, #tpu.memory_space<vmem>>, vector<1x8x64xf32>
    %400 = vector.shape_cast %399 : vector<1x8x64xf32> to vector<8x64xf32>
    %401 = vector.shape_cast %392 : vector<8x64xf32> to vector<1x8x64xf32>
    tpu.vector_store %arg11[%c0_236, %c0_237, %c0_238], %401 {strides = array<i32>} : memref<2x8x64xf32, #tpu.memory_space<vmem>>, vector<1x8x64xf32>,
    %c1_239 = arith.constant 1 : index
    %c0_240 = arith.constant 0 : index
    %c0_241 = arith.constant 0 : index
    %402 = vector.load %arg11[%c1_239, %c0_240, %c0_241] : memref<2x8x64xf32, #tpu.memory_space<vmem>>, vector<1x8x64xf32>
    %403 = vector.shape_cast %402 : vector<1x8x64xf32> to vector<8x64xf32>
    %404 = vector.shape_cast %398 : vector<8x64xf32> to vector<1x8x64xf32>
    tpu.vector_store %arg11[%c1_239, %c0_240, %c0_241], %404 {strides = array<i32>} : memref<2x8x64xf32, #tpu.memory_space<vmem>>, vector<1x8x64xf32>,
    return
  }
}

</mosaic_0001>

<llo_original>
// kernel: tpu_custom_call.1
$region0: #{tpu_custom_call.1}
  #allocation0 [shape = 'u32[]', space=smem, size = 0x4, offset = 0x4, fixed_abs, tag = 'smem constant byte address 0x4 - core index']
  #allocation1 [shape = 'u32[144,128]{1,0:T(1,128)}', space=vmem, size = 0x12000, scoped, tag = 'internal scratch']
  %s0 = inlined_call_operand.vmem [shape: f32[2,4,256], index: 0, kind: input, shape index: {}]
  %s1 = inlined_call_operand.vmem [shape: s32[4,1,82], index: 1, kind: input, shape index: {}]
  %s2 = inlined_call_operand.vmem [shape: f32[2,1,64], index: 2, kind: input, shape index: {}]
  %s3 = inlined_call_operand.vmem [shape: f32[9,8,4], index: 3, kind: input, shape index: {}]
  %s4 = inlined_call_operand.vmem [shape: f32[8,1], index: 4, kind: input, shape index: {}]
  %s5 = inlined_call_operand.vmem [shape: f32[8,1], index: 5, kind: input, shape index: {}]
  %s6 = inlined_call_operand.vmem [shape: f32[8,1], index: 6, kind: input, shape index: {}]
  %s7 = inlined_call_operand.vmem [shape: f32[9,8,8], index: 7, kind: input, shape index: {}]
  %s8 = inlined_call_operand.vmem [shape: f32[8,1], index: 8, kind: input, shape index: {}]
  %s9 = inlined_call_operand.vmem [shape: f32[8,1], index: 9, kind: input, shape index: {}]
  %s10 = inlined_call_operand.vmem [shape: f32[8,1], index: 10, kind: input, shape index: {}]
  %s11 = inlined_call_operand.hbm [shape: f32[2,8,64], index: 11, kind: output, shape index: {}]
  %s12 = sld [smem:[#allocation0]]
  $region54: #{tpu_custom_call.1} parent=0
    _
  %s14 = ssub.s32 1, %s12
  %s15 = scalar_select 0, %s14, %s12
  $region1: #{tpu_custom_call.1} parent=0
    #allocation2 [shape = 'u8[8192]{0}', space=vmem, size = 0x2000, scoped, tag = 'output window, operand 0, single buffered']
    #allocation3 [shape = 's32[1]{0}', space=sflag, size = 0x4, scoped, tag = 'scoped memory for tpu_custom_call.1']
    %16 = vsyncpa [#allocation3], 0
    // Predicated region
    $region2: #{tpu_custom_call.1} parent=1 // pred_check
      _
    $region3: #{tpu_custom_call.1} parent=1 // pred_check_branch
      %18 = sbr.rel (0) target = $region5
    $region4: #{tpu_custom_call.1} parent=1 // pred_region
      _
    $region5: #{tpu_custom_call.1} parent=1 // pred_fallthru
      _
    // Predicated region
    $region6: #{tpu_custom_call.1} parent=1 // pred_check
      _
    $region7: #{tpu_custom_call.1} parent=1 // pred_check_branch
      %20 = sbr.rel (0) target = $region9
    $region8: #{tpu_custom_call.1} parent=1 // pred_region
      _
    $region9: #{tpu_custom_call.1} parent=1 // pred_fallthru
      _
    // Predicated region
    $region10: #{tpu_custom_call.1} parent=1 // pred_check
      _
    $region11: #{tpu_custom_call.1} parent=1 // pred_check_branch
      %22 = sbr.rel (0) target = $region13
    $region12: #{tpu_custom_call.1} parent=1 // pred_region
      _
    $region13: #{tpu_custom_call.1} parent=1 // pred_fallthru
      _
    // Predicated region
    $region14: #{tpu_custom_call.1} parent=1 // pred_check
      _
    $region15: #{tpu_custom_call.1} parent=1 // pred_check_branch
      %24 = sbr.rel (0) target = $region17
    $region16: #{tpu_custom_call.1} parent=1 // pred_region
      _
    $region17: #{tpu_custom_call.1} parent=1 // pred_fallthru
      _
    // Predicated region
    $region18: #{tpu_custom_call.1} parent=1 // pred_check
      _
    $region19: #{tpu_custom_call.1} parent=1 // pred_check_branch
      %26 = sbr.rel (0) target = $region21
    $region20: #{tpu_custom_call.1} parent=1 // pred_region
      _
    $region21: #{tpu_custom_call.1} parent=1 // pred_fallthru
      _
    // Predicated region
    $region22: #{tpu_custom_call.1} parent=1 // pred_check
      _
    $region23: #{tpu_custom_call.1} parent=1 // pred_check_branch
      %28 = sbr.rel (0) target = $region25
    $region24: #{tpu_custom_call.1} parent=1 // pred_region
      _
    $region25: #{tpu_custom_call.1} parent=1 // pred_fallthru
      _
    // Predicated region
    $region26: #{tpu_custom_call.1} parent=1 // pred_check
      _
    $region27: #{tpu_custom_call.1} parent=1 // pred_check_branch
      %30 = sbr.rel (0) target = $region29
    $region28: #{tpu_custom_call.1} parent=1 // pred_region
      _
    $region29: #{tpu_custom_call.1} parent=1 // pred_fallthru
      _
    // Predicated region
    $region30: #{tpu_custom_call.1} parent=1 // pred_check
      _
    $region31: #{tpu_custom_call.1} parent=1 // pred_check_branch
      %32 = sbr.rel (0) target = $region33
    $region32: #{tpu_custom_call.1} parent=1 // pred_region
      _
    $region33: #{tpu_custom_call.1} parent=1 // pred_fallthru
      _
    // Predicated region
    $region34: #{tpu_custom_call.1} parent=1 // pred_check
      _
    $region35: #{tpu_custom_call.1} parent=1 // pred_check_branch
      %34 = sbr.rel (0) target = $region37
    $region36: #{tpu_custom_call.1} parent=1 // pred_region
      _
    $region37: #{tpu_custom_call.1} parent=1 // pred_fallthru
      _
    // Predicated region
    $region38: #{tpu_custom_call.1} parent=1 // pred_check
      _
    $region39: #{tpu_custom_call.1} parent=1 // pred_check_branch
      %36 = sbr.rel (0) target = $region41
    $region40: #{tpu_custom_call.1} parent=1 // pred_region
      _
    $region41: #{tpu_custom_call.1} parent=1 // pred_fallthru
      _
    // Predicated region
    $region42: #{tpu_custom_call.1} parent=1 // pred_check
      _
    $region43: #{tpu_custom_call.1} parent=1 // pred_check_branch
      %38 = sbr.rel (0) target = $region45
    $region44: #{tpu_custom_call.1} parent=1 // pred_region
      _
    $region45: #{tpu_custom_call.1} parent=1 // pred_fallthru
      _
    %v39 = vlaneseq
    %v40 = vshrl.u32 %v39, 7
    %v41 = vadd.s32 %v40, 8
    %v42 = vadd.s32 %v40, 16
    %v43 = vadd.s32 %v40, 24
    %v44 = vadd.s32 %v40, 32
    %v45 = vadd.s32 %v40, 40
    %v46 = vadd.s32 %v40, 48
    %v47 = vadd.s32 %v40, 56
    %v48 = vadd.s32 %v40, 64
    %v49 = vadd.s32 %v40, 72
    %v50 = vadd.s32 %v40, 80
    %v51 = vadd.s32 %v40, 88
    %v52 = vadd.s32 %v40, 96
    %v53 = vadd.s32 %v40, 104
    %v54 = vadd.s32 %v40, 112
    %v55 = vadd.s32 %v40, 120
    %v56 = vadd.s32 %v40, 128
    %v57 = vadd.s32 %v40, 136
    %v58 = vadd.s32 %v40, 144
    %v59 = vadd.s32 %v40, 152
    %v60 = vadd.s32 %v40, 160
    %v61 = vadd.s32 %v40, 168
    %v62 = vadd.s32 %v40, 176
    %v63 = vadd.s32 %v40, 184
    %v64 = vadd.s32 %v40, 192
    %v65 = vadd.s32 %v40, 200
    %v66 = vadd.s32 %v40, 208
    %v67 = vadd.s32 %v40, 216
    %v68 = vadd.s32 %v40, 224
    %v69 = vadd.s32 %v40, 232
    %v70 = vadd.s32 %v40, 240
    %v71 = vadd.s32 %v40, 248
    %v72 = vld [vmem:[%s1] sm:$0x1]
    %v73 = vlaneseq
    %v74 = vshrl.u32 %v73, 7
    %v75 = vsub.s32 0, %v74
    %v76 = vrot.slane %v72, %v75
    %vm77 = vcmp.eq.s32.totalorder %v40, %v76
    %vm78 = vcmp.eq.s32.totalorder %v41, %v76
    %vm79 = vcmp.eq.s32.totalorder %v42, %v76
    %vm80 = vcmp.eq.s32.totalorder %v43, %v76
    %vm81 = vcmp.eq.s32.totalorder %v44, %v76
    %vm82 = vcmp.eq.s32.totalorder %v45, %v76
    %vm83 = vcmp.eq.s32.totalorder %v46, %v76
    %vm84 = vcmp.eq.s32.totalorder %v47, %v76
    %vm85 = vcmp.eq.s32.totalorder %v48, %v76
    %vm86 = vcmp.eq.s32.totalorder %v49, %v76
    %vm87 = vcmp.eq.s32.totalorder %v50, %v76
    %vm88 = vcmp.eq.s32.totalorder %v51, %v76
    %vm89 = vcmp.eq.s32.totalorder %v52, %v76
    %vm90 = vcmp.eq.s32.totalorder %v53, %v76
    %vm91 = vcmp.eq.s32.totalorder %v54, %v76
    %vm92 = vcmp.eq.s32.totalorder %v55, %v76
    %vm93 = vcmp.eq.s32.totalorder %v56, %v76
    %vm94 = vcmp.eq.s32.totalorder %v57, %v76
    %vm95 = vcmp.eq.s32.totalorder %v58, %v76
    %vm96 = vcmp.eq.s32.totalorder %v59, %v76
    %vm97 = vcmp.eq.s32.totalorder %v60, %v76
    %vm98 = vcmp.eq.s32.totalorder %v61, %v76
    %vm99 = vcmp.eq.s32.totalorder %v62, %v76
    %vm100 = vcmp.eq.s32.totalorder %v63, %v76
    %vm101 = vcmp.eq.s32.totalorder %v64, %v76
    %vm102 = vcmp.eq.s32.totalorder %v65, %v76
    %vm103 = vcmp.eq.s32.totalorder %v66, %v76
    %vm104 = vcmp.eq.s32.totalorder %v67, %v76
    %vm105 = vcmp.eq.s32.totalorder %v68, %v76
    %vm106 = vcmp.eq.s32.totalorder %v69, %v76
    %vm107 = vcmp.eq.s32.totalorder %v70, %v76
    %vm108 = vcmp.eq.s32.totalorder %v71, %v76
    %v109 = vsel %vm77, 1.0, 0.0
    %v110 = vsel %vm78, 1.0, 0.0
    %v111 = vsel %vm79, 1.0, 0.0
    %v112 = vsel %vm80, 1.0, 0.0
    %v113 = vsel %vm81, 1.0, 0.0
    %v114 = vsel %vm82, 1.0, 0.0
    %v115 = vsel %vm83, 1.0, 0.0
    %v116 = vsel %vm84, 1.0, 0.0
    %v117 = vsel %vm85, 1.0, 0.0
    %v118 = vsel %vm86, 1.0, 0.0
    %v119 = vsel %vm87, 1.0, 0.0
    %v120 = vsel %vm88, 1.0, 0.0
    %v121 = vsel %vm89, 1.0, 0.0
    %v122 = vsel %vm90, 1.0, 0.0
    %v123 = vsel %vm91, 1.0, 0.0
    %v124 = vsel %vm92, 1.0, 0.0
    %v125 = vsel %vm93, 1.0, 0.0
    %v126 = vsel %vm94, 1.0, 0.0
    %v127 = vsel %vm95, 1.0, 0.0
    %v128 = vsel %vm96, 1.0, 0.0
    %v129 = vsel %vm97, 1.0, 0.0
    %v130 = vsel %vm98, 1.0, 0.0
    %v131 = vsel %vm99, 1.0, 0.0
    %v132 = vsel %vm100, 1.0, 0.0
    %v133 = vsel %vm101, 1.0, 0.0
    %v134 = vsel %vm102, 1.0, 0.0
    %v135 = vsel %vm103, 1.0, 0.0
    %v136 = vsel %vm104, 1.0, 0.0
    %v137 = vsel %vm105, 1.0, 0.0
    %v138 = vsel %vm106, 1.0, 0.0
    %v139 = vsel %vm107, 1.0, 0.0
    %v140 = vsel %vm108, 1.0, 0.0
    %v141 = vld [vmem:[%s0] sm:$0xff]
    %v143 = vcombine.high %v141, %v141
    %145 = vmatprep.subr.mxu0 0.0
    %146 = vmatpush1.msra.mxu0 %v124
    %147 = vmatprep.subr.mxu0 0.0
    %148 = vmatpush1.msra.mxu0 %v123
    %149 = vmatprep.subr.mxu0 0.0
    %150 = vmatpush1.msra.mxu0 %v122
    %151 = vmatprep.subr.mxu0 0.0
    %152 = vmatpush1.msra.mxu0 %v121
    %153 = vmatprep.subr.mxu0 0.0
    %154 = vmatpush1.msra.mxu0 %v120
    %155 = vmatprep.subr.mxu0 0.0
    %156 = vmatpush1.msra.mxu0 %v119
    %157 = vmatprep.subr.mxu0 0.0
    %158 = vmatpush1.msra.mxu0 %v118
    %159 = vmatprep.subr.mxu0 0.0
    %160 = vmatpush1.msra.mxu0 %v117
    %161 = vmatprep.subr.mxu0 0.0
    %162 = vmatpush1.msra.mxu0 %v116
    %163 = vmatprep.subr.mxu0 0.0
    %164 = vmatpush1.msra.mxu0 %v115
    %165 = vmatprep.subr.mxu0 0.0
    %166 = vmatpush1.msra.mxu0 %v114
    %167 = vmatprep.subr.mxu0 0.0
    %168 = vmatpush1.msra.mxu0 %v113
    %169 = vmatprep.subr.mxu0 0.0
    %170 = vmatpush1.msra.mxu0 %v112
    %171 = vmatprep.subr.mxu0 0.0
    %172 = vmatpush1.msra.mxu0 %v111
    %173 = vmatprep.subr.mxu0 0.0
    %174 = vmatpush1.msra.mxu0 %v110
    %175 = vmatprep.subr.mxu0 0.0
    %176 = vmatpush1.msra.mxu0 %v109
    %177 = vmatprep.subr.mxu0 0.0
    %178 = vmatpush2.msra.mxu0 %v140
    %179 = vmatprep.subr.mxu0 0.0
    %180 = vmatpush2.msra.mxu0 %v139
    %181 = vmatprep.subr.mxu0 0.0
    %182 = vmatpush2.msra.mxu0 %v138
    %183 = vmatprep.subr.mxu0 0.0
    %184 = vmatpush2.msra.mxu0 %v137
    %185 = vmatprep.subr.mxu0 0.0
    %186 = vmatpush2.msra.mxu0 %v136
    %187 = vmatprep.subr.mxu0 0.0
    %188 = vmatpush2.msra.mxu0 %v135
    %189 = vmatprep.subr.mxu0 0.0
    %190 = vmatpush2.msra.mxu0 %v134
    %191 = vmatprep.subr.mxu0 0.0
    %192 = vmatpush2.msra.mxu0 %v133
    %193 = vmatprep.subr.mxu0 0.0
    %194 = vmatpush2.msra.mxu0 %v132
    %195 = vmatprep.subr.mxu0 0.0
    %196 = vmatpush2.msra.mxu0 %v131
    %197 = vmatprep.subr.mxu0 0.0
    %198 = vmatpush2.msra.mxu0 %v130
    %199 = vmatprep.subr.mxu0 0.0
    %200 = vmatpush2.msra.mxu0 %v129
    %201 = vmatprep.subr.mxu0 0.0
    %202 = vmatpush2.msra.mxu0 %v128
    %203 = vmatprep.subr.mxu0 0.0
    %204 = vmatpush2.msra.mxu0 %v127
    %205 = vmatprep.subr.mxu0 0.0
    %206 = vmatpush2.msra.mxu0 %v126
    %207 = vmatprep.subr.mxu0 0.0
    %208 = vmatpush2.msra.mxu0 %v125
    %209 = vmatprep.mubr.f32.mxu0 %v143
    %210 = vmatmul.mubr.f32.gmra.mxu0 %v141
    %v211 = vpop.f32.mrf.mxu0
    %v212 = vadd.f32 0.0, %v211
    %v213 = vpop.f32.mrf.mxu0
    %214 = vdwg.mxu0
    %s215 = scalar_lea.vmem %s0, 8
    %v216 = vld [vmem:[%s215] sm:$0xff]
    %v218 = vcombine.high %v216, %v216
    %220 = vmatprep.subr.mxu0 0.0
    %221 = vmatpush1.msra.mxu0 %v124
    %222 = vmatprep.subr.mxu0 0.0
    %223 = vmatpush1.msra.mxu0 %v123
    %224 = vmatprep.subr.mxu0 0.0
    %225 = vmatpush1.msra.mxu0 %v122
    %226 = vmatprep.subr.mxu0 0.0
    %227 = vmatpush1.msra.mxu0 %v121
    %228 = vmatprep.subr.mxu0 0.0
    %229 = vmatpush1.msra.mxu0 %v120
    %230 = vmatprep.subr.mxu0 0.0
    %231 = vmatpush1.msra.mxu0 %v119
    %232 = vmatprep.subr.mxu0 0.0
    %233 = vmatpush1.msra.mxu0 %v118
    %234 = vmatprep.subr.mxu0 0.0
    %235 = vmatpush1.msra.mxu0 %v117
    %236 = vmatprep.subr.mxu0 0.0
    %237 = vmatpush1.msra.mxu0 %v116
    %238 = vmatprep.subr.mxu0 0.0
    %239 = vmatpush1.msra.mxu0 %v115
    %240 = vmatprep.subr.mxu0 0.0
    %241 = vmatpush1.msra.mxu0 %v114
    %242 = vmatprep.subr.mxu0 0.0
    %243 = vmatpush1.msra.mxu0 %v113
    %244 = vmatprep.subr.mxu0 0.0
    %245 = vmatpush1.msra.mxu0 %v112
    %246 = vmatprep.subr.mxu0 0.0
    %247 = vmatpush1.msra.mxu0 %v111
    %248 = vmatprep.subr.mxu0 0.0
    %249 = vmatpush1.msra.mxu0 %v110
    %250 = vmatprep.subr.mxu0 0.0
    %251 = vmatpush1.msra.mxu0 %v109
    %252 = vmatprep.subr.mxu0 0.0
    %253 = vmatpush2.msra.mxu0 %v140
    %254 = vmatprep.subr.mxu0 0.0
    %255 = vmatpush2.msra.mxu0 %v139
    %256 = vmatprep.subr.mxu0 0.0
    %257 = vmatpush2.msra.mxu0 %v138
    %258 = vmatprep.subr.mxu0 0.0
    %259 = vmatpush2.msra.mxu0 %v137
    %260 = vmatprep.subr.mxu0 0.0
    %261 = vmatpush2.msra.mxu0 %v136
    %262 = vmatprep.subr.mxu0 0.0
    %263 = vmatpush2.msra.mxu0 %v135
    %264 = vmatprep.subr.mxu0 0.0
    %265 = vmatpush2.msra.mxu0 %v134
    %266 = vmatprep.subr.mxu0 0.0
    %267 = vmatpush2.msra.mxu0 %v133
    %268 = vmatprep.subr.mxu0 0.0
    %269 = vmatpush2.msra.mxu0 %v132
    %270 = vmatprep.subr.mxu0 0.0
    %271 = vmatpush2.msra.mxu0 %v131
    %272 = vmatprep.subr.mxu0 0.0
    %273 = vmatpush2.msra.mxu0 %v130
    %274 = vmatprep.subr.mxu0 0.0
    %275 = vmatpush2.msra.mxu0 %v129
    %276 = vmatprep.subr.mxu0 0.0
    %277 = vmatpush2.msra.mxu0 %v128
    %278 = vmatprep.subr.mxu0 0.0
    %279 = vmatpush2.msra.mxu0 %v127
    %280 = vmatprep.subr.mxu0 0.0
    %281 = vmatpush2.msra.mxu0 %v126
    %282 = vmatprep.subr.mxu0 0.0
    %283 = vmatpush2.msra.mxu0 %v125
    %284 = vmatprep.mubr.f32.mxu0 %v218
    %285 = vmatmul.mubr.f32.gmra.mxu0 %v216
    %v286 = vpop.f32.mrf.mxu0
    %v287 = vadd.f32 0.0, %v286
    %v288 = vpop.f32.mrf.mxu0
    %289 = vdwg.mxu0
    %s290 = scalar_lea.vmem %s1, 1
    %v291 = vld [vmem:[%s290] sm:$0x1]
    %v292 = vlaneseq
    %v293 = vshrl.u32 %v292, 7
    %v294 = vsub.s32 0, %v293
    %v295 = vrot.slane %v291, %v294
    %vm296 = vcmp.eq.s32.totalorder %v40, %v295
    %vm297 = vcmp.eq.s32.totalorder %v41, %v295
    %vm298 = vcmp.eq.s32.totalorder %v42, %v295
    %vm299 = vcmp.eq.s32.totalorder %v43, %v295
    %vm300 = vcmp.eq.s32.totalorder %v44, %v295
    %vm301 = vcmp.eq.s32.totalorder %v45, %v295
    %vm302 = vcmp.eq.s32.totalorder %v46, %v295
    %vm303 = vcmp.eq.s32.totalorder %v47, %v295
    %vm304 = vcmp.eq.s32.totalorder %v48, %v295
    %vm305 = vcmp.eq.s32.totalorder %v49, %v295
    %vm306 = vcmp.eq.s32.totalorder %v50, %v295
    %vm307 = vcmp.eq.s32.totalorder %v51, %v295
    %vm308 = vcmp.eq.s32.totalorder %v52, %v295
    %vm309 = vcmp.eq.s32.totalorder %v53, %v295
    %vm310 = vcmp.eq.s32.totalorder %v54, %v295
    %vm311 = vcmp.eq.s32.totalorder %v55, %v295
    %vm312 = vcmp.eq.s32.totalorder %v56, %v295
    %vm313 = vcmp.eq.s32.totalorder %v57, %v295
    %vm314 = vcmp.eq.s32.totalorder %v58, %v295
    %vm315 = vcmp.eq.s32.totalorder %v59, %v295
    %vm316 = vcmp.eq.s32.totalorder %v60, %v295
    %vm317 = vcmp.eq.s32.totalorder %v61, %v295
    %vm318 = vcmp.eq.s32.totalorder %v62, %v295
    %vm319 = vcmp.eq.s32.totalorder %v63, %v295
    %vm320 = vcmp.eq.s32.totalorder %v64, %v295
    %vm321 = vcmp.eq.s32.totalorder %v65, %v295
    %vm322 = vcmp.eq.s32.totalorder %v66, %v295
    %vm323 = vcmp.eq.s32.totalorder %v67, %v295
    %vm324 = vcmp.eq.s32.totalorder %v68, %v295
    %vm325 = vcmp.eq.s32.totalorder %v69, %v295
    %vm326 = vcmp.eq.s32.totalorder %v70, %v295
    %vm327 = vcmp.eq.s32.totalorder %v71, %v295
    %v328 = vsel %vm296, 1.0, 0.0
    %v329 = vsel %vm297, 1.0, 0.0
    %v330 = vsel %vm298, 1.0, 0.0
    %v331 = vsel %vm299, 1.0, 0.0
    %v332 = vsel %vm300, 1.0, 0.0
    %v333 = vsel %vm301, 1.0, 0.0
    %v334 = vsel %vm302, 1.0, 0.0
    %v335 = vsel %vm303, 1.0, 0.0
    %v336 = vsel %vm304, 1.0, 0.0
    %v337 = vsel %vm305, 1.0, 0.0
    %v338 = vsel %vm306, 1.0, 0.0
    %v339 = vsel %vm307, 1.0, 0.0
    %v340 = vsel %vm308, 1.0, 0.0
    %v341 = vsel %vm309, 1.0, 0.0
    %v342 = vsel %vm310, 1.0, 0.0
    %v343 = vsel %vm311, 1.0, 0.0
    %v344 = vsel %vm312, 1.0, 0.0
    %v345 = vsel %vm313, 1.0, 0.0
    %v346 = vsel %vm314, 1.0, 0.0
    %v347 = vsel %vm315, 1.0, 0.0
    %v348 = vsel %vm316, 1.0, 0.0
    %v349 = vsel %vm317, 1.0, 0.0
    %v350 = vsel %vm318, 1.0, 0.0
    %v351 = vsel %vm319, 1.0, 0.0
    %v352 = vsel %vm320, 1.0, 0.0
    %v353 = vsel %vm321, 1.0, 0.0
    %v354 = vsel %vm322, 1.0, 0.0
    %v355 = vsel %vm323, 1.0, 0.0
    %v356 = vsel %vm324, 1.0, 0.0
    %v357 = vsel %vm325, 1.0, 0.0
    %v358 = vsel %vm326, 1.0, 0.0
    %v359 = vsel %vm327, 1.0, 0.0
    %360 = vmatprep.subr.mxu0 0.0
    %361 = vmatpush1.msra.mxu0 %v343
    %362 = vmatprep.subr.mxu0 0.0
    %363 = vmatpush1.msra.mxu0 %v342
    %364 = vmatprep.subr.mxu0 0.0
    %365 = vmatpush1.msra.mxu0 %v341
    %366 = vmatprep.subr.mxu0 0.0
    %367 = vmatpush1.msra.mxu0 %v340
    %368 = vmatprep.subr.mxu0 0.0
    %369 = vmatpush1.msra.mxu0 %v339
    %370 = vmatprep.subr.mxu0 0.0
    %371 = vmatpush1.msra.mxu0 %v338
    %372 = vmatprep.subr.mxu0 0.0
    %373 = vmatpush1.msra.mxu0 %v337
    %374 = vmatprep.subr.mxu0 0.0
    %375 = vmatpush1.msra.mxu0 %v336
    %376 = vmatprep.subr.mxu0 0.0
    %377 = vmatpush1.msra.mxu0 %v335
    %378 = vmatprep.subr.mxu0 0.0
    %379 = vmatpush1.msra.mxu0 %v334
    %380 = vmatprep.subr.mxu0 0.0
    %381 = vmatpush1.msra.mxu0 %v333
    %382 = vmatprep.subr.mxu0 0.0
    %383 = vmatpush1.msra.mxu0 %v332
    %384 = vmatprep.subr.mxu0 0.0
    %385 = vmatpush1.msra.mxu0 %v331
    %386 = vmatprep.subr.mxu0 0.0
    %387 = vmatpush1.msra.mxu0 %v330
    %388 = vmatprep.subr.mxu0 0.0
    %389 = vmatpush1.msra.mxu0 %v329
    %390 = vmatprep.subr.mxu0 0.0
    %391 = vmatpush1.msra.mxu0 %v328
    %392 = vmatprep.subr.mxu0 0.0
    %393 = vmatpush2.msra.mxu0 %v359
    %394 = vmatprep.subr.mxu0 0.0
    %395 = vmatpush2.msra.mxu0 %v358
    %396 = vmatprep.subr.mxu0 0.0
    %397 = vmatpush2.msra.mxu0 %v357
    %398 = vmatprep.subr.mxu0 0.0
    %399 = vmatpush2.msra.mxu0 %v356
    %400 = vmatprep.subr.mxu0 0.0
    %401 = vmatpush2.msra.mxu0 %v355
    %402 = vmatprep.subr.mxu0 0.0
    %403 = vmatpush2.msra.mxu0 %v354
    %404 = vmatprep.subr.mxu0 0.0
    %405 = vmatpush2.msra.mxu0 %v353
    %406 = vmatprep.subr.mxu0 0.0
    %407 = vmatpush2.msra.mxu0 %v352
    %408 = vmatprep.subr.mxu0 0.0
    %409 = vmatpush2.msra.mxu0 %v351
    %410 = vmatprep.subr.mxu0 0.0
    %411 = vmatpush2.msra.mxu0 %v350
    %412 = vmatprep.subr.mxu0 0.0
    %413 = vmatpush2.msra.mxu0 %v349
    %414 = vmatprep.subr.mxu0 0.0
    %415 = vmatpush2.msra.mxu0 %v348
    %416 = vmatprep.subr.mxu0 0.0
    %417 = vmatpush2.msra.mxu0 %v347
    %418 = vmatprep.subr.mxu0 0.0
    %419 = vmatpush2.msra.mxu0 %v346
    %420 = vmatprep.subr.mxu0 0.0
    %421 = vmatpush2.msra.mxu0 %v345
    %422 = vmatprep.subr.mxu0 0.0
    %423 = vmatpush2.msra.mxu0 %v344
    %424 = vmatprep.mubr.f32.mxu0 %v143
    %425 = vmatmul.mubr.f32.gmra.mxu0 %v141
    %v426 = vpop.f32.mrf.mxu0
    %v427 = vadd.f32 0.0, %v426
    %v428 = vpop.f32.mrf.mxu0
    %429 = vdwg.mxu0
    %v430 = vmax.f32 %v212, %v427
    %431 = vmatprep.subr.mxu0 0.0
    %432 = vmatpush1.msra.mxu0 %v343
    %433 = vmatprep.subr.mxu0 0.0
    %434 = vmatpush1.msra.mxu0 %v342
    %435 = vmatprep.subr.mxu0 0.0
    %436 = vmatpush1.msra.mxu0 %v341
    %437 = vmatprep.subr.mxu0 0.0
    %438 = vmatpush1.msra.mxu0 %v340
    %439 = vmatprep.subr.mxu0 0.0
    %440 = vmatpush1.msra.mxu0 %v339
    %441 = vmatprep.subr.mxu0 0.0
    %442 = vmatpush1.msra.mxu0 %v338
    %443 = vmatprep.subr.mxu0 0.0
    %444 = vmatpush1.msra.mxu0 %v337
    %445 = vmatprep.subr.mxu0 0.0
    %446 = vmatpush1.msra.mxu0 %v336
    %447 = vmatprep.subr.mxu0 0.0
    %448 = vmatpush1.msra.mxu0 %v335
    %449 = vmatprep.subr.mxu0 0.0
    %450 = vmatpush1.msra.mxu0 %v334
    %451 = vmatprep.subr.mxu0 0.0
    %452 = vmatpush1.msra.mxu0 %v333
    %453 = vmatprep.subr.mxu0 0.0
    %454 = vmatpush1.msra.mxu0 %v332
    %455 = vmatprep.subr.mxu0 0.0
    %456 = vmatpush1.msra.mxu0 %v331
    %457 = vmatprep.subr.mxu0 0.0
    %458 = vmatpush1.msra.mxu0 %v330
    %459 = vmatprep.subr.mxu0 0.0
    %460 = vmatpush1.msra.mxu0 %v329
    %461 = vmatprep.subr.mxu0 0.0
    %462 = vmatpush1.msra.mxu0 %v328
    %463 = vmatprep.subr.mxu0 0.0
    %464 = vmatpush2.msra.mxu0 %v359
    %465 = vmatprep.subr.mxu0 0.0
    %466 = vmatpush2.msra.mxu0 %v358
    %467 = vmatprep.subr.mxu0 0.0
    %468 = vmatpush2.msra.mxu0 %v357
    %469 = vmatprep.subr.mxu0 0.0
    %470 = vmatpush2.msra.mxu0 %v356
    %471 = vmatprep.subr.mxu0 0.0
    %472 = vmatpush2.msra.mxu0 %v355
    %473 = vmatprep.subr.mxu0 0.0
    %474 = vmatpush2.msra.mxu0 %v354
    %475 = vmatprep.subr.mxu0 0.0
    %476 = vmatpush2.msra.mxu0 %v353
    %477 = vmatprep.subr.mxu0 0.0
    %478 = vmatpush2.msra.mxu0 %v352
    %479 = vmatprep.subr.mxu0 0.0
    %480 = vmatpush2.msra.mxu0 %v351
    %481 = vmatprep.subr.mxu0 0.0
    %482 = vmatpush2.msra.mxu0 %v350
    %483 = vmatprep.subr.mxu0 0.0
    %484 = vmatpush2.msra.mxu0 %v349
    %485 = vmatprep.subr.mxu0 0.0
    %486 = vmatpush2.msra.mxu0 %v348
    %487 = vmatprep.subr.mxu0 0.0
    %488 = vmatpush2.msra.mxu0 %v347
    %489 = vmatprep.subr.mxu0 0.0
    %490 = vmatpush2.msra.mxu0 %v346
    %491 = vmatprep.subr.mxu0 0.0
    %492 = vmatpush2.msra.mxu0 %v345
    %493 = vmatprep.subr.mxu0 0.0
    %494 = vmatpush2.msra.mxu0 %v344
    %495 = vmatprep.mubr.f32.mxu0 %v218
    %496 = vmatmul.mubr.f32.gmra.mxu0 %v216
    %v497 = vpop.f32.mrf.mxu0
    %v498 = vadd.f32 0.0, %v497
    %v499 = vpop.f32.mrf.mxu0
    %500 = vdwg.mxu0
    %v501 = vmax.f32 %v287, %v498
    %s502 = scalar_lea.vmem %s1, 2
    %v503 = vld [vmem:[%s502] sm:$0x1]
    %v504 = vlaneseq
    %v505 = vshrl.u32 %v504, 7
    %v506 = vsub.s32 0, %v505
    %v507 = vrot.slane %v503, %v506
    %vm508 = vcmp.eq.s32.totalorder %v40, %v507
    %vm509 = vcmp.eq.s32.totalorder %v41, %v507
    %vm510 = vcmp.eq.s32.totalorder %v42, %v507
    %vm511 = vcmp.eq.s32.totalorder %v43, %v507
    %vm512 = vcmp.eq.s32.totalorder %v44, %v507
    %vm513 = vcmp.eq.s32.totalorder %v45, %v507
    %vm514 = vcmp.eq.s32.totalorder %v46, %v507
    %vm515 = vcmp.eq.s32.totalorder %v47, %v507
    %vm516 = vcmp.eq.s32.totalorder %v48, %v507
    %vm517 = vcmp.eq.s32.totalorder %v49, %v507
    %vm518 = vcmp.eq.s32.totalorder %v50, %v507
    %vm519 = vcmp.eq.s32.totalorder %v51, %v507
    %vm520 = vcmp.eq.s32.totalorder %v52, %v507
    %vm521 = vcmp.eq.s32.totalorder %v53, %v507
    %vm522 = vcmp.eq.s32.totalorder %v54, %v507
    %vm523 = vcmp.eq.s32.totalorder %v55, %v507
    %vm524 = vcmp.eq.s32.totalorder %v56, %v507
    %vm525 = vcmp.eq.s32.totalorder %v57, %v507
    %vm526 = vcmp.eq.s32.totalorder %v58, %v507
    %vm527 = vcmp.eq.s32.totalorder %v59, %v507
    %vm528 = vcmp.eq.s32.totalorder %v60, %v507
    %vm529 = vcmp.eq.s32.totalorder %v61, %v507
    %vm530 = vcmp.eq.s32.totalorder %v62, %v507
    %vm531 = vcmp.eq.s32.totalorder %v63, %v507
    %vm532 = vcmp.eq.s32.totalorder %v64, %v507
    %vm533 = vcmp.eq.s32.totalorder %v65, %v507
    %vm534 = vcmp.eq.s32.totalorder %v66, %v507
    %vm535 = vcmp.eq.s32.totalorder %v67, %v507
    %vm536 = vcmp.eq.s32.totalorder %v68, %v507
    %vm537 = vcmp.eq.s32.totalorder %v69, %v507
    %vm538 = vcmp.eq.s32.totalorder %v70, %v507
    %vm539 = vcmp.eq.s32.totalorder %v71, %v507
    %v540 = vsel %vm508, 1.0, 0.0
    %v541 = vsel %vm509, 1.0, 0.0
    %v542 = vsel %vm510, 1.0, 0.0
    %v543 = vsel %vm511, 1.0, 0.0
    %v544 = vsel %vm512, 1.0, 0.0
    %v545 = vsel %vm513, 1.0, 0.0
    %v546 = vsel %vm514, 1.0, 0.0
    %v547 = vsel %vm515, 1.0, 0.0
    %v548 = vsel %vm516, 1.0, 0.0
    %v549 = vsel %vm517, 1.0, 0.0
    %v550 = vsel %vm518, 1.0, 0.0
    %v551 = vsel %vm519, 1.0, 0.0
    %v552 = vsel %vm520, 1.0, 0.0
    %v553 = vsel %vm521, 1.0, 0.0
    %v554 = vsel %vm522, 1.0, 0.0
    %v555 = vsel %vm523, 1.0, 0.0
    %v556 = vsel %vm524, 1.0, 0.0
    %v557 = vsel %vm525, 1.0, 0.0
    %v558 = vsel %vm526, 1.0, 0.0
    %v559 = vsel %vm527, 1.0, 0.0
    %v560 = vsel %vm528, 1.0, 0.0
    %v561 = vsel %vm529, 1.0, 0.0
    %v562 = vsel %vm530, 1.0, 0.0
    %v563 = vsel %vm531, 1.0, 0.0
    %v564 = vsel %vm532, 1.0, 0.0
    %v565 = vsel %vm533, 1.0, 0.0
    %v566 = vsel %vm534, 1.0, 0.0
    %v567 = vsel %vm535, 1.0, 0.0
    %v568 = vsel %vm536, 1.0, 0.0
    %v569 = vsel %vm537, 1.0, 0.0
    %v570 = vsel %vm538, 1.0, 0.0
    %v571 = vsel %vm539, 1.0, 0.0
    %572 = vmatprep.subr.mxu0 0.0
    %573 = vmatpush1.msra.mxu0 %v555
    %574 = vmatprep.subr.mxu0 0.0
    %575 = vmatpush1.msra.mxu0 %v554
    %576 = vmatprep.subr.mxu0 0.0
    %577 = vmatpush1.msra.mxu0 %v553
    %578 = vmatprep.subr.mxu0 0.0
    %579 = vmatpush1.msra.mxu0 %v552
    %580 = vmatprep.subr.mxu0 0.0
    %581 = vmatpush1.msra.mxu0 %v551
    %582 = vmatprep.subr.mxu0 0.0
    %583 = vmatpush1.msra.mxu0 %v550
    %584 = vmatprep.subr.mxu0 0.0
    %585 = vmatpush1.msra.mxu0 %v549
    %586 = vmatprep.subr.mxu0 0.0
    %587 = vmatpush1.msra.mxu0 %v548
    %588 = vmatprep.subr.mxu0 0.0
    %589 = vmatpush1.msra.mxu0 %v547
    %590 = vmatprep.subr.mxu0 0.0
    %591 = vmatpush1.msra.mxu0 %v546
    %592 = vmatprep.subr.mxu0 0.0
    %593 = vmatpush1.msra.mxu0 %v545
    %594 = vmatprep.subr.mxu0 0.0
    %595 = vmatpush1.msra.mxu0 %v544
    %596 = vmatprep.subr.mxu0 0.0
    %597 = vmatpush1.msra.mxu0 %v543
    %598 = vmatprep.subr.mxu0 0.0
    %599 = vmatpush1.msra.mxu0 %v542
    %600 = vmatprep.subr.mxu0 0.0
    %601 = vmatpush1.msra.mxu0 %v541
    %602 = vmatprep.subr.mxu0 0.0
    %603 = vmatpush1.msra.mxu0 %v540
    %604 = vmatprep.subr.mxu0 0.0
    %605 = vmatpush2.msra.mxu0 %v571
    %606 = vmatprep.subr.mxu0 0.0
    %607 = vmatpush2.msra.mxu0 %v570
    %608 = vmatprep.subr.mxu0 0.0
    %609 = vmatpush2.msra.mxu0 %v569
    %610 = vmatprep.subr.mxu0 0.0
    %611 = vmatpush2.msra.mxu0 %v568
    %612 = vmatprep.subr.mxu0 0.0
    %613 = vmatpush2.msra.mxu0 %v567
    %614 = vmatprep.subr.mxu0 0.0
    %615 = vmatpush2.msra.mxu0 %v566
    %616 = vmatprep.subr.mxu0 0.0
    %617 = vmatpush2.msra.mxu0 %v565
    %618 = vmatprep.subr.mxu0 0.0
    %619 = vmatpush2.msra.mxu0 %v564
    %620 = vmatprep.subr.mxu0 0.0
    %621 = vmatpush2.msra.mxu0 %v563
    %622 = vmatprep.subr.mxu0 0.0
    %623 = vmatpush2.msra.mxu0 %v562
    %624 = vmatprep.subr.mxu0 0.0
    %625 = vmatpush2.msra.mxu0 %v561
    %626 = vmatprep.subr.mxu0 0.0
    %627 = vmatpush2.msra.mxu0 %v560
    %628 = vmatprep.subr.mxu0 0.0
    %629 = vmatpush2.msra.mxu0 %v559
    %630 = vmatprep.subr.mxu0 0.0
    %631 = vmatpush2.msra.mxu0 %v558
    %632 = vmatprep.subr.mxu0 0.0
    %633 = vmatpush2.msra.mxu0 %v557
    %634 = vmatprep.subr.mxu0 0.0
    %635 = vmatpush2.msra.mxu0 %v556
    %636 = vmatprep.mubr.f32.mxu0 %v143
    %637 = vmatmul.mubr.f32.gmra.mxu0 %v141
    %v638 = vpop.f32.mrf.mxu0
    %v639 = vadd.f32 0.0, %v638
    %v640 = vpop.f32.mrf.mxu0
    %641 = vdwg.mxu0
    %v642 = vmax.f32 %v430, %v639
    %643 = vmatprep.subr.mxu0 0.0
    %644 = vmatpush1.msra.mxu0 %v555
    %645 = vmatprep.subr.mxu0 0.0
    %646 = vmatpush1.msra.mxu0 %v554
    %647 = vmatprep.subr.mxu0 0.0
    %648 = vmatpush1.msra.mxu0 %v553
    %649 = vmatprep.subr.mxu0 0.0
    %650 = vmatpush1.msra.mxu0 %v552
    %651 = vmatprep.subr.mxu0 0.0
    %652 = vmatpush1.msra.mxu0 %v551
    %653 = vmatprep.subr.mxu0 0.0
    %654 = vmatpush1.msra.mxu0 %v550
    %655 = vmatprep.subr.mxu0 0.0
    %656 = vmatpush1.msra.mxu0 %v549
    %657 = vmatprep.subr.mxu0 0.0
    %658 = vmatpush1.msra.mxu0 %v548
    %659 = vmatprep.subr.mxu0 0.0
    %660 = vmatpush1.msra.mxu0 %v547
    %661 = vmatprep.subr.mxu0 0.0
    %662 = vmatpush1.msra.mxu0 %v546
    %663 = vmatprep.subr.mxu0 0.0
    %664 = vmatpush1.msra.mxu0 %v545
    %665 = vmatprep.subr.mxu0 0.0
    %666 = vmatpush1.msra.mxu0 %v544
    %667 = vmatprep.subr.mxu0 0.0
    %668 = vmatpush1.msra.mxu0 %v543
    %669 = vmatprep.subr.mxu0 0.0
    %670 = vmatpush1.msra.mxu0 %v542
    %671 = vmatprep.subr.mxu0 0.0
    %672 = vmatpush1.msra.mxu0 %v541
    %673 = vmatprep.subr.mxu0 0.0
    %674 = vmatpush1.msra.mxu0 %v540
    %675 = vmatprep.subr.mxu0 0.0
    %676 = vmatpush2.msra.mxu0 %v571
    %677 = vmatprep.subr.mxu0 0.0
    %678 = vmatpush2.msra.mxu0 %v570
    %679 = vmatprep.subr.mxu0 0.0
    %680 = vmatpush2.msra.mxu0 %v569
    %681 = vmatprep.subr.mxu0 0.0
    %682 = vmatpush2.msra.mxu0 %v568
    %683 = vmatprep.subr.mxu0 0.0
    %684 = vmatpush2.msra.mxu0 %v567
    %685 = vmatprep.subr.mxu0 0.0
    %686 = vmatpush2.msra.mxu0 %v566
    %687 = vmatprep.subr.mxu0 0.0
    %688 = vmatpush2.msra.mxu0 %v565
    %689 = vmatprep.subr.mxu0 0.0
    %690 = vmatpush2.msra.mxu0 %v564
    %691 = vmatprep.subr.mxu0 0.0
    %692 = vmatpush2.msra.mxu0 %v563
    %693 = vmatprep.subr.mxu0 0.0
    %694 = vmatpush2.msra.mxu0 %v562
    %695 = vmatprep.subr.mxu0 0.0
    %696 = vmatpush2.msra.mxu0 %v561
    %697 = vmatprep.subr.mxu0 0.0
    %698 = vmatpush2.msra.mxu0 %v560
    %699 = vmatprep.subr.mxu0 0.0
    %700 = vmatpush2.msra.mxu0 %v559
    %701 = vmatprep.subr.mxu0 0.0
    %702 = vmatpush2.msra.mxu0 %v558
    %703 = vmatprep.subr.mxu0 0.0
    %704 = vmatpush2.msra.mxu0 %v557
    %705 = vmatprep.subr.mxu0 0.0
    %706 = vmatpush2.msra.mxu0 %v556
    %707 = vmatprep.mubr.f32.mxu0 %v218
    %708 = vmatmul.mubr.f32.gmra.mxu0 %v216
    %v709 = vpop.f32.mrf.mxu0
    %v710 = vadd.f32 0.0, %v709
    %v711 = vpop.f32.mrf.mxu0
    %712 = vdwg.mxu0
    %v713 = vmax.f32 %v501, %v710
    %s714 = scalar_lea.vmem %s1, 3
    %v715 = vld [vmem:[%s714] sm:$0x1]
    %v716 = vlaneseq
    %v717 = vshrl.u32 %v716, 7
    %v718 = vsub.s32 0, %v717
    %v719 = vrot.slane %v715, %v718
    %vm720 = vcmp.eq.s32.totalorder %v40, %v719
    %vm721 = vcmp.eq.s32.totalorder %v41, %v719
    %vm722 = vcmp.eq.s32.totalorder %v42, %v719
    %vm723 = vcmp.eq.s32.totalorder %v43, %v719
    %vm724 = vcmp.eq.s32.totalorder %v44, %v719
    %vm725 = vcmp.eq.s32.totalorder %v45, %v719
    %vm726 = vcmp.eq.s32.totalorder %v46, %v719
    %vm727 = vcmp.eq.s32.totalorder %v47, %v719
    %vm728 = vcmp.eq.s32.totalorder %v48, %v719
    %vm729 = vcmp.eq.s32.totalorder %v49, %v719
    %vm730 = vcmp.eq.s32.totalorder %v50, %v719
    %vm731 = vcmp.eq.s32.totalorder %v51, %v719
    %vm732 = vcmp.eq.s32.totalorder %v52, %v719
    %vm733 = vcmp.eq.s32.totalorder %v53, %v719
    %vm734 = vcmp.eq.s32.totalorder %v54, %v719
    %vm735 = vcmp.eq.s32.totalorder %v55, %v719
    %vm736 = vcmp.eq.s32.totalorder %v56, %v719
    %vm737 = vcmp.eq.s32.totalorder %v57, %v719
    %vm738 = vcmp.eq.s32.totalorder %v58, %v719
    %vm739 = vcmp.eq.s32.totalorder %v59, %v719
    %vm740 = vcmp.eq.s32.totalorder %v60, %v719
    %vm741 = vcmp.eq.s32.totalorder %v61, %v719
    %vm742 = vcmp.eq.s32.totalorder %v62, %v719
    %vm743 = vcmp.eq.s32.totalorder %v63, %v719
    %vm744 = vcmp.eq.s32.totalorder %v64, %v719
    %vm745 = vcmp.eq.s32.totalorder %v65, %v719
    %vm746 = vcmp.eq.s32.totalorder %v66, %v719
    %vm747 = vcmp.eq.s32.totalorder %v67, %v719
    %vm748 = vcmp.eq.s32.totalorder %v68, %v719
    %vm749 = vcmp.eq.s32.totalorder %v69, %v719
    %vm750 = vcmp.eq.s32.totalorder %v70, %v719
    %vm751 = vcmp.eq.s32.totalorder %v71, %v719
    %v752 = vsel %vm720, 1.0, 0.0
    %v753 = vsel %vm721, 1.0, 0.0
    %v754 = vsel %vm722, 1.0, 0.0
    %v755 = vsel %vm723, 1.0, 0.0
    %v756 = vsel %vm724, 1.0, 0.0
    %v757 = vsel %vm725, 1.0, 0.0
    %v758 = vsel %vm726, 1.0, 0.0
    %v759 = vsel %vm727, 1.0, 0.0
    %v760 = vsel %vm728, 1.0, 0.0
    %v761 = vsel %vm729, 1.0, 0.0
    %v762 = vsel %vm730, 1.0, 0.0
    %v763 = vsel %vm731, 1.0, 0.0
    %v764 = vsel %vm732, 1.0, 0.0
    %v765 = vsel %vm733, 1.0, 0.0
    %v766 = vsel %vm734, 1.0, 0.0
    %v767 = vsel %vm735, 1.0, 0.0
    %v768 = vsel %vm736, 1.0, 0.0
    %v769 = vsel %vm737, 1.0, 0.0
    %v770 = vsel %vm738, 1.0, 0.0
    %v771 = vsel %vm739, 1.0, 0.0
    %v772 = vsel %vm740, 1.0, 0.0
    %v773 = vsel %vm741, 1.0, 0.0
    %v774 = vsel %vm742, 1.0, 0.0
    %v775 = vsel %vm743, 1.0, 0.0
    %v776 = vsel %vm744, 1.0, 0.0
    %v777 = vsel %vm745, 1.0, 0.0
    %v778 = vsel %vm746, 1.0, 0.0
    %v779 = vsel %vm747, 1.0, 0.0
    %v780 = vsel %vm748, 1.0, 0.0
    %v781 = vsel %vm749, 1.0, 0.0
    %v782 = vsel %vm750, 1.0, 0.0
    %v783 = vsel %vm751, 1.0, 0.0
    %784 = vmatprep.subr.mxu0 0.0
    %785 = vmatpush1.msra.mxu0 %v767
    %786 = vmatprep.subr.mxu0 0.0
    %787 = vmatpush1.msra.mxu0 %v766
    %788 = vmatprep.subr.mxu0 0.0
    %789 = vmatpush1.msra.mxu0 %v765
    %790 = vmatprep.subr.mxu0 0.0
    %791 = vmatpush1.msra.mxu0 %v764
    %792 = vmatprep.subr.mxu0 0.0
    %793 = vmatpush1.msra.mxu0 %v763
    %794 = vmatprep.subr.mxu0 0.0
    %795 = vmatpush1.msra.mxu0 %v762
    %796 = vmatprep.subr.mxu0 0.0
    %797 = vmatpush1.msra.mxu0 %v761
    %798 = vmatprep.subr.mxu0 0.0
    %799 = vmatpush1.msra.mxu0 %v760
    %800 = vmatprep.subr.mxu0 0.0
    %801 = vmatpush1.msra.mxu0 %v759
    %802 = vmatprep.subr.mxu0 0.0
    %803 = vmatpush1.msra.mxu0 %v758
    %804 = vmatprep.subr.mxu0 0.0
    %805 = vmatpush1.msra.mxu0 %v757
    %806 = vmatprep.subr.mxu0 0.0
    %807 = vmatpush1.msra.mxu0 %v756
    %808 = vmatprep.subr.mxu0 0.0
    %809 = vmatpush1.msra.mxu0 %v755
    %810 = vmatprep.subr.mxu0 0.0
    %811 = vmatpush1.msra.mxu0 %v754
    %812 = vmatprep.subr.mxu0 0.0
    %813 = vmatpush1.msra.mxu0 %v753
    %814 = vmatprep.subr.mxu0 0.0
    %815 = vmatpush1.msra.mxu0 %v752
    %816 = vmatprep.subr.mxu0 0.0
    %817 = vmatpush2.msra.mxu0 %v783
    %818 = vmatprep.subr.mxu0 0.0
    %819 = vmatpush2.msra.mxu0 %v782
    %820 = vmatprep.subr.mxu0 0.0
    %821 = vmatpush2.msra.mxu0 %v781
    %822 = vmatprep.subr.mxu0 0.0
    %823 = vmatpush2.msra.mxu0 %v780
    %824 = vmatprep.subr.mxu0 0.0
    %825 = vmatpush2.msra.mxu0 %v779
    %826 = vmatprep.subr.mxu0 0.0
    %827 = vmatpush2.msra.mxu0 %v778
    %828 = vmatprep.subr.mxu0 0.0
    %829 = vmatpush2.msra.mxu0 %v777
    %830 = vmatprep.subr.mxu0 0.0
    %831 = vmatpush2.msra.mxu0 %v776
    %832 = vmatprep.subr.mxu0 0.0
    %833 = vmatpush2.msra.mxu0 %v775
    %834 = vmatprep.subr.mxu0 0.0
    %835 = vmatpush2.msra.mxu0 %v774
    %836 = vmatprep.subr.mxu0 0.0
    %837 = vmatpush2.msra.mxu0 %v773
    %838 = vmatprep.subr.mxu0 0.0
    %839 = vmatpush2.msra.mxu0 %v772
    %840 = vmatprep.subr.mxu0 0.0
    %841 = vmatpush2.msra.mxu0 %v771
    %842 = vmatprep.subr.mxu0 0.0
    %843 = vmatpush2.msra.mxu0 %v770
    %844 = vmatprep.subr.mxu0 0.0
    %845 = vmatpush2.msra.mxu0 %v769
    %846 = vmatprep.subr.mxu0 0.0
    %847 = vmatpush2.msra.mxu0 %v768
    %848 = vmatprep.mubr.f32.mxu0 %v143
    %849 = vmatmul.mubr.f32.gmra.mxu0 %v141
    %v850 = vpop.f32.mrf.mxu0
    %v851 = vadd.f32 0.0, %v850
    %v852 = vpop.f32.mrf.mxu0
    %853 = vdwg.mxu0
    %v854 = vmax.f32 %v642, %v851
    %855 = vmatprep.subr.mxu0 0.0
    %856 = vmatpush1.msra.mxu0 %v767
    %857 = vmatprep.subr.mxu0 0.0
    %858 = vmatpush1.msra.mxu0 %v766
    %859 = vmatprep.subr.mxu0 0.0
    %860 = vmatpush1.msra.mxu0 %v765
    %861 = vmatprep.subr.mxu0 0.0
    %862 = vmatpush1.msra.mxu0 %v764
    %863 = vmatprep.subr.mxu0 0.0
    %864 = vmatpush1.msra.mxu0 %v763
    %865 = vmatprep.subr.mxu0 0.0
    %866 = vmatpush1.msra.mxu0 %v762
    %867 = vmatprep.subr.mxu0 0.0
    %868 = vmatpush1.msra.mxu0 %v761
    %869 = vmatprep.subr.mxu0 0.0
    %870 = vmatpush1.msra.mxu0 %v760
    %871 = vmatprep.subr.mxu0 0.0
    %872 = vmatpush1.msra.mxu0 %v759
    %873 = vmatprep.subr.mxu0 0.0
    %874 = vmatpush1.msra.mxu0 %v758
    %875 = vmatprep.subr.mxu0 0.0
    %876 = vmatpush1.msra.mxu0 %v757
    %877 = vmatprep.subr.mxu0 0.0
    %878 = vmatpush1.msra.mxu0 %v756
    %879 = vmatprep.subr.mxu0 0.0
    %880 = vmatpush1.msra.mxu0 %v755
    %881 = vmatprep.subr.mxu0 0.0
    %882 = vmatpush1.msra.mxu0 %v754
    %883 = vmatprep.subr.mxu0 0.0
    %884 = vmatpush1.msra.mxu0 %v753
    %885 = vmatprep.subr.mxu0 0.0
    %886 = vmatpush1.msra.mxu0 %v752
    %887 = vmatprep.subr.mxu0 0.0
    %888 = vmatpush2.msra.mxu0 %v783
    %889 = vmatprep.subr.mxu0 0.0
    %890 = vmatpush2.msra.mxu0 %v782
    %891 = vmatprep.subr.mxu0 0.0
    %892 = vmatpush2.msra.mxu0 %v781
    %893 = vmatprep.subr.mxu0 0.0
    %894 = vmatpush2.msra.mxu0 %v780
    %895 = vmatprep.subr.mxu0 0.0
    %896 = vmatpush2.msra.mxu0 %v779
    %897 = vmatprep.subr.mxu0 0.0
    %898 = vmatpush2.msra.mxu0 %v778
    %899 = vmatprep.subr.mxu0 0.0
    %900 = vmatpush2.msra.mxu0 %v777
    %901 = vmatprep.subr.mxu0 0.0
    %902 = vmatpush2.msra.mxu0 %v776
    %903 = vmatprep.subr.mxu0 0.0
    %904 = vmatpush2.msra.mxu0 %v775
    %905 = vmatprep.subr.mxu0 0.0
    %906 = vmatpush2.msra.mxu0 %v774
    %907 = vmatprep.subr.mxu0 0.0
    %908 = vmatpush2.msra.mxu0 %v773
    %909 = vmatprep.subr.mxu0 0.0
    %910 = vmatpush2.msra.mxu0 %v772
    %911 = vmatprep.subr.mxu0 0.0
    %912 = vmatpush2.msra.mxu0 %v771
    %913 = vmatprep.subr.mxu0 0.0
    %914 = vmatpush2.msra.mxu0 %v770
    %915 = vmatprep.subr.mxu0 0.0
    %916 = vmatpush2.msra.mxu0 %v769
    %917 = vmatprep.subr.mxu0 0.0
    %918 = vmatpush2.msra.mxu0 %v768
    %919 = vmatprep.mubr.f32.mxu0 %v218
    %920 = vmatmul.mubr.f32.gmra.mxu0 %v216
    %v921 = vpop.f32.mrf.mxu0
    %v922 = vadd.f32 0.0, %v921
    %v923 = vpop.f32.mrf.mxu0
    %924 = vdwg.mxu0
    %v925 = vmax.f32 %v713, %v922
    %v926 = vld [vmem:[%s2] sm:$0x1]
    %s927 = scalar_lea.vmem %s2, 1
    %v928 = vld [vmem:[%s927] sm:$0x1]
    %v929 = vld [vmem:[%s4] sm:$0xff]
    %v931 = vlaneseq
    %v932 = vshrl.u32 %v931, 7
    %v933 = vsub.s32 0, %v932
    %v934 = vrot.slane %v926, %v933
    %v936 = vmul.f32 %v854, %v934
    %v937 = vld [vmem:[%s3] sm:$0xff]
    %s938 = scalar_lea.vmem %s3, 8
    %v939 = vld [vmem:[%s938] sm:$0xff]
    %941 = vrot.lane.b32.xlu0 %v854, 127
    %v942 = vpop.permute.xlu0 %941
    %vm943 = vcmask 31744
    %v945 = vsel %vm943, %v939, 0
    %vm947 = vcmask 1043456
    %v948 = vsel %vm947, %v942, 0
    %950 = vmatprep.subr.mxu0 0.0
    %951 = vmatpush1.msra.mxu0 0.0
    %952 = vmatprep.subr.mxu0 0.0
    %953 = vmatpush1.msra.mxu0 0.0
    %954 = vmatprep.subr.mxu0 0.0
    %955 = vmatpush1.msra.mxu0 0.0
    %956 = vmatprep.subr.mxu0 0.0
    %957 = vmatpush1.msra.mxu0 0.0
    %958 = vmatprep.subr.mxu0 0.0
    %959 = vmatpush1.msra.mxu0 0.0
    %960 = vmatprep.subr.mxu0 0.0
    %961 = vmatpush1.msra.mxu0 0.0
    %962 = vmatprep.subr.mxu0 0.0
    %963 = vmatpush1.msra.mxu0 0.0
    %964 = vmatprep.subr.mxu0 0.0
    %965 = vmatpush1.msra.mxu0 0.0
    %966 = vmatprep.subr.mxu0 0.0
    %967 = vmatpush1.msra.mxu0 0.0
    %968 = vmatprep.subr.mxu0 0.0
    %969 = vmatpush1.msra.mxu0 0.0
    %970 = vmatprep.subr.mxu0 0.0
    %971 = vmatpush1.msra.mxu0 0.0
    %972 = vmatprep.subr.mxu0 0.0
    %973 = vmatpush1.msra.mxu0 0.0
    %974 = vmatprep.subr.mxu0 0.0
    %975 = vmatpush1.msra.mxu0 0.0
    %976 = vmatprep.subr.mxu0 0.0
    %977 = vmatpush1.msra.mxu0 0.0
    %978 = vmatprep.subr.mxu0 0.0
    %979 = vmatpush1.msra.mxu0 0.0
    %980 = vmatprep.subr.mxu0 0.0
    %981 = vmatpush1.msra.mxu0 %v948
    %982 = vmatprep.subr.mxu0 0.0
    %983 = vmatpush2.msra.mxu0 0.0
    %984 = vmatprep.subr.mxu0 0.0
    %985 = vmatpush2.msra.mxu0 0.0
    %986 = vmatprep.subr.mxu0 0.0
    %987 = vmatpush2.msra.mxu0 0.0
    %988 = vmatprep.subr.mxu0 0.0
    %989 = vmatpush2.msra.mxu0 0.0
    %990 = vmatprep.subr.mxu0 0.0
    %991 = vmatpush2.msra.mxu0 0.0
    %992 = vmatprep.subr.mxu0 0.0
    %993 = vmatpush2.msra.mxu0 0.0
    %994 = vmatprep.subr.mxu0 0.0
    %995 = vmatpush2.msra.mxu0 0.0
    %996 = vmatprep.subr.mxu0 0.0
    %997 = vmatpush2.msra.mxu0 0.0
    %998 = vmatprep.subr.mxu0 0.0
    %999 = vmatpush2.msra.mxu0 0.0
    %1000 = vmatprep.subr.mxu0 0.0
    %1001 = vmatpush2.msra.mxu0 0.0
    %1002 = vmatprep.subr.mxu0 0.0
    %1003 = vmatpush2.msra.mxu0 0.0
    %1004 = vmatprep.subr.mxu0 0.0
    %1005 = vmatpush2.msra.mxu0 0.0
    %1006 = vmatprep.subr.mxu0 0.0
    %1007 = vmatpush2.msra.mxu0 0.0
    %1008 = vmatprep.subr.mxu0 0.0
    %1009 = vmatpush2.msra.mxu0 0.0
    %1010 = vmatprep.subr.mxu0 0.0
    %1011 = vmatpush2.msra.mxu0 0.0
    %1012 = vmatprep.subr.mxu0 0.0
    %1013 = vmatpush2.msra.mxu0 0.0
    %1014 = vmatprep.mubr.f32.mxu0 0.0
    %1015 = vmatmul.mubr.f32.gmra.mxu0 %v945
    %v1016 = vpop.f32.mrf.mxu0
    %v1017 = vadd.f32 0.0, %v1016
    %v1018 = vpop.f32.mrf.mxu0
    %1019 = vdwg.mxu0
    %v1021 = vsel %vm943, %v937, 0
    %v1024 = vsel %vm947, %v936, 0
    %1026 = vmatprep.subr.mxu0 0.0
    %1027 = vmatpush1.msra.mxu0 0.0
    %1028 = vmatprep.subr.mxu0 0.0
    %1029 = vmatpush1.msra.mxu0 0.0
    %1030 = vmatprep.subr.mxu0 0.0
    %1031 = vmatpush1.msra.mxu0 0.0
    %1032 = vmatprep.subr.mxu0 0.0
    %1033 = vmatpush1.msra.mxu0 0.0
    %1034 = vmatprep.subr.mxu0 0.0
    %1035 = vmatpush1.msra.mxu0 0.0
    %1036 = vmatprep.subr.mxu0 0.0
    %1037 = vmatpush1.msra.mxu0 0.0
    %1038 = vmatprep.subr.mxu0 0.0
    %1039 = vmatpush1.msra.mxu0 0.0
    %1040 = vmatprep.subr.mxu0 0.0
    %1041 = vmatpush1.msra.mxu0 0.0
    %1042 = vmatprep.subr.mxu0 0.0
    %1043 = vmatpush1.msra.mxu0 0.0
    %1044 = vmatprep.subr.mxu0 0.0
    %1045 = vmatpush1.msra.mxu0 0.0
    %1046 = vmatprep.subr.mxu0 0.0
    %1047 = vmatpush1.msra.mxu0 0.0
    %1048 = vmatprep.subr.mxu0 0.0
    %1049 = vmatpush1.msra.mxu0 0.0
    %1050 = vmatprep.subr.mxu0 0.0
    %1051 = vmatpush1.msra.mxu0 0.0
    %1052 = vmatprep.subr.mxu0 0.0
    %1053 = vmatpush1.msra.mxu0 0.0
    %1054 = vmatprep.subr.mxu0 0.0
    %1055 = vmatpush1.msra.mxu0 0.0
    %1056 = vmatprep.subr.mxu0 0.0
    %1057 = vmatpush1.msra.mxu0 %v1024
    %1058 = vmatprep.subr.mxu0 0.0
    %1059 = vmatpush2.msra.mxu0 0.0
    %1060 = vmatprep.subr.mxu0 0.0
    %1061 = vmatpush2.msra.mxu0 0.0
    %1062 = vmatprep.subr.mxu0 0.0
    %1063 = vmatpush2.msra.mxu0 0.0
    %1064 = vmatprep.subr.mxu0 0.0
    %1065 = vmatpush2.msra.mxu0 0.0
    %1066 = vmatprep.subr.mxu0 0.0
    %1067 = vmatpush2.msra.mxu0 0.0
    %1068 = vmatprep.subr.mxu0 0.0
    %1069 = vmatpush2.msra.mxu0 0.0
    %1070 = vmatprep.subr.mxu0 0.0
    %1071 = vmatpush2.msra.mxu0 0.0
    %1072 = vmatprep.subr.mxu0 0.0
    %1073 = vmatpush2.msra.mxu0 0.0
    %1074 = vmatprep.subr.mxu0 0.0
    %1075 = vmatpush2.msra.mxu0 0.0
    %1076 = vmatprep.subr.mxu0 0.0
    %1077 = vmatpush2.msra.mxu0 0.0
    %1078 = vmatprep.subr.mxu0 0.0
    %1079 = vmatpush2.msra.mxu0 0.0
    %1080 = vmatprep.subr.mxu0 0.0
    %1081 = vmatpush2.msra.mxu0 0.0
    %1082 = vmatprep.subr.mxu0 0.0
    %1083 = vmatpush2.msra.mxu0 0.0
    %1084 = vmatprep.subr.mxu0 0.0
    %1085 = vmatpush2.msra.mxu0 0.0
    %1086 = vmatprep.subr.mxu0 0.0
    %1087 = vmatpush2.msra.mxu0 0.0
    %1088 = vmatprep.subr.mxu0 0.0
    %1089 = vmatpush2.msra.mxu0 0.0
    %1090 = vmatprep.mubr.f32.mxu0 0.0
    %1091 = vmatmul.mubr.f32.gmra.mxu0 %v1021
    %v1092 = vpop.f32.mrf.mxu0
    %v1093 = vadd.f32 %v1017, %v1092
    %v1094 = vpop.f32.mrf.mxu0
    %1095 = vdwg.mxu0
    %v1097 = vlaneseq
    %v1098 = vshrl.u32 %v1097, 7
    %v1099 = vsub.s32 0, %v1098
    %v1100 = vrot.slane %v928, %v1099
    %1101 = vrot.lane.b32.xlu0 %v1100, 2
    %v1102 = vpop.permute.xlu0 %1101
    %v1104 = vmul.f32 %v854, %v1102
    %s1105 = scalar_lea.vmem %s3, 16
    %v1106 = vld [vmem:[%s1105] sm:$0xff]
    %1108 = vrot.lane.b32.xlu0 %v1104, 126
    %v1109 = vpop.permute.xlu0 %1108
    %v1111 = vsel %vm943, %v1106, 0
    %v1113 = vsel %vm947, %v1109, 0
    %1115 = vmatprep.subr.mxu0 0.0
    %1116 = vmatpush1.msra.mxu0 0.0
    %1117 = vmatprep.subr.mxu0 0.0
    %1118 = vmatpush1.msra.mxu0 0.0
    %1119 = vmatprep.subr.mxu0 0.0
    %1120 = vmatpush1.msra.mxu0 0.0
    %1121 = vmatprep.subr.mxu0 0.0
    %1122 = vmatpush1.msra.mxu0 0.0
    %1123 = vmatprep.subr.mxu0 0.0
    %1124 = vmatpush1.msra.mxu0 0.0
    %1125 = vmatprep.subr.mxu0 0.0
    %1126 = vmatpush1.msra.mxu0 0.0
    %1127 = vmatprep.subr.mxu0 0.0
    %1128 = vmatpush1.msra.mxu0 0.0
    %1129 = vmatprep.subr.mxu0 0.0
    %1130 = vmatpush1.msra.mxu0 0.0
    %1131 = vmatprep.subr.mxu0 0.0
    %1132 = vmatpush1.msra.mxu0 0.0
    %1133 = vmatprep.subr.mxu0 0.0
    %1134 = vmatpush1.msra.mxu0 0.0
    %1135 = vmatprep.subr.mxu0 0.0
    %1136 = vmatpush1.msra.mxu0 0.0
    %1137 = vmatprep.subr.mxu0 0.0
    %1138 = vmatpush1.msra.mxu0 0.0
    %1139 = vmatprep.subr.mxu0 0.0
    %1140 = vmatpush1.msra.mxu0 0.0
    %1141 = vmatprep.subr.mxu0 0.0
    %1142 = vmatpush1.msra.mxu0 0.0
    %1143 = vmatprep.subr.mxu0 0.0
    %1144 = vmatpush1.msra.mxu0 0.0
    %1145 = vmatprep.subr.mxu0 0.0
    %1146 = vmatpush1.msra.mxu0 %v1113
    %1147 = vmatprep.subr.mxu0 0.0
    %1148 = vmatpush2.msra.mxu0 0.0
    %1149 = vmatprep.subr.mxu0 0.0
    %1150 = vmatpush2.msra.mxu0 0.0
    %1151 = vmatprep.subr.mxu0 0.0
    %1152 = vmatpush2.msra.mxu0 0.0
    %1153 = vmatprep.subr.mxu0 0.0
    %1154 = vmatpush2.msra.mxu0 0.0
    %1155 = vmatprep.subr.mxu0 0.0
    %1156 = vmatpush2.msra.mxu0 0.0
    %1157 = vmatprep.subr.mxu0 0.0
    %1158 = vmatpush2.msra.mxu0 0.0
    %1159 = vmatprep.subr.mxu0 0.0
    %1160 = vmatpush2.msra.mxu0 0.0
    %1161 = vmatprep.subr.mxu0 0.0
    %1162 = vmatpush2.msra.mxu0 0.0
    %1163 = vmatprep.subr.mxu0 0.0
    %1164 = vmatpush2.msra.mxu0 0.0
    %1165 = vmatprep.subr.mxu0 0.0
    %1166 = vmatpush2.msra.mxu0 0.0
    %1167 = vmatprep.subr.mxu0 0.0
    %1168 = vmatpush2.msra.mxu0 0.0
    %1169 = vmatprep.subr.mxu0 0.0
    %1170 = vmatpush2.msra.mxu0 0.0
    %1171 = vmatprep.subr.mxu0 0.0
    %1172 = vmatpush2.msra.mxu0 0.0
    %1173 = vmatprep.subr.mxu0 0.0
    %1174 = vmatpush2.msra.mxu0 0.0
    %1175 = vmatprep.subr.mxu0 0.0
    %1176 = vmatpush2.msra.mxu0 0.0
    %1177 = vmatprep.subr.mxu0 0.0
    %1178 = vmatpush2.msra.mxu0 0.0
    %1179 = vmatprep.mubr.f32.mxu0 0.0
    %1180 = vmatmul.mubr.f32.gmra.mxu0 %v1111
    %v1181 = vpop.f32.mrf.mxu0
    %v1182 = vadd.f32 0.0, %v1181
    %v1183 = vpop.f32.mrf.mxu0
    %1184 = vdwg.mxu0
    %v1185 = vadd.f32 %v1093, %v1182
    %1186 = vrot.lane.b32.xlu0 %v934, 8
    %v1187 = vpop.permute.xlu0 %1186
    %v1189 = vmul.f32 %v854, %v1187
    %s1190 = scalar_lea.vmem %s3, 24
    %v1191 = vld [vmem:[%s1190] sm:$0xff]
    %1193 = vrot.lane.b32.xlu0 %v1189, 120
    %v1194 = vpop.permute.xlu0 %1193
    %v1196 = vsel %vm943, %v1191, 0
    %v1198 = vsel %vm947, %v1194, 0
    %1200 = vmatprep.subr.mxu0 0.0
    %1201 = vmatpush1.msra.mxu0 0.0
    %1202 = vmatprep.subr.mxu0 0.0
    %1203 = vmatpush1.msra.mxu0 0.0
    %1204 = vmatprep.subr.mxu0 0.0
    %1205 = vmatpush1.msra.mxu0 0.0
    %1206 = vmatprep.subr.mxu0 0.0
    %1207 = vmatpush1.msra.mxu0 0.0
    %1208 = vmatprep.subr.mxu0 0.0
    %1209 = vmatpush1.msra.mxu0 0.0
    %1210 = vmatprep.subr.mxu0 0.0
    %1211 = vmatpush1.msra.mxu0 0.0
    %1212 = vmatprep.subr.mxu0 0.0
    %1213 = vmatpush1.msra.mxu0 0.0
    %1214 = vmatprep.subr.mxu0 0.0
    %1215 = vmatpush1.msra.mxu0 0.0
    %1216 = vmatprep.subr.mxu0 0.0
    %1217 = vmatpush1.msra.mxu0 0.0
    %1218 = vmatprep.subr.mxu0 0.0
    %1219 = vmatpush1.msra.mxu0 0.0
    %1220 = vmatprep.subr.mxu0 0.0
    %1221 = vmatpush1.msra.mxu0 0.0
    %1222 = vmatprep.subr.mxu0 0.0
    %1223 = vmatpush1.msra.mxu0 0.0
    %1224 = vmatprep.subr.mxu0 0.0
    %1225 = vmatpush1.msra.mxu0 0.0
    %1226 = vmatprep.subr.mxu0 0.0
    %1227 = vmatpush1.msra.mxu0 0.0
    %1228 = vmatprep.subr.mxu0 0.0
    %1229 = vmatpush1.msra.mxu0 0.0
    %1230 = vmatprep.subr.mxu0 0.0
    %1231 = vmatpush1.msra.mxu0 %v1198
    %1232 = vmatprep.subr.mxu0 0.0
    %1233 = vmatpush2.msra.mxu0 0.0
    %1234 = vmatprep.subr.mxu0 0.0
    %1235 = vmatpush2.msra.mxu0 0.0
    %1236 = vmatprep.subr.mxu0 0.0
    %1237 = vmatpush2.msra.mxu0 0.0
    %1238 = vmatprep.subr.mxu0 0.0
    %1239 = vmatpush2.msra.mxu0 0.0
    %1240 = vmatprep.subr.mxu0 0.0
    %1241 = vmatpush2.msra.mxu0 0.0
    %1242 = vmatprep.subr.mxu0 0.0
    %1243 = vmatpush2.msra.mxu0 0.0
    %1244 = vmatprep.subr.mxu0 0.0
    %1245 = vmatpush2.msra.mxu0 0.0
    %1246 = vmatprep.subr.mxu0 0.0
    %1247 = vmatpush2.msra.mxu0 0.0
    %1248 = vmatprep.subr.mxu0 0.0
    %1249 = vmatpush2.msra.mxu0 0.0
    %1250 = vmatprep.subr.mxu0 0.0
    %1251 = vmatpush2.msra.mxu0 0.0
    %1252 = vmatprep.subr.mxu0 0.0
    %1253 = vmatpush2.msra.mxu0 0.0
    %1254 = vmatprep.subr.mxu0 0.0
    %1255 = vmatpush2.msra.mxu0 0.0
    %1256 = vmatprep.subr.mxu0 0.0
    %1257 = vmatpush2.msra.mxu0 0.0
    %1258 = vmatprep.subr.mxu0 0.0
    %1259 = vmatpush2.msra.mxu0 0.0
    %1260 = vmatprep.subr.mxu0 0.0
    %1261 = vmatpush2.msra.mxu0 0.0
    %1262 = vmatprep.subr.mxu0 0.0
    %1263 = vmatpush2.msra.mxu0 0.0
    %1264 = vmatprep.mubr.f32.mxu0 0.0
    %1265 = vmatmul.mubr.f32.gmra.mxu0 %v1196
    %v1266 = vpop.f32.mrf.mxu0
    %v1267 = vadd.f32 0.0, %v1266
    %v1268 = vpop.f32.mrf.mxu0
    %1269 = vdwg.mxu0
    %v1270 = vadd.f32 %v1185, %v1267
    %s1271 = scalar_lea.vmem %s3, 32
    %v1272 = vld [vmem:[%s1271] sm:$0xff]
    %1273 = vrot.lane.b32.xlu0 %v854, 119
    %v1274 = vpop.permute.xlu0 %1273
    %v1276 = vsel %vm943, %v1272, 0
    %v1278 = vsel %vm947, %v1274, 0
    %1280 = vmatprep.subr.mxu0 0.0
    %1281 = vmatpush1.msra.mxu0 0.0
    %1282 = vmatprep.subr.mxu0 0.0
    %1283 = vmatpush1.msra.mxu0 0.0
    %1284 = vmatprep.subr.mxu0 0.0
    %1285 = vmatpush1.msra.mxu0 0.0
    %1286 = vmatprep.subr.mxu0 0.0
    %1287 = vmatpush1.msra.mxu0 0.0
    %1288 = vmatprep.subr.mxu0 0.0
    %1289 = vmatpush1.msra.mxu0 0.0
    %1290 = vmatprep.subr.mxu0 0.0
    %1291 = vmatpush1.msra.mxu0 0.0
    %1292 = vmatprep.subr.mxu0 0.0
    %1293 = vmatpush1.msra.mxu0 0.0
    %1294 = vmatprep.subr.mxu0 0.0
    %1295 = vmatpush1.msra.mxu0 0.0
    %1296 = vmatprep.subr.mxu0 0.0
    %1297 = vmatpush1.msra.mxu0 0.0
    %1298 = vmatprep.subr.mxu0 0.0
    %1299 = vmatpush1.msra.mxu0 0.0
    %1300 = vmatprep.subr.mxu0 0.0
    %1301 = vmatpush1.msra.mxu0 0.0
    %1302 = vmatprep.subr.mxu0 0.0
    %1303 = vmatpush1.msra.mxu0 0.0
    %1304 = vmatprep.subr.mxu0 0.0
    %1305 = vmatpush1.msra.mxu0 0.0
    %1306 = vmatprep.subr.mxu0 0.0
    %1307 = vmatpush1.msra.mxu0 0.0
    %1308 = vmatprep.subr.mxu0 0.0
    %1309 = vmatpush1.msra.mxu0 0.0
    %1310 = vmatprep.subr.mxu0 0.0
    %1311 = vmatpush1.msra.mxu0 %v1278
    %1312 = vmatprep.subr.mxu0 0.0
    %1313 = vmatpush2.msra.mxu0 0.0
    %1314 = vmatprep.subr.mxu0 0.0
    %1315 = vmatpush2.msra.mxu0 0.0
    %1316 = vmatprep.subr.mxu0 0.0
    %1317 = vmatpush2.msra.mxu0 0.0
    %1318 = vmatprep.subr.mxu0 0.0
    %1319 = vmatpush2.msra.mxu0 0.0
    %1320 = vmatprep.subr.mxu0 0.0
    %1321 = vmatpush2.msra.mxu0 0.0
    %1322 = vmatprep.subr.mxu0 0.0
    %1323 = vmatpush2.msra.mxu0 0.0
    %1324 = vmatprep.subr.mxu0 0.0
    %1325 = vmatpush2.msra.mxu0 0.0
    %1326 = vmatprep.subr.mxu0 0.0
    %1327 = vmatpush2.msra.mxu0 0.0
    %1328 = vmatprep.subr.mxu0 0.0
    %1329 = vmatpush2.msra.mxu0 0.0
    %1330 = vmatprep.subr.mxu0 0.0
    %1331 = vmatpush2.msra.mxu0 0.0
    %1332 = vmatprep.subr.mxu0 0.0
    %1333 = vmatpush2.msra.mxu0 0.0
    %1334 = vmatprep.subr.mxu0 0.0
    %1335 = vmatpush2.msra.mxu0 0.0
    %1336 = vmatprep.subr.mxu0 0.0
    %1337 = vmatpush2.msra.mxu0 0.0
    %1338 = vmatprep.subr.mxu0 0.0
    %1339 = vmatpush2.msra.mxu0 0.0
    %1340 = vmatprep.subr.mxu0 0.0
    %1341 = vmatpush2.msra.mxu0 0.0
    %1342 = vmatprep.subr.mxu0 0.0
    %1343 = vmatpush2.msra.mxu0 0.0
    %1344 = vmatprep.mubr.f32.mxu0 0.0
    %1345 = vmatmul.mubr.f32.gmra.mxu0 %v1276
    %v1346 = vpop.f32.mrf.mxu0
    %v1347 = vadd.f32 0.0, %v1346
    %v1348 = vpop.f32.mrf.mxu0
    %1349 = vdwg.mxu0
    %v1350 = vadd.f32 %v1270, %v1347
    %1351 = vrot.lane.b32.xlu0 %v1100, 10
    %v1352 = vpop.permute.xlu0 %1351
    %v1354 = vmul.f32 %v854, %v1352
    %s1355 = scalar_lea.vmem %s3, 40
    %v1356 = vld [vmem:[%s1355] sm:$0xff]
    %1358 = vrot.lane.b32.xlu0 %v1354, 118
    %v1359 = vpop.permute.xlu0 %1358
    %v1361 = vsel %vm943, %v1356, 0
    %v1363 = vsel %vm947, %v1359, 0
    %1365 = vmatprep.subr.mxu0 0.0
    %1366 = vmatpush1.msra.mxu0 0.0
    %1367 = vmatprep.subr.mxu0 0.0
    %1368 = vmatpush1.msra.mxu0 0.0
    %1369 = vmatprep.subr.mxu0 0.0
    %1370 = vmatpush1.msra.mxu0 0.0
    %1371 = vmatprep.subr.mxu0 0.0
    %1372 = vmatpush1.msra.mxu0 0.0
    %1373 = vmatprep.subr.mxu0 0.0
    %1374 = vmatpush1.msra.mxu0 0.0
    %1375 = vmatprep.subr.mxu0 0.0
    %1376 = vmatpush1.msra.mxu0 0.0
    %1377 = vmatprep.subr.mxu0 0.0
    %1378 = vmatpush1.msra.mxu0 0.0
    %1379 = vmatprep.subr.mxu0 0.0
    %1380 = vmatpush1.msra.mxu0 0.0
    %1381 = vmatprep.subr.mxu0 0.0
    %1382 = vmatpush1.msra.mxu0 0.0
    %1383 = vmatprep.subr.mxu0 0.0
    %1384 = vmatpush1.msra.mxu0 0.0
    %1385 = vmatprep.subr.mxu0 0.0
    %1386 = vmatpush1.msra.mxu0 0.0
    %1387 = vmatprep.subr.mxu0 0.0
    %1388 = vmatpush1.msra.mxu0 0.0
    %1389 = vmatprep.subr.mxu0 0.0
    %1390 = vmatpush1.msra.mxu0 0.0
    %1391 = vmatprep.subr.mxu0 0.0
    %1392 = vmatpush1.msra.mxu0 0.0
    %1393 = vmatprep.subr.mxu0 0.0
    %1394 = vmatpush1.msra.mxu0 0.0
    %1395 = vmatprep.subr.mxu0 0.0
    %1396 = vmatpush1.msra.mxu0 %v1363
    %1397 = vmatprep.subr.mxu0 0.0
    %1398 = vmatpush2.msra.mxu0 0.0
    %1399 = vmatprep.subr.mxu0 0.0
    %1400 = vmatpush2.msra.mxu0 0.0
    %1401 = vmatprep.subr.mxu0 0.0
    %1402 = vmatpush2.msra.mxu0 0.0
    %1403 = vmatprep.subr.mxu0 0.0
    %1404 = vmatpush2.msra.mxu0 0.0
    %1405 = vmatprep.subr.mxu0 0.0
    %1406 = vmatpush2.msra.mxu0 0.0
    %1407 = vmatprep.subr.mxu0 0.0
    %1408 = vmatpush2.msra.mxu0 0.0
    %1409 = vmatprep.subr.mxu0 0.0
    %1410 = vmatpush2.msra.mxu0 0.0
    %1411 = vmatprep.subr.mxu0 0.0
    %1412 = vmatpush2.msra.mxu0 0.0
    %1413 = vmatprep.subr.mxu0 0.0
    %1414 = vmatpush2.msra.mxu0 0.0
    %1415 = vmatprep.subr.mxu0 0.0
    %1416 = vmatpush2.msra.mxu0 0.0
    %1417 = vmatprep.subr.mxu0 0.0
    %1418 = vmatpush2.msra.mxu0 0.0
    %1419 = vmatprep.subr.mxu0 0.0
    %1420 = vmatpush2.msra.mxu0 0.0
    %1421 = vmatprep.subr.mxu0 0.0
    %1422 = vmatpush2.msra.mxu0 0.0
    %1423 = vmatprep.subr.mxu0 0.0
    %1424 = vmatpush2.msra.mxu0 0.0
    %1425 = vmatprep.subr.mxu0 0.0
    %1426 = vmatpush2.msra.mxu0 0.0
    %1427 = vmatprep.subr.mxu0 0.0
    %1428 = vmatpush2.msra.mxu0 0.0
    %1429 = vmatprep.mubr.f32.mxu0 0.0
    %1430 = vmatmul.mubr.f32.gmra.mxu0 %v1361
    %v1431 = vpop.f32.mrf.mxu0
    %v1432 = vadd.f32 0.0, %v1431
    %v1433 = vpop.f32.mrf.mxu0
    %1434 = vdwg.mxu0
    %v1435 = vadd.f32 %v1350, %v1432
    %1436 = vrot.lane.b32.xlu0 %v934, 16
    %v1437 = vpop.permute.xlu0 %1436
    %v1439 = vmul.f32 %v854, %v1437
    %s1440 = scalar_lea.vmem %s3, 48
    %v1441 = vld [vmem:[%s1440] sm:$0xff]
    %1443 = vrot.lane.b32.xlu0 %v1439, 112
    %v1444 = vpop.permute.xlu0 %1443
    %v1446 = vsel %vm943, %v1441, 0
    %v1448 = vsel %vm947, %v1444, 0
    %1450 = vmatprep.subr.mxu0 0.0
    %1451 = vmatpush1.msra.mxu0 0.0
    %1452 = vmatprep.subr.mxu0 0.0
    %1453 = vmatpush1.msra.mxu0 0.0
    %1454 = vmatprep.subr.mxu0 0.0
    %1455 = vmatpush1.msra.mxu0 0.0
    %1456 = vmatprep.subr.mxu0 0.0
    %1457 = vmatpush1.msra.mxu0 0.0
    %1458 = vmatprep.subr.mxu0 0.0
    %1459 = vmatpush1.msra.mxu0 0.0
    %1460 = vmatprep.subr.mxu0 0.0
    %1461 = vmatpush1.msra.mxu0 0.0
    %1462 = vmatprep.subr.mxu0 0.0
    %1463 = vmatpush1.msra.mxu0 0.0
    %1464 = vmatprep.subr.mxu0 0.0
    %1465 = vmatpush1.msra.mxu0 0.0
    %1466 = vmatprep.subr.mxu0 0.0
    %1467 = vmatpush1.msra.mxu0 0.0
    %1468 = vmatprep.subr.mxu0 0.0
    %1469 = vmatpush1.msra.mxu0 0.0
    %1470 = vmatprep.subr.mxu0 0.0
    %1471 = vmatpush1.msra.mxu0 0.0
    %1472 = vmatprep.subr.mxu0 0.0
    %1473 = vmatpush1.msra.mxu0 0.0
    %1474 = vmatprep.subr.mxu0 0.0
    %1475 = vmatpush1.msra.mxu0 0.0
    %1476 = vmatprep.subr.mxu0 0.0
    %1477 = vmatpush1.msra.mxu0 0.0
    %1478 = vmatprep.subr.mxu0 0.0
    %1479 = vmatpush1.msra.mxu0 0.0
    %1480 = vmatprep.subr.mxu0 0.0
    %1481 = vmatpush1.msra.mxu0 %v1448
    %1482 = vmatprep.subr.mxu0 0.0
    %1483 = vmatpush2.msra.mxu0 0.0
    %1484 = vmatprep.subr.mxu0 0.0
    %1485 = vmatpush2.msra.mxu0 0.0
    %1486 = vmatprep.subr.mxu0 0.0
    %1487 = vmatpush2.msra.mxu0 0.0
    %1488 = vmatprep.subr.mxu0 0.0
    %1489 = vmatpush2.msra.mxu0 0.0
    %1490 = vmatprep.subr.mxu0 0.0
    %1491 = vmatpush2.msra.mxu0 0.0
    %1492 = vmatprep.subr.mxu0 0.0
    %1493 = vmatpush2.msra.mxu0 0.0
    %1494 = vmatprep.subr.mxu0 0.0
    %1495 = vmatpush2.msra.mxu0 0.0
    %1496 = vmatprep.subr.mxu0 0.0
    %1497 = vmatpush2.msra.mxu0 0.0
    %1498 = vmatprep.subr.mxu0 0.0
    %1499 = vmatpush2.msra.mxu0 0.0
    %1500 = vmatprep.subr.mxu0 0.0
    %1501 = vmatpush2.msra.mxu0 0.0
    %1502 = vmatprep.subr.mxu0 0.0
    %1503 = vmatpush2.msra.mxu0 0.0
    %1504 = vmatprep.subr.mxu0 0.0
    %1505 = vmatpush2.msra.mxu0 0.0
    %1506 = vmatprep.subr.mxu0 0.0
    %1507 = vmatpush2.msra.mxu0 0.0
    %1508 = vmatprep.subr.mxu0 0.0
    %1509 = vmatpush2.msra.mxu0 0.0
    %1510 = vmatprep.subr.mxu0 0.0
    %1511 = vmatpush2.msra.mxu0 0.0
    %1512 = vmatprep.subr.mxu0 0.0
    %1513 = vmatpush2.msra.mxu0 0.0
    %1514 = vmatprep.mubr.f32.mxu0 0.0
    %1515 = vmatmul.mubr.f32.gmra.mxu0 %v1446
    %v1516 = vpop.f32.mrf.mxu0
    %v1517 = vadd.f32 0.0, %v1516
    %v1518 = vpop.f32.mrf.mxu0
    %1519 = vdwg.mxu0
    %v1520 = vadd.f32 %v1435, %v1517
    %s1521 = scalar_lea.vmem %s3, 56
    %v1522 = vld [vmem:[%s1521] sm:$0xff]
    %1523 = vrot.lane.b32.xlu0 %v854, 111
    %v1524 = vpop.permute.xlu0 %1523
    %v1526 = vsel %vm943, %v1522, 0
    %v1528 = vsel %vm947, %v1524, 0
    %1530 = vmatprep.subr.mxu0 0.0
    %1531 = vmatpush1.msra.mxu0 0.0
    %1532 = vmatprep.subr.mxu0 0.0
    %1533 = vmatpush1.msra.mxu0 0.0
    %1534 = vmatprep.subr.mxu0 0.0
    %1535 = vmatpush1.msra.mxu0 0.0
    %1536 = vmatprep.subr.mxu0 0.0
    %1537 = vmatpush1.msra.mxu0 0.0
    %1538 = vmatprep.subr.mxu0 0.0
    %1539 = vmatpush1.msra.mxu0 0.0
    %1540 = vmatprep.subr.mxu0 0.0
    %1541 = vmatpush1.msra.mxu0 0.0
    %1542 = vmatprep.subr.mxu0 0.0
    %1543 = vmatpush1.msra.mxu0 0.0
    %1544 = vmatprep.subr.mxu0 0.0
    %1545 = vmatpush1.msra.mxu0 0.0
    %1546 = vmatprep.subr.mxu0 0.0
    %1547 = vmatpush1.msra.mxu0 0.0
    %1548 = vmatprep.subr.mxu0 0.0
    %1549 = vmatpush1.msra.mxu0 0.0
    %1550 = vmatprep.subr.mxu0 0.0
    %1551 = vmatpush1.msra.mxu0 0.0
    %1552 = vmatprep.subr.mxu0 0.0
    %1553 = vmatpush1.msra.mxu0 0.0
    %1554 = vmatprep.subr.mxu0 0.0
    %1555 = vmatpush1.msra.mxu0 0.0
    %1556 = vmatprep.subr.mxu0 0.0
    %1557 = vmatpush1.msra.mxu0 0.0
    %1558 = vmatprep.subr.mxu0 0.0
    %1559 = vmatpush1.msra.mxu0 0.0
    %1560 = vmatprep.subr.mxu0 0.0
    %1561 = vmatpush1.msra.mxu0 %v1528
    %1562 = vmatprep.subr.mxu0 0.0
    %1563 = vmatpush2.msra.mxu0 0.0
    %1564 = vmatprep.subr.mxu0 0.0
    %1565 = vmatpush2.msra.mxu0 0.0
    %1566 = vmatprep.subr.mxu0 0.0
    %1567 = vmatpush2.msra.mxu0 0.0
    %1568 = vmatprep.subr.mxu0 0.0
    %1569 = vmatpush2.msra.mxu0 0.0
    %1570 = vmatprep.subr.mxu0 0.0
    %1571 = vmatpush2.msra.mxu0 0.0
    %1572 = vmatprep.subr.mxu0 0.0
    %1573 = vmatpush2.msra.mxu0 0.0
    %1574 = vmatprep.subr.mxu0 0.0
    %1575 = vmatpush2.msra.mxu0 0.0
    %1576 = vmatprep.subr.mxu0 0.0
    %1577 = vmatpush2.msra.mxu0 0.0
    %1578 = vmatprep.subr.mxu0 0.0
    %1579 = vmatpush2.msra.mxu0 0.0
    %1580 = vmatprep.subr.mxu0 0.0
    %1581 = vmatpush2.msra.mxu0 0.0
    %1582 = vmatprep.subr.mxu0 0.0
    %1583 = vmatpush2.msra.mxu0 0.0
    %1584 = vmatprep.subr.mxu0 0.0
    %1585 = vmatpush2.msra.mxu0 0.0
    %1586 = vmatprep.subr.mxu0 0.0
    %1587 = vmatpush2.msra.mxu0 0.0
    %1588 = vmatprep.subr.mxu0 0.0
    %1589 = vmatpush2.msra.mxu0 0.0
    %1590 = vmatprep.subr.mxu0 0.0
    %1591 = vmatpush2.msra.mxu0 0.0
    %1592 = vmatprep.subr.mxu0 0.0
    %1593 = vmatpush2.msra.mxu0 0.0
    %1594 = vmatprep.mubr.f32.mxu0 0.0
    %1595 = vmatmul.mubr.f32.gmra.mxu0 %v1526
    %v1596 = vpop.f32.mrf.mxu0
    %v1597 = vadd.f32 0.0, %v1596
    %v1598 = vpop.f32.mrf.mxu0
    %1599 = vdwg.mxu0
    %v1600 = vadd.f32 %v1520, %v1597
    %1601 = vrot.lane.b32.xlu0 %v1100, 18
    %v1602 = vpop.permute.xlu0 %1601
    %v1604 = vmul.f32 %v854, %v1602
    %s1605 = scalar_lea.vmem %s3, 64
    %v1606 = vld [vmem:[%s1605] sm:$0xff]
    %1608 = vrot.lane.b32.xlu0 %v1604, 110
    %v1609 = vpop.permute.xlu0 %1608
    %v1611 = vsel %vm943, %v1606, 0
    %v1613 = vsel %vm947, %v1609, 0
    %1615 = vmatprep.subr.mxu0 0.0
    %1616 = vmatpush1.msra.mxu0 0.0
    %1617 = vmatprep.subr.mxu0 0.0
    %1618 = vmatpush1.msra.mxu0 0.0
    %1619 = vmatprep.subr.mxu0 0.0
    %1620 = vmatpush1.msra.mxu0 0.0
    %1621 = vmatprep.subr.mxu0 0.0
    %1622 = vmatpush1.msra.mxu0 0.0
    %1623 = vmatprep.subr.mxu0 0.0
    %1624 = vmatpush1.msra.mxu0 0.0
    %1625 = vmatprep.subr.mxu0 0.0
    %1626 = vmatpush1.msra.mxu0 0.0
    %1627 = vmatprep.subr.mxu0 0.0
    %1628 = vmatpush1.msra.mxu0 0.0
    %1629 = vmatprep.subr.mxu0 0.0
    %1630 = vmatpush1.msra.mxu0 0.0
    %1631 = vmatprep.subr.mxu0 0.0
    %1632 = vmatpush1.msra.mxu0 0.0
    %1633 = vmatprep.subr.mxu0 0.0
    %1634 = vmatpush1.msra.mxu0 0.0
    %1635 = vmatprep.subr.mxu0 0.0
    %1636 = vmatpush1.msra.mxu0 0.0
    %1637 = vmatprep.subr.mxu0 0.0
    %1638 = vmatpush1.msra.mxu0 0.0
    %1639 = vmatprep.subr.mxu0 0.0
    %1640 = vmatpush1.msra.mxu0 0.0
    %1641 = vmatprep.subr.mxu0 0.0
    %1642 = vmatpush1.msra.mxu0 0.0
    %1643 = vmatprep.subr.mxu0 0.0
    %1644 = vmatpush1.msra.mxu0 0.0
    %1645 = vmatprep.subr.mxu0 0.0
    %1646 = vmatpush1.msra.mxu0 %v1613
    %1647 = vmatprep.subr.mxu0 0.0
    %1648 = vmatpush2.msra.mxu0 0.0
    %1649 = vmatprep.subr.mxu0 0.0
    %1650 = vmatpush2.msra.mxu0 0.0
    %1651 = vmatprep.subr.mxu0 0.0
    %1652 = vmatpush2.msra.mxu0 0.0
    %1653 = vmatprep.subr.mxu0 0.0
    %1654 = vmatpush2.msra.mxu0 0.0
    %1655 = vmatprep.subr.mxu0 0.0
    %1656 = vmatpush2.msra.mxu0 0.0
    %1657 = vmatprep.subr.mxu0 0.0
    %1658 = vmatpush2.msra.mxu0 0.0
    %1659 = vmatprep.subr.mxu0 0.0
    %1660 = vmatpush2.msra.mxu0 0.0
    %1661 = vmatprep.subr.mxu0 0.0
    %1662 = vmatpush2.msra.mxu0 0.0
    %1663 = vmatprep.subr.mxu0 0.0
    %1664 = vmatpush2.msra.mxu0 0.0
    %1665 = vmatprep.subr.mxu0 0.0
    %1666 = vmatpush2.msra.mxu0 0.0
    %1667 = vmatprep.subr.mxu0 0.0
    %1668 = vmatpush2.msra.mxu0 0.0
    %1669 = vmatprep.subr.mxu0 0.0
    %1670 = vmatpush2.msra.mxu0 0.0
    %1671 = vmatprep.subr.mxu0 0.0
    %1672 = vmatpush2.msra.mxu0 0.0
    %1673 = vmatprep.subr.mxu0 0.0
    %1674 = vmatpush2.msra.mxu0 0.0
    %1675 = vmatprep.subr.mxu0 0.0
    %1676 = vmatpush2.msra.mxu0 0.0
    %1677 = vmatprep.subr.mxu0 0.0
    %1678 = vmatpush2.msra.mxu0 0.0
    %1679 = vmatprep.mubr.f32.mxu0 0.0
    %1680 = vmatmul.mubr.f32.gmra.mxu0 %v1611
    %v1681 = vpop.f32.mrf.mxu0
    %v1682 = vadd.f32 0.0, %v1681
    %v1683 = vpop.f32.mrf.mxu0
    %1684 = vdwg.mxu0
    %v1685 = vadd.f32 %v1600, %v1682
    %1687 = vset.pattern.permute.xlu0 0
    %1688 = vperm.xlu0 %1687, %v929
    %v1689 = vpop.permute.xlu0 %1688
    %v1691 = vadd.f32 %v1685, %v1689
    %v1692 = vmul.f32 %v925, %v934
    %1694 = vrot.lane.b32.xlu0 %v925, 127
    %v1695 = vpop.permute.xlu0 %1694
    %v1696 = vsel %vm947, %v1695, 0
    %1698 = vmatprep.subr.mxu0 0.0
    %1699 = vmatpush1.msra.mxu0 0.0
    %1700 = vmatprep.subr.mxu0 0.0
    %1701 = vmatpush1.msra.mxu0 0.0
    %1702 = vmatprep.subr.mxu0 0.0
    %1703 = vmatpush1.msra.mxu0 0.0
    %1704 = vmatprep.subr.mxu0 0.0
    %1705 = vmatpush1.msra.mxu0 0.0
    %1706 = vmatprep.subr.mxu0 0.0
    %1707 = vmatpush1.msra.mxu0 0.0
    %1708 = vmatprep.subr.mxu0 0.0
    %1709 = vmatpush1.msra.mxu0 0.0
    %1710 = vmatprep.subr.mxu0 0.0
    %1711 = vmatpush1.msra.mxu0 0.0
    %1712 = vmatprep.subr.mxu0 0.0
    %1713 = vmatpush1.msra.mxu0 0.0
    %1714 = vmatprep.subr.mxu0 0.0
    %1715 = vmatpush1.msra.mxu0 0.0
    %1716 = vmatprep.subr.mxu0 0.0
    %1717 = vmatpush1.msra.mxu0 0.0
    %1718 = vmatprep.subr.mxu0 0.0
    %1719 = vmatpush1.msra.mxu0 0.0
    %1720 = vmatprep.subr.mxu0 0.0
    %1721 = vmatpush1.msra.mxu0 0.0
    %1722 = vmatprep.subr.mxu0 0.0
    %1723 = vmatpush1.msra.mxu0 0.0
    %1724 = vmatprep.subr.mxu0 0.0
    %1725 = vmatpush1.msra.mxu0 0.0
    %1726 = vmatprep.subr.mxu0 0.0
    %1727 = vmatpush1.msra.mxu0 0.0
    %1728 = vmatprep.subr.mxu0 0.0
    %1729 = vmatpush1.msra.mxu0 %v1696
    %1730 = vmatprep.subr.mxu0 0.0
    %1731 = vmatpush2.msra.mxu0 0.0
    %1732 = vmatprep.subr.mxu0 0.0
    %1733 = vmatpush2.msra.mxu0 0.0
    %1734 = vmatprep.subr.mxu0 0.0
    %1735 = vmatpush2.msra.mxu0 0.0
    %1736 = vmatprep.subr.mxu0 0.0
    %1737 = vmatpush2.msra.mxu0 0.0
    %1738 = vmatprep.subr.mxu0 0.0
    %1739 = vmatpush2.msra.mxu0 0.0
    %1740 = vmatprep.subr.mxu0 0.0
    %1741 = vmatpush2.msra.mxu0 0.0
    %1742 = vmatprep.subr.mxu0 0.0
    %1743 = vmatpush2.msra.mxu0 0.0
    %1744 = vmatprep.subr.mxu0 0.0
    %1745 = vmatpush2.msra.mxu0 0.0
    %1746 = vmatprep.subr.mxu0 0.0
    %1747 = vmatpush2.msra.mxu0 0.0
    %1748 = vmatprep.subr.mxu0 0.0
    %1749 = vmatpush2.msra.mxu0 0.0
    %1750 = vmatprep.subr.mxu0 0.0
    %1751 = vmatpush2.msra.mxu0 0.0
    %1752 = vmatprep.subr.mxu0 0.0
    %1753 = vmatpush2.msra.mxu0 0.0
    %1754 = vmatprep.subr.mxu0 0.0
    %1755 = vmatpush2.msra.mxu0 0.0
    %1756 = vmatprep.subr.mxu0 0.0
    %1757 = vmatpush2.msra.mxu0 0.0
    %1758 = vmatprep.subr.mxu0 0.0
    %1759 = vmatpush2.msra.mxu0 0.0
    %1760 = vmatprep.subr.mxu0 0.0
    %1761 = vmatpush2.msra.mxu0 0.0
    %1762 = vmatprep.mubr.f32.mxu0 0.0
    %1763 = vmatmul.mubr.f32.gmra.mxu0 %v945
    %v1764 = vpop.f32.mrf.mxu0
    %v1765 = vadd.f32 0.0, %v1764
    %v1766 = vpop.f32.mrf.mxu0
    %1767 = vdwg.mxu0
    %v1769 = vsel %vm947, %v1692, 0
    %1771 = vmatprep.subr.mxu0 0.0
    %1772 = vmatpush1.msra.mxu0 0.0
    %1773 = vmatprep.subr.mxu0 0.0
    %1774 = vmatpush1.msra.mxu0 0.0
    %1775 = vmatprep.subr.mxu0 0.0
    %1776 = vmatpush1.msra.mxu0 0.0
    %1777 = vmatprep.subr.mxu0 0.0
    %1778 = vmatpush1.msra.mxu0 0.0
    %1779 = vmatprep.subr.mxu0 0.0
    %1780 = vmatpush1.msra.mxu0 0.0
    %1781 = vmatprep.subr.mxu0 0.0
    %1782 = vmatpush1.msra.mxu0 0.0
    %1783 = vmatprep.subr.mxu0 0.0
    %1784 = vmatpush1.msra.mxu0 0.0
    %1785 = vmatprep.subr.mxu0 0.0
    %1786 = vmatpush1.msra.mxu0 0.0
    %1787 = vmatprep.subr.mxu0 0.0
    %1788 = vmatpush1.msra.mxu0 0.0
    %1789 = vmatprep.subr.mxu0 0.0
    %1790 = vmatpush1.msra.mxu0 0.0
    %1791 = vmatprep.subr.mxu0 0.0
    %1792 = vmatpush1.msra.mxu0 0.0
    %1793 = vmatprep.subr.mxu0 0.0
    %1794 = vmatpush1.msra.mxu0 0.0
    %1795 = vmatprep.subr.mxu0 0.0
    %1796 = vmatpush1.msra.mxu0 0.0
    %1797 = vmatprep.subr.mxu0 0.0
    %1798 = vmatpush1.msra.mxu0 0.0
    %1799 = vmatprep.subr.mxu0 0.0
    %1800 = vmatpush1.msra.mxu0 0.0
    %1801 = vmatprep.subr.mxu0 0.0
    %1802 = vmatpush1.msra.mxu0 %v1769
    %1803 = vmatprep.subr.mxu0 0.0
    %1804 = vmatpush2.msra.mxu0 0.0
    %1805 = vmatprep.subr.mxu0 0.0
    %1806 = vmatpush2.msra.mxu0 0.0
    %1807 = vmatprep.subr.mxu0 0.0
    %1808 = vmatpush2.msra.mxu0 0.0
    %1809 = vmatprep.subr.mxu0 0.0
    %1810 = vmatpush2.msra.mxu0 0.0
    %1811 = vmatprep.subr.mxu0 0.0
    %1812 = vmatpush2.msra.mxu0 0.0
    %1813 = vmatprep.subr.mxu0 0.0
    %1814 = vmatpush2.msra.mxu0 0.0
    %1815 = vmatprep.subr.mxu0 0.0
    %1816 = vmatpush2.msra.mxu0 0.0
    %1817 = vmatprep.subr.mxu0 0.0
    %1818 = vmatpush2.msra.mxu0 0.0
    %1819 = vmatprep.subr.mxu0 0.0
    %1820 = vmatpush2.msra.mxu0 0.0
    %1821 = vmatprep.subr.mxu0 0.0
    %1822 = vmatpush2.msra.mxu0 0.0
    %1823 = vmatprep.subr.mxu0 0.0
    %1824 = vmatpush2.msra.mxu0 0.0
    %1825 = vmatprep.subr.mxu0 0.0
    %1826 = vmatpush2.msra.mxu0 0.0
    %1827 = vmatprep.subr.mxu0 0.0
    %1828 = vmatpush2.msra.mxu0 0.0
    %1829 = vmatprep.subr.mxu0 0.0
    %1830 = vmatpush2.msra.mxu0 0.0
    %1831 = vmatprep.subr.mxu0 0.0
    %1832 = vmatpush2.msra.mxu0 0.0
    %1833 = vmatprep.subr.mxu0 0.0
    %1834 = vmatpush2.msra.mxu0 0.0
    %1835 = vmatprep.mubr.f32.mxu0 0.0
    %1836 = vmatmul.mubr.f32.gmra.mxu0 %v1021
    %v1837 = vpop.f32.mrf.mxu0
    %v1838 = vadd.f32 %v1765, %v1837
    %v1839 = vpop.f32.mrf.mxu0
    %1840 = vdwg.mxu0
    %v1841 = vmul.f32 %v925, %v1102
    %1843 = vrot.lane.b32.xlu0 %v1841, 126
    %v1844 = vpop.permute.xlu0 %1843
    %v1845 = vsel %vm947, %v1844, 0
    %1847 = vmatprep.subr.mxu0 0.0
    %1848 = vmatpush1.msra.mxu0 0.0
    %1849 = vmatprep.subr.mxu0 0.0
    %1850 = vmatpush1.msra.mxu0 0.0
    %1851 = vmatprep.subr.mxu0 0.0
    %1852 = vmatpush1.msra.mxu0 0.0
    %1853 = vmatprep.subr.mxu0 0.0
    %1854 = vmatpush1.msra.mxu0 0.0
    %1855 = vmatprep.subr.mxu0 0.0
    %1856 = vmatpush1.msra.mxu0 0.0
    %1857 = vmatprep.subr.mxu0 0.0
    %1858 = vmatpush1.msra.mxu0 0.0
    %1859 = vmatprep.subr.mxu0 0.0
    %1860 = vmatpush1.msra.mxu0 0.0
    %1861 = vmatprep.subr.mxu0 0.0
    %1862 = vmatpush1.msra.mxu0 0.0
    %1863 = vmatprep.subr.mxu0 0.0
    %1864 = vmatpush1.msra.mxu0 0.0
    %1865 = vmatprep.subr.mxu0 0.0
    %1866 = vmatpush1.msra.mxu0 0.0
    %1867 = vmatprep.subr.mxu0 0.0
    %1868 = vmatpush1.msra.mxu0 0.0
    %1869 = vmatprep.subr.mxu0 0.0
    %1870 = vmatpush1.msra.mxu0 0.0
    %1871 = vmatprep.subr.mxu0 0.0
    %1872 = vmatpush1.msra.mxu0 0.0
    %1873 = vmatprep.subr.mxu0 0.0
    %1874 = vmatpush1.msra.mxu0 0.0
    %1875 = vmatprep.subr.mxu0 0.0
    %1876 = vmatpush1.msra.mxu0 0.0
    %1877 = vmatprep.subr.mxu0 0.0
    %1878 = vmatpush1.msra.mxu0 %v1845
    %1879 = vmatprep.subr.mxu0 0.0
    %1880 = vmatpush2.msra.mxu0 0.0
    %1881 = vmatprep.subr.mxu0 0.0
    %1882 = vmatpush2.msra.mxu0 0.0
    %1883 = vmatprep.subr.mxu0 0.0
    %1884 = vmatpush2.msra.mxu0 0.0
    %1885 = vmatprep.subr.mxu0 0.0
    %1886 = vmatpush2.msra.mxu0 0.0
    %1887 = vmatprep.subr.mxu0 0.0
    %1888 = vmatpush2.msra.mxu0 0.0
    %1889 = vmatprep.subr.mxu0 0.0
    %1890 = vmatpush2.msra.mxu0 0.0
    %1891 = vmatprep.subr.mxu0 0.0
    %1892 = vmatpush2.msra.mxu0 0.0
    %1893 = vmatprep.subr.mxu0 0.0
    %1894 = vmatpush2.msra.mxu0 0.0
    %1895 = vmatprep.subr.mxu0 0.0
    %1896 = vmatpush2.msra.mxu0 0.0
    %1897 = vmatprep.subr.mxu0 0.0
    %1898 = vmatpush2.msra.mxu0 0.0
    %1899 = vmatprep.subr.mxu0 0.0
    %1900 = vmatpush2.msra.mxu0 0.0
    %1901 = vmatprep.subr.mxu0 0.0
    %1902 = vmatpush2.msra.mxu0 0.0
    %1903 = vmatprep.subr.mxu0 0.0
    %1904 = vmatpush2.msra.mxu0 0.0
    %1905 = vmatprep.subr.mxu0 0.0
    %1906 = vmatpush2.msra.mxu0 0.0
    %1907 = vmatprep.subr.mxu0 0.0
    %1908 = vmatpush2.msra.mxu0 0.0
    %1909 = vmatprep.subr.mxu0 0.0
    %1910 = vmatpush2.msra.mxu0 0.0
    %1911 = vmatprep.mubr.f32.mxu0 0.0
    %1912 = vmatmul.mubr.f32.gmra.mxu0 %v1111
    %v1913 = vpop.f32.mrf.mxu0
    %v1914 = vadd.f32 0.0, %v1913
    %v1915 = vpop.f32.mrf.mxu0
    %1916 = vdwg.mxu0
    %v1917 = vadd.f32 %v1838, %v1914
    %v1918 = vmul.f32 %v925, %v1187
    %1920 = vrot.lane.b32.xlu0 %v1918, 120
    %v1921 = vpop.permute.xlu0 %1920
    %v1922 = vsel %vm947, %v1921, 0
    %1924 = vmatprep.subr.mxu0 0.0
    %1925 = vmatpush1.msra.mxu0 0.0
    %1926 = vmatprep.subr.mxu0 0.0
    %1927 = vmatpush1.msra.mxu0 0.0
    %1928 = vmatprep.subr.mxu0 0.0
    %1929 = vmatpush1.msra.mxu0 0.0
    %1930 = vmatprep.subr.mxu0 0.0
    %1931 = vmatpush1.msra.mxu0 0.0
    %1932 = vmatprep.subr.mxu0 0.0
    %1933 = vmatpush1.msra.mxu0 0.0
    %1934 = vmatprep.subr.mxu0 0.0
    %1935 = vmatpush1.msra.mxu0 0.0
    %1936 = vmatprep.subr.mxu0 0.0
    %1937 = vmatpush1.msra.mxu0 0.0
    %1938 = vmatprep.subr.mxu0 0.0
    %1939 = vmatpush1.msra.mxu0 0.0
    %1940 = vmatprep.subr.mxu0 0.0
    %1941 = vmatpush1.msra.mxu0 0.0
    %1942 = vmatprep.subr.mxu0 0.0
    %1943 = vmatpush1.msra.mxu0 0.0
    %1944 = vmatprep.subr.mxu0 0.0
    %1945 = vmatpush1.msra.mxu0 0.0
    %1946 = vmatprep.subr.mxu0 0.0
    %1947 = vmatpush1.msra.mxu0 0.0
    %1948 = vmatprep.subr.mxu0 0.0
    %1949 = vmatpush1.msra.mxu0 0.0
    %1950 = vmatprep.subr.mxu0 0.0
    %1951 = vmatpush1.msra.mxu0 0.0
    %1952 = vmatprep.subr.mxu0 0.0
    %1953 = vmatpush1.msra.mxu0 0.0
    %1954 = vmatprep.subr.mxu0 0.0
    %1955 = vmatpush1.msra.mxu0 %v1922
    %1956 = vmatprep.subr.mxu0 0.0
    %1957 = vmatpush2.msra.mxu0 0.0
    %1958 = vmatprep.subr.mxu0 0.0
    %1959 = vmatpush2.msra.mxu0 0.0
    %1960 = vmatprep.subr.mxu0 0.0
    %1961 = vmatpush2.msra.mxu0 0.0
    %1962 = vmatprep.subr.mxu0 0.0
    %1963 = vmatpush2.msra.mxu0 0.0
    %1964 = vmatprep.subr.mxu0 0.0
    %1965 = vmatpush2.msra.mxu0 0.0
    %1966 = vmatprep.subr.mxu0 0.0
    %1967 = vmatpush2.msra.mxu0 0.0
    %1968 = vmatprep.subr.mxu0 0.0
    %1969 = vmatpush2.msra.mxu0 0.0
    %1970 = vmatprep.subr.mxu0 0.0
    %1971 = vmatpush2.msra.mxu0 0.0
    %1972 = vmatprep.subr.mxu0 0.0
    %1973 = vmatpush2.msra.mxu0 0.0
    %1974 = vmatprep.subr.mxu0 0.0
    %1975 = vmatpush2.msra.mxu0 0.0
    %1976 = vmatprep.subr.mxu0 0.0
    %1977 = vmatpush2.msra.mxu0 0.0
    %1978 = vmatprep.subr.mxu0 0.0
    %1979 = vmatpush2.msra.mxu0 0.0
    %1980 = vmatprep.subr.mxu0 0.0
    %1981 = vmatpush2.msra.mxu0 0.0
    %1982 = vmatprep.subr.mxu0 0.0
    %1983 = vmatpush2.msra.mxu0 0.0
    %1984 = vmatprep.subr.mxu0 0.0
    %1985 = vmatpush2.msra.mxu0 0.0
    %1986 = vmatprep.subr.mxu0 0.0
    %1987 = vmatpush2.msra.mxu0 0.0
    %1988 = vmatprep.mubr.f32.mxu0 0.0
    %1989 = vmatmul.mubr.f32.gmra.mxu0 %v1196
    %v1990 = vpop.f32.mrf.mxu0
    %v1991 = vadd.f32 0.0, %v1990
    %v1992 = vpop.f32.mrf.mxu0
    %1993 = vdwg.mxu0
    %v1994 = vadd.f32 %v1917, %v1991
    %1995 = vrot.lane.b32.xlu0 %v925, 119
    %v1996 = vpop.permute.xlu0 %1995
    %v1997 = vsel %vm947, %v1996, 0
    %1999 = vmatprep.subr.mxu0 0.0
    %2000 = vmatpush1.msra.mxu0 0.0
    %2001 = vmatprep.subr.mxu0 0.0
    %2002 = vmatpush1.msra.mxu0 0.0
    %2003 = vmatprep.subr.mxu0 0.0
    %2004 = vmatpush1.msra.mxu0 0.0
    %2005 = vmatprep.subr.mxu0 0.0
    %2006 = vmatpush1.msra.mxu0 0.0
    %2007 = vmatprep.subr.mxu0 0.0
    %2008 = vmatpush1.msra.mxu0 0.0
    %2009 = vmatprep.subr.mxu0 0.0
    %2010 = vmatpush1.msra.mxu0 0.0
    %2011 = vmatprep.subr.mxu0 0.0
    %2012 = vmatpush1.msra.mxu0 0.0
    %2013 = vmatprep.subr.mxu0 0.0
    %2014 = vmatpush1.msra.mxu0 0.0
    %2015 = vmatprep.subr.mxu0 0.0
    %2016 = vmatpush1.msra.mxu0 0.0
    %2017 = vmatprep.subr.mxu0 0.0
    %2018 = vmatpush1.msra.mxu0 0.0
    %2019 = vmatprep.subr.mxu0 0.0
    %2020 = vmatpush1.msra.mxu0 0.0
    %2021 = vmatprep.subr.mxu0 0.0
    %2022 = vmatpush1.msra.mxu0 0.0
    %2023 = vmatprep.subr.mxu0 0.0
    %2024 = vmatpush1.msra.mxu0 0.0
    %2025 = vmatprep.subr.mxu0 0.0
    %2026 = vmatpush1.msra.mxu0 0.0
    %2027 = vmatprep.subr.mxu0 0.0
    %2028 = vmatpush1.msra.mxu0 0.0
    %2029 = vmatprep.subr.mxu0 0.0
    %2030 = vmatpush1.msra.mxu0 %v1997
    %2031 = vmatprep.subr.mxu0 0.0
    %2032 = vmatpush2.msra.mxu0 0.0
    %2033 = vmatprep.subr.mxu0 0.0
    %2034 = vmatpush2.msra.mxu0 0.0
    %2035 = vmatprep.subr.mxu0 0.0
    %2036 = vmatpush2.msra.mxu0 0.0
    %2037 = vmatprep.subr.mxu0 0.0
    %2038 = vmatpush2.msra.mxu0 0.0
    %2039 = vmatprep.subr.mxu0 0.0
    %2040 = vmatpush2.msra.mxu0 0.0
    %2041 = vmatprep.subr.mxu0 0.0
    %2042 = vmatpush2.msra.mxu0 0.0
    %2043 = vmatprep.subr.mxu0 0.0
    %2044 = vmatpush2.msra.mxu0 0.0
    %2045 = vmatprep.subr.mxu0 0.0
    %2046 = vmatpush2.msra.mxu0 0.0
    %2047 = vmatprep.subr.mxu0 0.0
    %2048 = vmatpush2.msra.mxu0 0.0
    %2049 = vmatprep.subr.mxu0 0.0
    %2050 = vmatpush2.msra.mxu0 0.0
    %2051 = vmatprep.subr.mxu0 0.0
    %2052 = vmatpush2.msra.mxu0 0.0
    %2053 = vmatprep.subr.mxu0 0.0
    %2054 = vmatpush2.msra.mxu0 0.0
    %2055 = vmatprep.subr.mxu0 0.0
    %2056 = vmatpush2.msra.mxu0 0.0
    %2057 = vmatprep.subr.mxu0 0.0
    %2058 = vmatpush2.msra.mxu0 0.0
    %2059 = vmatprep.subr.mxu0 0.0
    %2060 = vmatpush2.msra.mxu0 0.0
    %2061 = vmatprep.subr.mxu0 0.0
    %2062 = vmatpush2.msra.mxu0 0.0
    %2063 = vmatprep.mubr.f32.mxu0 0.0
    %2064 = vmatmul.mubr.f32.gmra.mxu0 %v1276
    %v2065 = vpop.f32.mrf.mxu0
    %v2066 = vadd.f32 0.0, %v2065
    %v2067 = vpop.f32.mrf.mxu0
    %2068 = vdwg.mxu0
    %v2069 = vadd.f32 %v1994, %v2066
    %v2070 = vmul.f32 %v925, %v1352
    %2072 = vrot.lane.b32.xlu0 %v2070, 118
    %v2073 = vpop.permute.xlu0 %2072
    %v2074 = vsel %vm947, %v2073, 0
    %2076 = vmatprep.subr.mxu0 0.0
    %2077 = vmatpush1.msra.mxu0 0.0
    %2078 = vmatprep.subr.mxu0 0.0
    %2079 = vmatpush1.msra.mxu0 0.0
    %2080 = vmatprep.subr.mxu0 0.0
    %2081 = vmatpush1.msra.mxu0 0.0
    %2082 = vmatprep.subr.mxu0 0.0
    %2083 = vmatpush1.msra.mxu0 0.0
    %2084 = vmatprep.subr.mxu0 0.0
    %2085 = vmatpush1.msra.mxu0 0.0
    %2086 = vmatprep.subr.mxu0 0.0
    %2087 = vmatpush1.msra.mxu0 0.0
    %2088 = vmatprep.subr.mxu0 0.0
    %2089 = vmatpush1.msra.mxu0 0.0
    %2090 = vmatprep.subr.mxu0 0.0
    %2091 = vmatpush1.msra.mxu0 0.0
    %2092 = vmatprep.subr.mxu0 0.0
    %2093 = vmatpush1.msra.mxu0 0.0
    %2094 = vmatprep.subr.mxu0 0.0
    %2095 = vmatpush1.msra.mxu0 0.0
    %2096 = vmatprep.subr.mxu0 0.0
    %2097 = vmatpush1.msra.mxu0 0.0
    %2098 = vmatprep.subr.mxu0 0.0
    %2099 = vmatpush1.msra.mxu0 0.0
    %2100 = vmatprep.subr.mxu0 0.0
    %2101 = vmatpush1.msra.mxu0 0.0
    %2102 = vmatprep.subr.mxu0 0.0
    %2103 = vmatpush1.msra.mxu0 0.0
    %2104 = vmatprep.subr.mxu0 0.0
    %2105 = vmatpush1.msra.mxu0 0.0
    %2106 = vmatprep.subr.mxu0 0.0
    %2107 = vmatpush1.msra.mxu0 %v2074
    %2108 = vmatprep.subr.mxu0 0.0
    %2109 = vmatpush2.msra.mxu0 0.0
    %2110 = vmatprep.subr.mxu0 0.0
    %2111 = vmatpush2.msra.mxu0 0.0
    %2112 = vmatprep.subr.mxu0 0.0
    %2113 = vmatpush2.msra.mxu0 0.0
    %2114 = vmatprep.subr.mxu0 0.0
    %2115 = vmatpush2.msra.mxu0 0.0
    %2116 = vmatprep.subr.mxu0 0.0
    %2117 = vmatpush2.msra.mxu0 0.0
    %2118 = vmatprep.subr.mxu0 0.0
    %2119 = vmatpush2.msra.mxu0 0.0
    %2120 = vmatprep.subr.mxu0 0.0
    %2121 = vmatpush2.msra.mxu0 0.0
    %2122 = vmatprep.subr.mxu0 0.0
    %2123 = vmatpush2.msra.mxu0 0.0
    %2124 = vmatprep.subr.mxu0 0.0
    %2125 = vmatpush2.msra.mxu0 0.0
    %2126 = vmatprep.subr.mxu0 0.0
    %2127 = vmatpush2.msra.mxu0 0.0
    %2128 = vmatprep.subr.mxu0 0.0
    %2129 = vmatpush2.msra.mxu0 0.0
    %2130 = vmatprep.subr.mxu0 0.0
    %2131 = vmatpush2.msra.mxu0 0.0
    %2132 = vmatprep.subr.mxu0 0.0
    %2133 = vmatpush2.msra.mxu0 0.0
    %2134 = vmatprep.subr.mxu0 0.0
    %2135 = vmatpush2.msra.mxu0 0.0
    %2136 = vmatprep.subr.mxu0 0.0
    %2137 = vmatpush2.msra.mxu0 0.0
    %2138 = vmatprep.subr.mxu0 0.0
    %2139 = vmatpush2.msra.mxu0 0.0
    %2140 = vmatprep.mubr.f32.mxu0 0.0
    %2141 = vmatmul.mubr.f32.gmra.mxu0 %v1361
    %v2142 = vpop.f32.mrf.mxu0
    %v2143 = vadd.f32 0.0, %v2142
    %v2144 = vpop.f32.mrf.mxu0
    %2145 = vdwg.mxu0
    %v2146 = vadd.f32 %v2069, %v2143
    %v2147 = vmul.f32 %v925, %v1437
    %2149 = vrot.lane.b32.xlu0 %v2147, 112
    %v2150 = vpop.permute.xlu0 %2149
    %v2151 = vsel %vm947, %v2150, 0
    %2153 = vmatprep.subr.mxu0 0.0
    %2154 = vmatpush1.msra.mxu0 0.0
    %2155 = vmatprep.subr.mxu0 0.0
    %2156 = vmatpush1.msra.mxu0 0.0
    %2157 = vmatprep.subr.mxu0 0.0
    %2158 = vmatpush1.msra.mxu0 0.0
    %2159 = vmatprep.subr.mxu0 0.0
    %2160 = vmatpush1.msra.mxu0 0.0
    %2161 = vmatprep.subr.mxu0 0.0
    %2162 = vmatpush1.msra.mxu0 0.0
    %2163 = vmatprep.subr.mxu0 0.0
    %2164 = vmatpush1.msra.mxu0 0.0
    %2165 = vmatprep.subr.mxu0 0.0
    %2166 = vmatpush1.msra.mxu0 0.0
    %2167 = vmatprep.subr.mxu0 0.0
    %2168 = vmatpush1.msra.mxu0 0.0
    %2169 = vmatprep.subr.mxu0 0.0
    %2170 = vmatpush1.msra.mxu0 0.0
    %2171 = vmatprep.subr.mxu0 0.0
    %2172 = vmatpush1.msra.mxu0 0.0
    %2173 = vmatprep.subr.mxu0 0.0
    %2174 = vmatpush1.msra.mxu0 0.0
    %2175 = vmatprep.subr.mxu0 0.0
    %2176 = vmatpush1.msra.mxu0 0.0
    %2177 = vmatprep.subr.mxu0 0.0
    %2178 = vmatpush1.msra.mxu0 0.0
    %2179 = vmatprep.subr.mxu0 0.0
    %2180 = vmatpush1.msra.mxu0 0.0
    %2181 = vmatprep.subr.mxu0 0.0
    %2182 = vmatpush1.msra.mxu0 0.0
    %2183 = vmatprep.subr.mxu0 0.0
    %2184 = vmatpush1.msra.mxu0 %v2151
    %2185 = vmatprep.subr.mxu0 0.0
    %2186 = vmatpush2.msra.mxu0 0.0
    %2187 = vmatprep.subr.mxu0 0.0
    %2188 = vmatpush2.msra.mxu0 0.0
    %2189 = vmatprep.subr.mxu0 0.0
    %2190 = vmatpush2.msra.mxu0 0.0
    %2191 = vmatprep.subr.mxu0 0.0
    %2192 = vmatpush2.msra.mxu0 0.0
    %2193 = vmatprep.subr.mxu0 0.0
    %2194 = vmatpush2.msra.mxu0 0.0
    %2195 = vmatprep.subr.mxu0 0.0
    %2196 = vmatpush2.msra.mxu0 0.0
    %2197 = vmatprep.subr.mxu0 0.0
    %2198 = vmatpush2.msra.mxu0 0.0
    %2199 = vmatprep.subr.mxu0 0.0
    %2200 = vmatpush2.msra.mxu0 0.0
    %2201 = vmatprep.subr.mxu0 0.0
    %2202 = vmatpush2.msra.mxu0 0.0
    %2203 = vmatprep.subr.mxu0 0.0
    %2204 = vmatpush2.msra.mxu0 0.0
    %2205 = vmatprep.subr.mxu0 0.0
    %2206 = vmatpush2.msra.mxu0 0.0
    %2207 = vmatprep.subr.mxu0 0.0
    %2208 = vmatpush2.msra.mxu0 0.0
    %2209 = vmatprep.subr.mxu0 0.0
    %2210 = vmatpush2.msra.mxu0 0.0
    %2211 = vmatprep.subr.mxu0 0.0
    %2212 = vmatpush2.msra.mxu0 0.0
    %2213 = vmatprep.subr.mxu0 0.0
    %2214 = vmatpush2.msra.mxu0 0.0
    %2215 = vmatprep.subr.mxu0 0.0
    %2216 = vmatpush2.msra.mxu0 0.0
    %2217 = vmatprep.mubr.f32.mxu0 0.0
    %2218 = vmatmul.mubr.f32.gmra.mxu0 %v1446
    %v2219 = vpop.f32.mrf.mxu0
    %v2220 = vadd.f32 0.0, %v2219
    %v2221 = vpop.f32.mrf.mxu0
    %2222 = vdwg.mxu0
    %v2223 = vadd.f32 %v2146, %v2220
    %2224 = vrot.lane.b32.xlu0 %v925, 111
    %v2225 = vpop.permute.xlu0 %2224
    %v2226 = vsel %vm947, %v2225, 0
    %2228 = vmatprep.subr.mxu0 0.0
    %2229 = vmatpush1.msra.mxu0 0.0
    %2230 = vmatprep.subr.mxu0 0.0
    %2231 = vmatpush1.msra.mxu0 0.0
    %2232 = vmatprep.subr.mxu0 0.0
    %2233 = vmatpush1.msra.mxu0 0.0
    %2234 = vmatprep.subr.mxu0 0.0
    %2235 = vmatpush1.msra.mxu0 0.0
    %2236 = vmatprep.subr.mxu0 0.0
    %2237 = vmatpush1.msra.mxu0 0.0
    %2238 = vmatprep.subr.mxu0 0.0
    %2239 = vmatpush1.msra.mxu0 0.0
    %2240 = vmatprep.subr.mxu0 0.0
    %2241 = vmatpush1.msra.mxu0 0.0
    %2242 = vmatprep.subr.mxu0 0.0
    %2243 = vmatpush1.msra.mxu0 0.0
    %2244 = vmatprep.subr.mxu0 0.0
    %2245 = vmatpush1.msra.mxu0 0.0
    %2246 = vmatprep.subr.mxu0 0.0
    %2247 = vmatpush1.msra.mxu0 0.0
    %2248 = vmatprep.subr.mxu0 0.0
    %2249 = vmatpush1.msra.mxu0 0.0
    %2250 = vmatprep.subr.mxu0 0.0
    %2251 = vmatpush1.msra.mxu0 0.0
    %2252 = vmatprep.subr.mxu0 0.0
    %2253 = vmatpush1.msra.mxu0 0.0
    %2254 = vmatprep.subr.mxu0 0.0
    %2255 = vmatpush1.msra.mxu0 0.0
    %2256 = vmatprep.subr.mxu0 0.0
    %2257 = vmatpush1.msra.mxu0 0.0
    %2258 = vmatprep.subr.mxu0 0.0
    %2259 = vmatpush1.msra.mxu0 %v2226
    %2260 = vmatprep.subr.mxu0 0.0
    %2261 = vmatpush2.msra.mxu0 0.0
    %2262 = vmatprep.subr.mxu0 0.0
    %2263 = vmatpush2.msra.mxu0 0.0
    %2264 = vmatprep.subr.mxu0 0.0
    %2265 = vmatpush2.msra.mxu0 0.0
    %2266 = vmatprep.subr.mxu0 0.0
    %2267 = vmatpush2.msra.mxu0 0.0
    %2268 = vmatprep.subr.mxu0 0.0
    %2269 = vmatpush2.msra.mxu0 0.0
    %2270 = vmatprep.subr.mxu0 0.0
    %2271 = vmatpush2.msra.mxu0 0.0
    %2272 = vmatprep.subr.mxu0 0.0
    %2273 = vmatpush2.msra.mxu0 0.0
    %2274 = vmatprep.subr.mxu0 0.0
    %2275 = vmatpush2.msra.mxu0 0.0
    %2276 = vmatprep.subr.mxu0 0.0
    %2277 = vmatpush2.msra.mxu0 0.0
    %2278 = vmatprep.subr.mxu0 0.0
    %2279 = vmatpush2.msra.mxu0 0.0
    %2280 = vmatprep.subr.mxu0 0.0
    %2281 = vmatpush2.msra.mxu0 0.0
    %2282 = vmatprep.subr.mxu0 0.0
    %2283 = vmatpush2.msra.mxu0 0.0
    %2284 = vmatprep.subr.mxu0 0.0
    %2285 = vmatpush2.msra.mxu0 0.0
    %2286 = vmatprep.subr.mxu0 0.0
    %2287 = vmatpush2.msra.mxu0 0.0
    %2288 = vmatprep.subr.mxu0 0.0
    %2289 = vmatpush2.msra.mxu0 0.0
    %2290 = vmatprep.subr.mxu0 0.0
    %2291 = vmatpush2.msra.mxu0 0.0
    %2292 = vmatprep.mubr.f32.mxu0 0.0
    %2293 = vmatmul.mubr.f32.gmra.mxu0 %v1526
    %v2294 = vpop.f32.mrf.mxu0
    %v2295 = vadd.f32 0.0, %v2294
    %v2296 = vpop.f32.mrf.mxu0
    %2297 = vdwg.mxu0
    %v2298 = vadd.f32 %v2223, %v2295
    %v2299 = vmul.f32 %v925, %v1602
    %2301 = vrot.lane.b32.xlu0 %v2299, 110
    %v2302 = vpop.permute.xlu0 %2301
    %v2303 = vsel %vm947, %v2302, 0
    %2305 = vmatprep.subr.mxu0 0.0
    %2306 = vmatpush1.msra.mxu0 0.0
    %2307 = vmatprep.subr.mxu0 0.0
    %2308 = vmatpush1.msra.mxu0 0.0
    %2309 = vmatprep.subr.mxu0 0.0
    %2310 = vmatpush1.msra.mxu0 0.0
    %2311 = vmatprep.subr.mxu0 0.0
    %2312 = vmatpush1.msra.mxu0 0.0
    %2313 = vmatprep.subr.mxu0 0.0
    %2314 = vmatpush1.msra.mxu0 0.0
    %2315 = vmatprep.subr.mxu0 0.0
    %2316 = vmatpush1.msra.mxu0 0.0
    %2317 = vmatprep.subr.mxu0 0.0
    %2318 = vmatpush1.msra.mxu0 0.0
    %2319 = vmatprep.subr.mxu0 0.0
    %2320 = vmatpush1.msra.mxu0 0.0
    %2321 = vmatprep.subr.mxu0 0.0
    %2322 = vmatpush1.msra.mxu0 0.0
    %2323 = vmatprep.subr.mxu0 0.0
    %2324 = vmatpush1.msra.mxu0 0.0
    %2325 = vmatprep.subr.mxu0 0.0
    %2326 = vmatpush1.msra.mxu0 0.0
    %2327 = vmatprep.subr.mxu0 0.0
    %2328 = vmatpush1.msra.mxu0 0.0
    %2329 = vmatprep.subr.mxu0 0.0
    %2330 = vmatpush1.msra.mxu0 0.0
    %2331 = vmatprep.subr.mxu0 0.0
    %2332 = vmatpush1.msra.mxu0 0.0
    %2333 = vmatprep.subr.mxu0 0.0
    %2334 = vmatpush1.msra.mxu0 0.0
    %2335 = vmatprep.subr.mxu0 0.0
    %2336 = vmatpush1.msra.mxu0 %v2303
    %2337 = vmatprep.subr.mxu0 0.0
    %2338 = vmatpush2.msra.mxu0 0.0
    %2339 = vmatprep.subr.mxu0 0.0
    %2340 = vmatpush2.msra.mxu0 0.0
    %2341 = vmatprep.subr.mxu0 0.0
    %2342 = vmatpush2.msra.mxu0 0.0
    %2343 = vmatprep.subr.mxu0 0.0
    %2344 = vmatpush2.msra.mxu0 0.0
    %2345 = vmatprep.subr.mxu0 0.0
    %2346 = vmatpush2.msra.mxu0 0.0
    %2347 = vmatprep.subr.mxu0 0.0
    %2348 = vmatpush2.msra.mxu0 0.0
    %2349 = vmatprep.subr.mxu0 0.0
    %2350 = vmatpush2.msra.mxu0 0.0
    %2351 = vmatprep.subr.mxu0 0.0
    %2352 = vmatpush2.msra.mxu0 0.0
    %2353 = vmatprep.subr.mxu0 0.0
    %2354 = vmatpush2.msra.mxu0 0.0
    %2355 = vmatprep.subr.mxu0 0.0
    %2356 = vmatpush2.msra.mxu0 0.0
    %2357 = vmatprep.subr.mxu0 0.0
    %2358 = vmatpush2.msra.mxu0 0.0
    %2359 = vmatprep.subr.mxu0 0.0
    %2360 = vmatpush2.msra.mxu0 0.0
    %2361 = vmatprep.subr.mxu0 0.0
    %2362 = vmatpush2.msra.mxu0 0.0
    %2363 = vmatprep.subr.mxu0 0.0
    %2364 = vmatpush2.msra.mxu0 0.0
    %2365 = vmatprep.subr.mxu0 0.0
    %2366 = vmatpush2.msra.mxu0 0.0
    %2367 = vmatprep.subr.mxu0 0.0
    %2368 = vmatpush2.msra.mxu0 0.0
    %2369 = vmatprep.mubr.f32.mxu0 0.0
    %2370 = vmatmul.mubr.f32.gmra.mxu0 %v1611
    %v2371 = vpop.f32.mrf.mxu0
    %v2372 = vadd.f32 0.0, %v2371
    %v2373 = vpop.f32.mrf.mxu0
    %2374 = vdwg.mxu0
    %v2375 = vadd.f32 %v2298, %v2372
    %v2376 = vadd.f32 %v2375, %v1689
    %v2377 = vld [vmem:[%s5] sm:$0xff]
    %v2378 = vld [vmem:[%s6] sm:$0xff]
    %vm2379 = vcmask 523264
    %v2380 = vsel %vm2379, %v1691, 0.0
    %2381 = vadd.xlane.f32.xlu0 %v2380
    %v2382 = vpop.xlane.xlu0 %2381
    %v2383 = vadd.f32 %v2382, 0.0
    %v2384 = vsel %vm2379, %v2376, 0.0
    %2385 = vadd.xlane.f32.xlu0 %v2384
    %v2386 = vpop.xlane.xlu0 %2385
    %v2387 = vadd.f32 %v2383, %v2386
    %v2388 = vrcp.pop 128.0
    %v2389 = vmul.f32 %v2387, %v2388
    %v2390 = vsub.f32 %v1691, %v2389
    %v2391 = vmul.f32 %v2390, %v2390
    %v2392 = vsel %vm2379, %v2391, 0.0
    %2393 = vadd.xlane.f32.xlu0 %v2392
    %v2394 = vpop.xlane.xlu0 %2393
    %v2395 = vadd.f32 %v2394, 0.0
    %v2396 = vsub.f32 %v2376, %v2389
    %v2397 = vmul.f32 %v2396, %v2396
    %v2398 = vsel %vm2379, %v2397, 0.0
    %2399 = vadd.xlane.f32.xlu0 %v2398
    %v2400 = vpop.xlane.xlu0 %2399
    %v2401 = vadd.f32 %v2395, %v2400
    %v2402 = vmul.f32 %v2401, %v2388
    %v2403 = vadd.f32 %v2402, 1e-05
    %v2404 = vrsqrt.pop %v2403
    %v2405 = vmul.f32 %v2377, %v2404
    %v2406 = vmul.f32 %v2389, %v2405
    %v2407 = vsub.f32 %v2378, %v2406
    %2409 = vset.pattern.permute.xlu0 0
    %2410 = vperm.xlu0 %2409, %v2405
    %v2411 = vpop.permute.xlu0 %2410
    %v2413 = vmul.f32 %v1691, %v2411
    %2415 = vset.pattern.permute.xlu0 0
    %2416 = vperm.xlu0 %2415, %v2407
    %v2417 = vpop.permute.xlu0 %2416
    %v2419 = vadd.f32 %v2413, %v2417
    %v2420 = vmax.f32 %v2419, 0.0
    %v2421 = vmul.f32 %v2376, %v2411
    %v2422 = vadd.f32 %v2421, %v2417
    %v2423 = vmax.f32 %v2422, 0.0
    %2425 = vrot.lane.b32.xlu0 %v2420, 9
    %v2426 = vpop.permute.xlu0 %2425
    %vm2428 = vcmask 72704
    %v2429 = vsel %vm2428, 0.0, %v2426
    %vm2430 = vcmask 596992
    %v2431 = vsel %vm2430, %v2429, 0.0
    %v2432 = vld [vmem:[%s8] sm:$0xff]
    %v2433 = vmul.f32 %v2431, %v934
    %v2434 = vld [vmem:[%s7] sm:$0xff]
    %s2435 = scalar_lea.vmem %s7, 8
    %v2436 = vld [vmem:[%s2435] sm:$0xff]
    %2438 = vrot.lane.b32.xlu0 %v2431, 127
    %v2439 = vpop.permute.xlu0 %2438
    %vm2441 = vcmask 64512
    %v2443 = vsel %vm2441, %v2436, 0
    %2445 = vmatprep.subr.mxu0 0.0
    %2446 = vmatpush1.msra.mxu0 0.0
    %2447 = vmatprep.subr.mxu0 0.0
    %2448 = vmatpush1.msra.mxu0 0.0
    %2449 = vmatprep.subr.mxu0 0.0
    %2450 = vmatpush1.msra.mxu0 0.0
    %2451 = vmatprep.subr.mxu0 0.0
    %2452 = vmatpush1.msra.mxu0 0.0
    %2453 = vmatprep.subr.mxu0 0.0
    %2454 = vmatpush1.msra.mxu0 0.0
    %2455 = vmatprep.subr.mxu0 0.0
    %2456 = vmatpush1.msra.mxu0 0.0
    %2457 = vmatprep.subr.mxu0 0.0
    %2458 = vmatpush1.msra.mxu0 0.0
    %2459 = vmatprep.subr.mxu0 0.0
    %2460 = vmatpush1.msra.mxu0 0.0
    %2461 = vmatprep.subr.mxu0 0.0
    %2462 = vmatpush1.msra.mxu0 0.0
    %2463 = vmatprep.subr.mxu0 0.0
    %2464 = vmatpush1.msra.mxu0 0.0
    %2465 = vmatprep.subr.mxu0 0.0
    %2466 = vmatpush1.msra.mxu0 0.0
    %2467 = vmatprep.subr.mxu0 0.0
    %2468 = vmatpush1.msra.mxu0 0.0
    %2469 = vmatprep.subr.mxu0 0.0
    %2470 = vmatpush1.msra.mxu0 0.0
    %2471 = vmatprep.subr.mxu0 0.0
    %2472 = vmatpush1.msra.mxu0 0.0
    %2473 = vmatprep.subr.mxu0 0.0
    %2474 = vmatpush1.msra.mxu0 0.0
    %2475 = vmatprep.subr.mxu0 0.0
    %2476 = vmatpush1.msra.mxu0 %v2439
    %2477 = vmatprep.subr.mxu0 0.0
    %2478 = vmatpush2.msra.mxu0 0.0
    %2479 = vmatprep.subr.mxu0 0.0
    %2480 = vmatpush2.msra.mxu0 0.0
    %2481 = vmatprep.subr.mxu0 0.0
    %2482 = vmatpush2.msra.mxu0 0.0
    %2483 = vmatprep.subr.mxu0 0.0
    %2484 = vmatpush2.msra.mxu0 0.0
    %2485 = vmatprep.subr.mxu0 0.0
    %2486 = vmatpush2.msra.mxu0 0.0
    %2487 = vmatprep.subr.mxu0 0.0
    %2488 = vmatpush2.msra.mxu0 0.0
    %2489 = vmatprep.subr.mxu0 0.0
    %2490 = vmatpush2.msra.mxu0 0.0
    %2491 = vmatprep.subr.mxu0 0.0
    %2492 = vmatpush2.msra.mxu0 0.0
    %2493 = vmatprep.subr.mxu0 0.0
    %2494 = vmatpush2.msra.mxu0 0.0
    %2495 = vmatprep.subr.mxu0 0.0
    %2496 = vmatpush2.msra.mxu0 0.0
    %2497 = vmatprep.subr.mxu0 0.0
    %2498 = vmatpush2.msra.mxu0 0.0
    %2499 = vmatprep.subr.mxu0 0.0
    %2500 = vmatpush2.msra.mxu0 0.0
    %2501 = vmatprep.subr.mxu0 0.0
    %2502 = vmatpush2.msra.mxu0 0.0
    %2503 = vmatprep.subr.mxu0 0.0
    %2504 = vmatpush2.msra.mxu0 0.0
    %2505 = vmatprep.subr.mxu0 0.0
    %2506 = vmatpush2.msra.mxu0 0.0
    %2507 = vmatprep.subr.mxu0 0.0
    %2508 = vmatpush2.msra.mxu0 0.0
    %2509 = vmatprep.mubr.f32.mxu0 0.0
    %2510 = vmatmul.mubr.f32.gmra.mxu0 %v2443
    %v2511 = vpop.f32.mrf.mxu0
    %v2512 = vadd.f32 0.0, %v2511
    %v2513 = vpop.f32.mrf.mxu0
    %2514 = vdwg.mxu0
    %v2516 = vsel %vm2441, %v2434, 0
    %2518 = vmatprep.subr.mxu0 0.0
    %2519 = vmatpush1.msra.mxu0 0.0
    %2520 = vmatprep.subr.mxu0 0.0
    %2521 = vmatpush1.msra.mxu0 0.0
    %2522 = vmatprep.subr.mxu0 0.0
    %2523 = vmatpush1.msra.mxu0 0.0
    %2524 = vmatprep.subr.mxu0 0.0
    %2525 = vmatpush1.msra.mxu0 0.0
    %2526 = vmatprep.subr.mxu0 0.0
    %2527 = vmatpush1.msra.mxu0 0.0
    %2528 = vmatprep.subr.mxu0 0.0
    %2529 = vmatpush1.msra.mxu0 0.0
    %2530 = vmatprep.subr.mxu0 0.0
    %2531 = vmatpush1.msra.mxu0 0.0
    %2532 = vmatprep.subr.mxu0 0.0
    %2533 = vmatpush1.msra.mxu0 0.0
    %2534 = vmatprep.subr.mxu0 0.0
    %2535 = vmatpush1.msra.mxu0 0.0
    %2536 = vmatprep.subr.mxu0 0.0
    %2537 = vmatpush1.msra.mxu0 0.0
    %2538 = vmatprep.subr.mxu0 0.0
    %2539 = vmatpush1.msra.mxu0 0.0
    %2540 = vmatprep.subr.mxu0 0.0
    %2541 = vmatpush1.msra.mxu0 0.0
    %2542 = vmatprep.subr.mxu0 0.0
    %2543 = vmatpush1.msra.mxu0 0.0
    %2544 = vmatprep.subr.mxu0 0.0
    %2545 = vmatpush1.msra.mxu0 0.0
    %2546 = vmatprep.subr.mxu0 0.0
    %2547 = vmatpush1.msra.mxu0 0.0
    %2548 = vmatprep.subr.mxu0 0.0
    %2549 = vmatpush1.msra.mxu0 %v2433
    %2550 = vmatprep.subr.mxu0 0.0
    %2551 = vmatpush2.msra.mxu0 0.0
    %2552 = vmatprep.subr.mxu0 0.0
    %2553 = vmatpush2.msra.mxu0 0.0
    %2554 = vmatprep.subr.mxu0 0.0
    %2555 = vmatpush2.msra.mxu0 0.0
    %2556 = vmatprep.subr.mxu0 0.0
    %2557 = vmatpush2.msra.mxu0 0.0
    %2558 = vmatprep.subr.mxu0 0.0
    %2559 = vmatpush2.msra.mxu0 0.0
    %2560 = vmatprep.subr.mxu0 0.0
    %2561 = vmatpush2.msra.mxu0 0.0
    %2562 = vmatprep.subr.mxu0 0.0
    %2563 = vmatpush2.msra.mxu0 0.0
    %2564 = vmatprep.subr.mxu0 0.0
    %2565 = vmatpush2.msra.mxu0 0.0
    %2566 = vmatprep.subr.mxu0 0.0
    %2567 = vmatpush2.msra.mxu0 0.0
    %2568 = vmatprep.subr.mxu0 0.0
    %2569 = vmatpush2.msra.mxu0 0.0
    %2570 = vmatprep.subr.mxu0 0.0
    %2571 = vmatpush2.msra.mxu0 0.0
    %2572 = vmatprep.subr.mxu0 0.0
    %2573 = vmatpush2.msra.mxu0 0.0
    %2574 = vmatprep.subr.mxu0 0.0
    %2575 = vmatpush2.msra.mxu0 0.0
    %2576 = vmatprep.subr.mxu0 0.0
    %2577 = vmatpush2.msra.mxu0 0.0
    %2578 = vmatprep.subr.mxu0 0.0
    %2579 = vmatpush2.msra.mxu0 0.0
    %2580 = vmatprep.subr.mxu0 0.0
    %2581 = vmatpush2.msra.mxu0 0.0
    %2582 = vmatprep.mubr.f32.mxu0 0.0
    %2583 = vmatmul.mubr.f32.gmra.mxu0 %v2516
    %v2584 = vpop.f32.mrf.mxu0
    %v2585 = vadd.f32 %v2512, %v2584
    %v2586 = vpop.f32.mrf.mxu0
    %2587 = vdwg.mxu0
    %v2588 = vmul.f32 %v2431, %v1102
    %s2589 = scalar_lea.vmem %s7, 16
    %v2590 = vld [vmem:[%s2589] sm:$0xff]
    %2592 = vrot.lane.b32.xlu0 %v2588, 126
    %v2593 = vpop.permute.xlu0 %2592
    %v2596 = vsel %vm2441, %v2590, 0
    %2598 = vmatprep.subr.mxu0 0.0
    %2599 = vmatpush1.msra.mxu0 0.0
    %2600 = vmatprep.subr.mxu0 0.0
    %2601 = vmatpush1.msra.mxu0 0.0
    %2602 = vmatprep.subr.mxu0 0.0
    %2603 = vmatpush1.msra.mxu0 0.0
    %2604 = vmatprep.subr.mxu0 0.0
    %2605 = vmatpush1.msra.mxu0 0.0
    %2606 = vmatprep.subr.mxu0 0.0
    %2607 = vmatpush1.msra.mxu0 0.0
    %2608 = vmatprep.subr.mxu0 0.0
    %2609 = vmatpush1.msra.mxu0 0.0
    %2610 = vmatprep.subr.mxu0 0.0
    %2611 = vmatpush1.msra.mxu0 0.0
    %2612 = vmatprep.subr.mxu0 0.0
    %2613 = vmatpush1.msra.mxu0 0.0
    %2614 = vmatprep.subr.mxu0 0.0
    %2615 = vmatpush1.msra.mxu0 0.0
    %2616 = vmatprep.subr.mxu0 0.0
    %2617 = vmatpush1.msra.mxu0 0.0
    %2618 = vmatprep.subr.mxu0 0.0
    %2619 = vmatpush1.msra.mxu0 0.0
    %2620 = vmatprep.subr.mxu0 0.0
    %2621 = vmatpush1.msra.mxu0 0.0
    %2622 = vmatprep.subr.mxu0 0.0
    %2623 = vmatpush1.msra.mxu0 0.0
    %2624 = vmatprep.subr.mxu0 0.0
    %2625 = vmatpush1.msra.mxu0 0.0
    %2626 = vmatprep.subr.mxu0 0.0
    %2627 = vmatpush1.msra.mxu0 0.0
    %2628 = vmatprep.subr.mxu0 0.0
    %2629 = vmatpush1.msra.mxu0 %v2593
    %2630 = vmatprep.subr.mxu0 0.0
    %2631 = vmatpush2.msra.mxu0 0.0
    %2632 = vmatprep.subr.mxu0 0.0
    %2633 = vmatpush2.msra.mxu0 0.0
    %2634 = vmatprep.subr.mxu0 0.0
    %2635 = vmatpush2.msra.mxu0 0.0
    %2636 = vmatprep.subr.mxu0 0.0
    %2637 = vmatpush2.msra.mxu0 0.0
    %2638 = vmatprep.subr.mxu0 0.0
    %2639 = vmatpush2.msra.mxu0 0.0
    %2640 = vmatprep.subr.mxu0 0.0
    %2641 = vmatpush2.msra.mxu0 0.0
    %2642 = vmatprep.subr.mxu0 0.0
    %2643 = vmatpush2.msra.mxu0 0.0
    %2644 = vmatprep.subr.mxu0 0.0
    %2645 = vmatpush2.msra.mxu0 0.0
    %2646 = vmatprep.subr.mxu0 0.0
    %2647 = vmatpush2.msra.mxu0 0.0
    %2648 = vmatprep.subr.mxu0 0.0
    %2649 = vmatpush2.msra.mxu0 0.0
    %2650 = vmatprep.subr.mxu0 0.0
    %2651 = vmatpush2.msra.mxu0 0.0
    %2652 = vmatprep.subr.mxu0 0.0
    %2653 = vmatpush2.msra.mxu0 0.0
    %2654 = vmatprep.subr.mxu0 0.0
    %2655 = vmatpush2.msra.mxu0 0.0
    %2656 = vmatprep.subr.mxu0 0.0
    %2657 = vmatpush2.msra.mxu0 0.0
    %2658 = vmatprep.subr.mxu0 0.0
    %2659 = vmatpush2.msra.mxu0 0.0
    %2660 = vmatprep.subr.mxu0 0.0
    %2661 = vmatpush2.msra.mxu0 0.0
    %2662 = vmatprep.mubr.f32.mxu0 0.0
    %2663 = vmatmul.mubr.f32.gmra.mxu0 %v2596
    %v2664 = vpop.f32.mrf.mxu0
    %v2665 = vadd.f32 0.0, %v2664
    %v2666 = vpop.f32.mrf.mxu0
    %2667 = vdwg.mxu0
    %v2668 = vadd.f32 %v2585, %v2665
    %v2669 = vmul.f32 %v2431, %v1187
    %s2670 = scalar_lea.vmem %s7, 24
    %v2671 = vld [vmem:[%s2670] sm:$0xff]
    %2673 = vrot.lane.b32.xlu0 %v2669, 120
    %v2674 = vpop.permute.xlu0 %2673
    %v2677 = vsel %vm2441, %v2671, 0
    %2679 = vmatprep.subr.mxu0 0.0
    %2680 = vmatpush1.msra.mxu0 0.0
    %2681 = vmatprep.subr.mxu0 0.0
    %2682 = vmatpush1.msra.mxu0 0.0
    %2683 = vmatprep.subr.mxu0 0.0
    %2684 = vmatpush1.msra.mxu0 0.0
    %2685 = vmatprep.subr.mxu0 0.0
    %2686 = vmatpush1.msra.mxu0 0.0
    %2687 = vmatprep.subr.mxu0 0.0
    %2688 = vmatpush1.msra.mxu0 0.0
    %2689 = vmatprep.subr.mxu0 0.0
    %2690 = vmatpush1.msra.mxu0 0.0
    %2691 = vmatprep.subr.mxu0 0.0
    %2692 = vmatpush1.msra.mxu0 0.0
    %2693 = vmatprep.subr.mxu0 0.0
    %2694 = vmatpush1.msra.mxu0 0.0
    %2695 = vmatprep.subr.mxu0 0.0
    %2696 = vmatpush1.msra.mxu0 0.0
    %2697 = vmatprep.subr.mxu0 0.0
    %2698 = vmatpush1.msra.mxu0 0.0
    %2699 = vmatprep.subr.mxu0 0.0
    %2700 = vmatpush1.msra.mxu0 0.0
    %2701 = vmatprep.subr.mxu0 0.0
    %2702 = vmatpush1.msra.mxu0 0.0
    %2703 = vmatprep.subr.mxu0 0.0
    %2704 = vmatpush1.msra.mxu0 0.0
    %2705 = vmatprep.subr.mxu0 0.0
    %2706 = vmatpush1.msra.mxu0 0.0
    %2707 = vmatprep.subr.mxu0 0.0
    %2708 = vmatpush1.msra.mxu0 0.0
    %2709 = vmatprep.subr.mxu0 0.0
    %2710 = vmatpush1.msra.mxu0 %v2674
    %2711 = vmatprep.subr.mxu0 0.0
    %2712 = vmatpush2.msra.mxu0 0.0
    %2713 = vmatprep.subr.mxu0 0.0
    %2714 = vmatpush2.msra.mxu0 0.0
    %2715 = vmatprep.subr.mxu0 0.0
    %2716 = vmatpush2.msra.mxu0 0.0
    %2717 = vmatprep.subr.mxu0 0.0
    %2718 = vmatpush2.msra.mxu0 0.0
    %2719 = vmatprep.subr.mxu0 0.0
    %2720 = vmatpush2.msra.mxu0 0.0
    %2721 = vmatprep.subr.mxu0 0.0
    %2722 = vmatpush2.msra.mxu0 0.0
    %2723 = vmatprep.subr.mxu0 0.0
    %2724 = vmatpush2.msra.mxu0 0.0
    %2725 = vmatprep.subr.mxu0 0.0
    %2726 = vmatpush2.msra.mxu0 0.0
    %2727 = vmatprep.subr.mxu0 0.0
    %2728 = vmatpush2.msra.mxu0 0.0
    %2729 = vmatprep.subr.mxu0 0.0
    %2730 = vmatpush2.msra.mxu0 0.0
    %2731 = vmatprep.subr.mxu0 0.0
    %2732 = vmatpush2.msra.mxu0 0.0
    %2733 = vmatprep.subr.mxu0 0.0
    %2734 = vmatpush2.msra.mxu0 0.0
    %2735 = vmatprep.subr.mxu0 0.0
    %2736 = vmatpush2.msra.mxu0 0.0
    %2737 = vmatprep.subr.mxu0 0.0
    %2738 = vmatpush2.msra.mxu0 0.0
    %2739 = vmatprep.subr.mxu0 0.0
    %2740 = vmatpush2.msra.mxu0 0.0
    %2741 = vmatprep.subr.mxu0 0.0
    %2742 = vmatpush2.msra.mxu0 0.0
    %2743 = vmatprep.mubr.f32.mxu0 0.0
    %2744 = vmatmul.mubr.f32.gmra.mxu0 %v2677
    %v2745 = vpop.f32.mrf.mxu0
    %v2746 = vadd.f32 0.0, %v2745
    %v2747 = vpop.f32.mrf.mxu0
    %2748 = vdwg.mxu0
    %v2749 = vadd.f32 %v2668, %v2746
    %s2750 = scalar_lea.vmem %s7, 32
    %v2751 = vld [vmem:[%s2750] sm:$0xff]
    %2752 = vrot.lane.b32.xlu0 %v2431, 119
    %v2753 = vpop.permute.xlu0 %2752
    %v2756 = vsel %vm2441, %v2751, 0
    %2758 = vmatprep.subr.mxu0 0.0
    %2759 = vmatpush1.msra.mxu0 0.0
    %2760 = vmatprep.subr.mxu0 0.0
    %2761 = vmatpush1.msra.mxu0 0.0
    %2762 = vmatprep.subr.mxu0 0.0
    %2763 = vmatpush1.msra.mxu0 0.0
    %2764 = vmatprep.subr.mxu0 0.0
    %2765 = vmatpush1.msra.mxu0 0.0
    %2766 = vmatprep.subr.mxu0 0.0
    %2767 = vmatpush1.msra.mxu0 0.0
    %2768 = vmatprep.subr.mxu0 0.0
    %2769 = vmatpush1.msra.mxu0 0.0
    %2770 = vmatprep.subr.mxu0 0.0
    %2771 = vmatpush1.msra.mxu0 0.0
    %2772 = vmatprep.subr.mxu0 0.0
    %2773 = vmatpush1.msra.mxu0 0.0
    %2774 = vmatprep.subr.mxu0 0.0
    %2775 = vmatpush1.msra.mxu0 0.0
    %2776 = vmatprep.subr.mxu0 0.0
    %2777 = vmatpush1.msra.mxu0 0.0
    %2778 = vmatprep.subr.mxu0 0.0
    %2779 = vmatpush1.msra.mxu0 0.0
    %2780 = vmatprep.subr.mxu0 0.0
    %2781 = vmatpush1.msra.mxu0 0.0
    %2782 = vmatprep.subr.mxu0 0.0
    %2783 = vmatpush1.msra.mxu0 0.0
    %2784 = vmatprep.subr.mxu0 0.0
    %2785 = vmatpush1.msra.mxu0 0.0
    %2786 = vmatprep.subr.mxu0 0.0
    %2787 = vmatpush1.msra.mxu0 0.0
    %2788 = vmatprep.subr.mxu0 0.0
    %2789 = vmatpush1.msra.mxu0 %v2753
    %2790 = vmatprep.subr.mxu0 0.0
    %2791 = vmatpush2.msra.mxu0 0.0
    %2792 = vmatprep.subr.mxu0 0.0
    %2793 = vmatpush2.msra.mxu0 0.0
    %2794 = vmatprep.subr.mxu0 0.0
    %2795 = vmatpush2.msra.mxu0 0.0
    %2796 = vmatprep.subr.mxu0 0.0
    %2797 = vmatpush2.msra.mxu0 0.0
    %2798 = vmatprep.subr.mxu0 0.0
    %2799 = vmatpush2.msra.mxu0 0.0
    %2800 = vmatprep.subr.mxu0 0.0
    %2801 = vmatpush2.msra.mxu0 0.0
    %2802 = vmatprep.subr.mxu0 0.0
    %2803 = vmatpush2.msra.mxu0 0.0
    %2804 = vmatprep.subr.mxu0 0.0
    %2805 = vmatpush2.msra.mxu0 0.0
    %2806 = vmatprep.subr.mxu0 0.0
    %2807 = vmatpush2.msra.mxu0 0.0
    %2808 = vmatprep.subr.mxu0 0.0
    %2809 = vmatpush2.msra.mxu0 0.0
    %2810 = vmatprep.subr.mxu0 0.0
    %2811 = vmatpush2.msra.mxu0 0.0
    %2812 = vmatprep.subr.mxu0 0.0
    %2813 = vmatpush2.msra.mxu0 0.0
    %2814 = vmatprep.subr.mxu0 0.0
    %2815 = vmatpush2.msra.mxu0 0.0
    %2816 = vmatprep.subr.mxu0 0.0
    %2817 = vmatpush2.msra.mxu0 0.0
    %2818 = vmatprep.subr.mxu0 0.0
    %2819 = vmatpush2.msra.mxu0 0.0
    %2820 = vmatprep.subr.mxu0 0.0
    %2821 = vmatpush2.msra.mxu0 0.0
    %2822 = vmatprep.mubr.f32.mxu0 0.0
    %2823 = vmatmul.mubr.f32.gmra.mxu0 %v2756
    %v2824 = vpop.f32.mrf.mxu0
    %v2825 = vadd.f32 0.0, %v2824
    %v2826 = vpop.f32.mrf.mxu0
    %2827 = vdwg.mxu0
    %v2828 = vadd.f32 %v2749, %v2825
    %v2829 = vmul.f32 %v2431, %v1352
    %s2830 = scalar_lea.vmem %s7, 40
    %v2831 = vld [vmem:[%s2830] sm:$0xff]
    %2833 = vrot.lane.b32.xlu0 %v2829, 118
    %v2834 = vpop.permute.xlu0 %2833
    %v2837 = vsel %vm2441, %v2831, 0
    %2839 = vmatprep.subr.mxu0 0.0
    %2840 = vmatpush1.msra.mxu0 0.0
    %2841 = vmatprep.subr.mxu0 0.0
    %2842 = vmatpush1.msra.mxu0 0.0
    %2843 = vmatprep.subr.mxu0 0.0
    %2844 = vmatpush1.msra.mxu0 0.0
    %2845 = vmatprep.subr.mxu0 0.0
    %2846 = vmatpush1.msra.mxu0 0.0
    %2847 = vmatprep.subr.mxu0 0.0
    %2848 = vmatpush1.msra.mxu0 0.0
    %2849 = vmatprep.subr.mxu0 0.0
    %2850 = vmatpush1.msra.mxu0 0.0
    %2851 = vmatprep.subr.mxu0 0.0
    %2852 = vmatpush1.msra.mxu0 0.0
    %2853 = vmatprep.subr.mxu0 0.0
    %2854 = vmatpush1.msra.mxu0 0.0
    %2855 = vmatprep.subr.mxu0 0.0
    %2856 = vmatpush1.msra.mxu0 0.0
    %2857 = vmatprep.subr.mxu0 0.0
    %2858 = vmatpush1.msra.mxu0 0.0
    %2859 = vmatprep.subr.mxu0 0.0
    %2860 = vmatpush1.msra.mxu0 0.0
    %2861 = vmatprep.subr.mxu0 0.0
    %2862 = vmatpush1.msra.mxu0 0.0
    %2863 = vmatprep.subr.mxu0 0.0
    %2864 = vmatpush1.msra.mxu0 0.0
    %2865 = vmatprep.subr.mxu0 0.0
    %2866 = vmatpush1.msra.mxu0 0.0
    %2867 = vmatprep.subr.mxu0 0.0
    %2868 = vmatpush1.msra.mxu0 0.0
    %2869 = vmatprep.subr.mxu0 0.0
    %2870 = vmatpush1.msra.mxu0 %v2834
    %2871 = vmatprep.subr.mxu0 0.0
    %2872 = vmatpush2.msra.mxu0 0.0
    %2873 = vmatprep.subr.mxu0 0.0
    %2874 = vmatpush2.msra.mxu0 0.0
    %2875 = vmatprep.subr.mxu0 0.0
    %2876 = vmatpush2.msra.mxu0 0.0
    %2877 = vmatprep.subr.mxu0 0.0
    %2878 = vmatpush2.msra.mxu0 0.0
    %2879 = vmatprep.subr.mxu0 0.0
    %2880 = vmatpush2.msra.mxu0 0.0
    %2881 = vmatprep.subr.mxu0 0.0
    %2882 = vmatpush2.msra.mxu0 0.0
    %2883 = vmatprep.subr.mxu0 0.0
    %2884 = vmatpush2.msra.mxu0 0.0
    %2885 = vmatprep.subr.mxu0 0.0
    %2886 = vmatpush2.msra.mxu0 0.0
    %2887 = vmatprep.subr.mxu0 0.0
    %2888 = vmatpush2.msra.mxu0 0.0
    %2889 = vmatprep.subr.mxu0 0.0
    %2890 = vmatpush2.msra.mxu0 0.0
    %2891 = vmatprep.subr.mxu0 0.0
    %2892 = vmatpush2.msra.mxu0 0.0
    %2893 = vmatprep.subr.mxu0 0.0
    %2894 = vmatpush2.msra.mxu0 0.0
    %2895 = vmatprep.subr.mxu0 0.0
    %2896 = vmatpush2.msra.mxu0 0.0
    %2897 = vmatprep.subr.mxu0 0.0
    %2898 = vmatpush2.msra.mxu0 0.0
    %2899 = vmatprep.subr.mxu0 0.0
    %2900 = vmatpush2.msra.mxu0 0.0
    %2901 = vmatprep.subr.mxu0 0.0
    %2902 = vmatpush2.msra.mxu0 0.0
    %2903 = vmatprep.mubr.f32.mxu0 0.0
    %2904 = vmatmul.mubr.f32.gmra.mxu0 %v2837
    %v2905 = vpop.f32.mrf.mxu0
    %v2906 = vadd.f32 0.0, %v2905
    %v2907 = vpop.f32.mrf.mxu0
    %2908 = vdwg.mxu0
    %v2909 = vadd.f32 %v2828, %v2906
    %v2910 = vmul.f32 %v2431, %v1437
    %s2911 = scalar_lea.vmem %s7, 48
    %v2912 = vld [vmem:[%s2911] sm:$0xff]
    %2914 = vrot.lane.b32.xlu0 %v2910, 112
    %v2915 = vpop.permute.xlu0 %2914
    %v2918 = vsel %vm2441, %v2912, 0
    %2920 = vmatprep.subr.mxu0 0.0
    %2921 = vmatpush1.msra.mxu0 0.0
    %2922 = vmatprep.subr.mxu0 0.0
    %2923 = vmatpush1.msra.mxu0 0.0
    %2924 = vmatprep.subr.mxu0 0.0
    %2925 = vmatpush1.msra.mxu0 0.0
    %2926 = vmatprep.subr.mxu0 0.0
    %2927 = vmatpush1.msra.mxu0 0.0
    %2928 = vmatprep.subr.mxu0 0.0
    %2929 = vmatpush1.msra.mxu0 0.0
    %2930 = vmatprep.subr.mxu0 0.0
    %2931 = vmatpush1.msra.mxu0 0.0
    %2932 = vmatprep.subr.mxu0 0.0
    %2933 = vmatpush1.msra.mxu0 0.0
    %2934 = vmatprep.subr.mxu0 0.0
    %2935 = vmatpush1.msra.mxu0 0.0
    %2936 = vmatprep.subr.mxu0 0.0
    %2937 = vmatpush1.msra.mxu0 0.0
    %2938 = vmatprep.subr.mxu0 0.0
    %2939 = vmatpush1.msra.mxu0 0.0
    %2940 = vmatprep.subr.mxu0 0.0
    %2941 = vmatpush1.msra.mxu0 0.0
    %2942 = vmatprep.subr.mxu0 0.0
    %2943 = vmatpush1.msra.mxu0 0.0
    %2944 = vmatprep.subr.mxu0 0.0
    %2945 = vmatpush1.msra.mxu0 0.0
    %2946 = vmatprep.subr.mxu0 0.0
    %2947 = vmatpush1.msra.mxu0 0.0
    %2948 = vmatprep.subr.mxu0 0.0
    %2949 = vmatpush1.msra.mxu0 0.0
    %2950 = vmatprep.subr.mxu0 0.0
    %2951 = vmatpush1.msra.mxu0 %v2915
    %2952 = vmatprep.subr.mxu0 0.0
    %2953 = vmatpush2.msra.mxu0 0.0
    %2954 = vmatprep.subr.mxu0 0.0
    %2955 = vmatpush2.msra.mxu0 0.0
    %2956 = vmatprep.subr.mxu0 0.0
    %2957 = vmatpush2.msra.mxu0 0.0
    %2958 = vmatprep.subr.mxu0 0.0
    %2959 = vmatpush2.msra.mxu0 0.0
    %2960 = vmatprep.subr.mxu0 0.0
    %2961 = vmatpush2.msra.mxu0 0.0
    %2962 = vmatprep.subr.mxu0 0.0
    %2963 = vmatpush2.msra.mxu0 0.0
    %2964 = vmatprep.subr.mxu0 0.0
    %2965 = vmatpush2.msra.mxu0 0.0
    %2966 = vmatprep.subr.mxu0 0.0
    %2967 = vmatpush2.msra.mxu0 0.0
    %2968 = vmatprep.subr.mxu0 0.0
    %2969 = vmatpush2.msra.mxu0 0.0
    %2970 = vmatprep.subr.mxu0 0.0
    %2971 = vmatpush2.msra.mxu0 0.0
    %2972 = vmatprep.subr.mxu0 0.0
    %2973 = vmatpush2.msra.mxu0 0.0
    %2974 = vmatprep.subr.mxu0 0.0
    %2975 = vmatpush2.msra.mxu0 0.0
    %2976 = vmatprep.subr.mxu0 0.0
    %2977 = vmatpush2.msra.mxu0 0.0
    %2978 = vmatprep.subr.mxu0 0.0
    %2979 = vmatpush2.msra.mxu0 0.0
    %2980 = vmatprep.subr.mxu0 0.0
    %2981 = vmatpush2.msra.mxu0 0.0
    %2982 = vmatprep.subr.mxu0 0.0
    %2983 = vmatpush2.msra.mxu0 0.0
    %2984 = vmatprep.mubr.f32.mxu0 0.0
    %2985 = vmatmul.mubr.f32.gmra.mxu0 %v2918
    %v2986 = vpop.f32.mrf.mxu0
    %v2987 = vadd.f32 0.0, %v2986
    %v2988 = vpop.f32.mrf.mxu0
    %2989 = vdwg.mxu0
    %v2990 = vadd.f32 %v2909, %v2987
    %s2991 = scalar_lea.vmem %s7, 56
    %v2992 = vld [vmem:[%s2991] sm:$0xff]
    %2993 = vrot.lane.b32.xlu0 %v2431, 111
    %v2994 = vpop.permute.xlu0 %2993
    %v2997 = vsel %vm2441, %v2992, 0
    %2999 = vmatprep.subr.mxu0 0.0
    %3000 = vmatpush1.msra.mxu0 0.0
    %3001 = vmatprep.subr.mxu0 0.0
    %3002 = vmatpush1.msra.mxu0 0.0
    %3003 = vmatprep.subr.mxu0 0.0
    %3004 = vmatpush1.msra.mxu0 0.0
    %3005 = vmatprep.subr.mxu0 0.0
    %3006 = vmatpush1.msra.mxu0 0.0
    %3007 = vmatprep.subr.mxu0 0.0
    %3008 = vmatpush1.msra.mxu0 0.0
    %3009 = vmatprep.subr.mxu0 0.0
    %3010 = vmatpush1.msra.mxu0 0.0
    %3011 = vmatprep.subr.mxu0 0.0
    %3012 = vmatpush1.msra.mxu0 0.0
    %3013 = vmatprep.subr.mxu0 0.0
    %3014 = vmatpush1.msra.mxu0 0.0
    %3015 = vmatprep.subr.mxu0 0.0
    %3016 = vmatpush1.msra.mxu0 0.0
    %3017 = vmatprep.subr.mxu0 0.0
    %3018 = vmatpush1.msra.mxu0 0.0
    %3019 = vmatprep.subr.mxu0 0.0
    %3020 = vmatpush1.msra.mxu0 0.0
    %3021 = vmatprep.subr.mxu0 0.0
    %3022 = vmatpush1.msra.mxu0 0.0
    %3023 = vmatprep.subr.mxu0 0.0
    %3024 = vmatpush1.msra.mxu0 0.0
    %3025 = vmatprep.subr.mxu0 0.0
    %3026 = vmatpush1.msra.mxu0 0.0
    %3027 = vmatprep.subr.mxu0 0.0
    %3028 = vmatpush1.msra.mxu0 0.0
    %3029 = vmatprep.subr.mxu0 0.0
    %3030 = vmatpush1.msra.mxu0 %v2994
    %3031 = vmatprep.subr.mxu0 0.0
    %3032 = vmatpush2.msra.mxu0 0.0
    %3033 = vmatprep.subr.mxu0 0.0
    %3034 = vmatpush2.msra.mxu0 0.0
    %3035 = vmatprep.subr.mxu0 0.0
    %3036 = vmatpush2.msra.mxu0 0.0
    %3037 = vmatprep.subr.mxu0 0.0
    %3038 = vmatpush2.msra.mxu0 0.0
    %3039 = vmatprep.subr.mxu0 0.0
    %3040 = vmatpush2.msra.mxu0 0.0
    %3041 = vmatprep.subr.mxu0 0.0
    %3042 = vmatpush2.msra.mxu0 0.0
    %3043 = vmatprep.subr.mxu0 0.0
    %3044 = vmatpush2.msra.mxu0 0.0
    %3045 = vmatprep.subr.mxu0 0.0
    %3046 = vmatpush2.msra.mxu0 0.0
    %3047 = vmatprep.subr.mxu0 0.0
    %3048 = vmatpush2.msra.mxu0 0.0
    %3049 = vmatprep.subr.mxu0 0.0
    %3050 = vmatpush2.msra.mxu0 0.0
    %3051 = vmatprep.subr.mxu0 0.0
    %3052 = vmatpush2.msra.mxu0 0.0
    %3053 = vmatprep.subr.mxu0 0.0
    %3054 = vmatpush2.msra.mxu0 0.0
    %3055 = vmatprep.subr.mxu0 0.0
    %3056 = vmatpush2.msra.mxu0 0.0
    %3057 = vmatprep.subr.mxu0 0.0
    %3058 = vmatpush2.msra.mxu0 0.0
    %3059 = vmatprep.subr.mxu0 0.0
    %3060 = vmatpush2.msra.mxu0 0.0
    %3061 = vmatprep.subr.mxu0 0.0
    %3062 = vmatpush2.msra.mxu0 0.0
    %3063 = vmatprep.mubr.f32.mxu0 0.0
    %3064 = vmatmul.mubr.f32.gmra.mxu0 %v2997
    %v3065 = vpop.f32.mrf.mxu0
    %v3066 = vadd.f32 0.0, %v3065
    %v3067 = vpop.f32.mrf.mxu0
    %3068 = vdwg.mxu0
    %v3069 = vadd.f32 %v2990, %v3066
    %v3070 = vmul.f32 %v2431, %v1602
    %s3071 = scalar_lea.vmem %s7, 64
    %v3072 = vld [vmem:[%s3071] sm:$0xff]
    %3074 = vrot.lane.b32.xlu0 %v3070, 110
    %v3075 = vpop.permute.xlu0 %3074
    %v3078 = vsel %vm2441, %v3072, 0
    %3080 = vmatprep.subr.mxu0 0.0
    %3081 = vmatpush1.msra.mxu0 0.0
    %3082 = vmatprep.subr.mxu0 0.0
    %3083 = vmatpush1.msra.mxu0 0.0
    %3084 = vmatprep.subr.mxu0 0.0
    %3085 = vmatpush1.msra.mxu0 0.0
    %3086 = vmatprep.subr.mxu0 0.0
    %3087 = vmatpush1.msra.mxu0 0.0
    %3088 = vmatprep.subr.mxu0 0.0
    %3089 = vmatpush1.msra.mxu0 0.0
    %3090 = vmatprep.subr.mxu0 0.0
    %3091 = vmatpush1.msra.mxu0 0.0
    %3092 = vmatprep.subr.mxu0 0.0
    %3093 = vmatpush1.msra.mxu0 0.0
    %3094 = vmatprep.subr.mxu0 0.0
    %3095 = vmatpush1.msra.mxu0 0.0
    %3096 = vmatprep.subr.mxu0 0.0
    %3097 = vmatpush1.msra.mxu0 0.0
    %3098 = vmatprep.subr.mxu0 0.0
    %3099 = vmatpush1.msra.mxu0 0.0
    %3100 = vmatprep.subr.mxu0 0.0
    %3101 = vmatpush1.msra.mxu0 0.0
    %3102 = vmatprep.subr.mxu0 0.0
    %3103 = vmatpush1.msra.mxu0 0.0
    %3104 = vmatprep.subr.mxu0 0.0
    %3105 = vmatpush1.msra.mxu0 0.0
    %3106 = vmatprep.subr.mxu0 0.0
    %3107 = vmatpush1.msra.mxu0 0.0
    %3108 = vmatprep.subr.mxu0 0.0
    %3109 = vmatpush1.msra.mxu0 0.0
    %3110 = vmatprep.subr.mxu0 0.0
    %3111 = vmatpush1.msra.mxu0 %v3075
    %3112 = vmatprep.subr.mxu0 0.0
    %3113 = vmatpush2.msra.mxu0 0.0
    %3114 = vmatprep.subr.mxu0 0.0
    %3115 = vmatpush2.msra.mxu0 0.0
    %3116 = vmatprep.subr.mxu0 0.0
    %3117 = vmatpush2.msra.mxu0 0.0
    %3118 = vmatprep.subr.mxu0 0.0
    %3119 = vmatpush2.msra.mxu0 0.0
    %3120 = vmatprep.subr.mxu0 0.0
    %3121 = vmatpush2.msra.mxu0 0.0
    %3122 = vmatprep.subr.mxu0 0.0
    %3123 = vmatpush2.msra.mxu0 0.0
    %3124 = vmatprep.subr.mxu0 0.0
    %3125 = vmatpush2.msra.mxu0 0.0
    %3126 = vmatprep.subr.mxu0 0.0
    %3127 = vmatpush2.msra.mxu0 0.0
    %3128 = vmatprep.subr.mxu0 0.0
    %3129 = vmatpush2.msra.mxu0 0.0
    %3130 = vmatprep.subr.mxu0 0.0
    %3131 = vmatpush2.msra.mxu0 0.0
    %3132 = vmatprep.subr.mxu0 0.0
    %3133 = vmatpush2.msra.mxu0 0.0
    %3134 = vmatprep.subr.mxu0 0.0
    %3135 = vmatpush2.msra.mxu0 0.0
    %3136 = vmatprep.subr.mxu0 0.0
    %3137 = vmatpush2.msra.mxu0 0.0
    %3138 = vmatprep.subr.mxu0 0.0
    %3139 = vmatpush2.msra.mxu0 0.0
    %3140 = vmatprep.subr.mxu0 0.0
    %3141 = vmatpush2.msra.mxu0 0.0
    %3142 = vmatprep.subr.mxu0 0.0
    %3143 = vmatpush2.msra.mxu0 0.0
    %3144 = vmatprep.mubr.f32.mxu0 0.0
    %3145 = vmatmul.mubr.f32.gmra.mxu0 %v3078
    %v3146 = vpop.f32.mrf.mxu0
    %v3147 = vadd.f32 0.0, %v3146
    %v3148 = vpop.f32.mrf.mxu0
    %3149 = vdwg.mxu0
    %v3150 = vadd.f32 %v3069, %v3147
    %3152 = vset.pattern.permute.xlu0 0
    %3153 = vperm.xlu0 %3152, %v2432
    %v3154 = vpop.permute.xlu0 %3153
    %v3156 = vadd.f32 %v3150, %v3154
    %3158 = vrot.lane.b32.xlu0 %v2423, 9
    %v3159 = vpop.permute.xlu0 %3158
    %v3161 = vsel %vm2428, 0.0, %v3159
    %v3162 = vsel %vm2430, %v3161, 0.0
    %v3163 = vmul.f32 %v3162, %v934
    %3165 = vrot.lane.b32.xlu0 %v3162, 127
    %v3166 = vpop.permute.xlu0 %3165
    %3168 = vmatprep.subr.mxu0 0.0
    %3169 = vmatpush1.msra.mxu0 0.0
    %3170 = vmatprep.subr.mxu0 0.0
    %3171 = vmatpush1.msra.mxu0 0.0
    %3172 = vmatprep.subr.mxu0 0.0
    %3173 = vmatpush1.msra.mxu0 0.0
    %3174 = vmatprep.subr.mxu0 0.0
    %3175 = vmatpush1.msra.mxu0 0.0
    %3176 = vmatprep.subr.mxu0 0.0
    %3177 = vmatpush1.msra.mxu0 0.0
    %3178 = vmatprep.subr.mxu0 0.0
    %3179 = vmatpush1.msra.mxu0 0.0
    %3180 = vmatprep.subr.mxu0 0.0
    %3181 = vmatpush1.msra.mxu0 0.0
    %3182 = vmatprep.subr.mxu0 0.0
    %3183 = vmatpush1.msra.mxu0 0.0
    %3184 = vmatprep.subr.mxu0 0.0
    %3185 = vmatpush1.msra.mxu0 0.0
    %3186 = vmatprep.subr.mxu0 0.0
    %3187 = vmatpush1.msra.mxu0 0.0
    %3188 = vmatprep.subr.mxu0 0.0
    %3189 = vmatpush1.msra.mxu0 0.0
    %3190 = vmatprep.subr.mxu0 0.0
    %3191 = vmatpush1.msra.mxu0 0.0
    %3192 = vmatprep.subr.mxu0 0.0
    %3193 = vmatpush1.msra.mxu0 0.0
    %3194 = vmatprep.subr.mxu0 0.0
    %3195 = vmatpush1.msra.mxu0 0.0
    %3196 = vmatprep.subr.mxu0 0.0
    %3197 = vmatpush1.msra.mxu0 0.0
    %3198 = vmatprep.subr.mxu0 0.0
    %3199 = vmatpush1.msra.mxu0 %v3166
    %3200 = vmatprep.subr.mxu0 0.0
    %3201 = vmatpush2.msra.mxu0 0.0
    %3202 = vmatprep.subr.mxu0 0.0
    %3203 = vmatpush2.msra.mxu0 0.0
    %3204 = vmatprep.subr.mxu0 0.0
    %3205 = vmatpush2.msra.mxu0 0.0
    %3206 = vmatprep.subr.mxu0 0.0
    %3207 = vmatpush2.msra.mxu0 0.0
    %3208 = vmatprep.subr.mxu0 0.0
    %3209 = vmatpush2.msra.mxu0 0.0
    %3210 = vmatprep.subr.mxu0 0.0
    %3211 = vmatpush2.msra.mxu0 0.0
    %3212 = vmatprep.subr.mxu0 0.0
    %3213 = vmatpush2.msra.mxu0 0.0
    %3214 = vmatprep.subr.mxu0 0.0
    %3215 = vmatpush2.msra.mxu0 0.0
    %3216 = vmatprep.subr.mxu0 0.0
    %3217 = vmatpush2.msra.mxu0 0.0
    %3218 = vmatprep.subr.mxu0 0.0
    %3219 = vmatpush2.msra.mxu0 0.0
    %3220 = vmatprep.subr.mxu0 0.0
    %3221 = vmatpush2.msra.mxu0 0.0
    %3222 = vmatprep.subr.mxu0 0.0
    %3223 = vmatpush2.msra.mxu0 0.0
    %3224 = vmatprep.subr.mxu0 0.0
    %3225 = vmatpush2.msra.mxu0 0.0
    %3226 = vmatprep.subr.mxu0 0.0
    %3227 = vmatpush2.msra.mxu0 0.0
    %3228 = vmatprep.subr.mxu0 0.0
    %3229 = vmatpush2.msra.mxu0 0.0
    %3230 = vmatprep.subr.mxu0 0.0
    %3231 = vmatpush2.msra.mxu0 0.0
    %3232 = vmatprep.mubr.f32.mxu0 0.0
    %3233 = vmatmul.mubr.f32.gmra.mxu0 %v2443
    %v3234 = vpop.f32.mrf.mxu0
    %v3235 = vadd.f32 0.0, %v3234
    %v3236 = vpop.f32.mrf.mxu0
    %3237 = vdwg.mxu0
    %3238 = vmatprep.subr.mxu0 0.0
    %3239 = vmatpush1.msra.mxu0 0.0
    %3240 = vmatprep.subr.mxu0 0.0
    %3241 = vmatpush1.msra.mxu0 0.0
    %3242 = vmatprep.subr.mxu0 0.0
    %3243 = vmatpush1.msra.mxu0 0.0
    %3244 = vmatprep.subr.mxu0 0.0
    %3245 = vmatpush1.msra.mxu0 0.0
    %3246 = vmatprep.subr.mxu0 0.0
    %3247 = vmatpush1.msra.mxu0 0.0
    %3248 = vmatprep.subr.mxu0 0.0
    %3249 = vmatpush1.msra.mxu0 0.0
    %3250 = vmatprep.subr.mxu0 0.0
    %3251 = vmatpush1.msra.mxu0 0.0
    %3252 = vmatprep.subr.mxu0 0.0
    %3253 = vmatpush1.msra.mxu0 0.0
    %3254 = vmatprep.subr.mxu0 0.0
    %3255 = vmatpush1.msra.mxu0 0.0
    %3256 = vmatprep.subr.mxu0 0.0
    %3257 = vmatpush1.msra.mxu0 0.0
    %3258 = vmatprep.subr.mxu0 0.0
    %3259 = vmatpush1.msra.mxu0 0.0
    %3260 = vmatprep.subr.mxu0 0.0
    %3261 = vmatpush1.msra.mxu0 0.0
    %3262 = vmatprep.subr.mxu0 0.0
    %3263 = vmatpush1.msra.mxu0 0.0
    %3264 = vmatprep.subr.mxu0 0.0
    %3265 = vmatpush1.msra.mxu0 0.0
    %3266 = vmatprep.subr.mxu0 0.0
    %3267 = vmatpush1.msra.mxu0 0.0
    %3268 = vmatprep.subr.mxu0 0.0
    %3269 = vmatpush1.msra.mxu0 %v3163
    %3270 = vmatprep.subr.mxu0 0.0
    %3271 = vmatpush2.msra.mxu0 0.0
    %3272 = vmatprep.subr.mxu0 0.0
    %3273 = vmatpush2.msra.mxu0 0.0
    %3274 = vmatprep.subr.mxu0 0.0
    %3275 = vmatpush2.msra.mxu0 0.0
    %3276 = vmatprep.subr.mxu0 0.0
    %3277 = vmatpush2.msra.mxu0 0.0
    %3278 = vmatprep.subr.mxu0 0.0
    %3279 = vmatpush2.msra.mxu0 0.0
    %3280 = vmatprep.subr.mxu0 0.0
    %3281 = vmatpush2.msra.mxu0 0.0
    %3282 = vmatprep.subr.mxu0 0.0
    %3283 = vmatpush2.msra.mxu0 0.0
    %3284 = vmatprep.subr.mxu0 0.0
    %3285 = vmatpush2.msra.mxu0 0.0
    %3286 = vmatprep.subr.mxu0 0.0
    %3287 = vmatpush2.msra.mxu0 0.0
    %3288 = vmatprep.subr.mxu0 0.0
    %3289 = vmatpush2.msra.mxu0 0.0
    %3290 = vmatprep.subr.mxu0 0.0
    %3291 = vmatpush2.msra.mxu0 0.0
    %3292 = vmatprep.subr.mxu0 0.0
    %3293 = vmatpush2.msra.mxu0 0.0
    %3294 = vmatprep.subr.mxu0 0.0
    %3295 = vmatpush2.msra.mxu0 0.0
    %3296 = vmatprep.subr.mxu0 0.0
    %3297 = vmatpush2.msra.mxu0 0.0
    %3298 = vmatprep.subr.mxu0 0.0
    %3299 = vmatpush2.msra.mxu0 0.0
    %3300 = vmatprep.subr.mxu0 0.0
    %3301 = vmatpush2.msra.mxu0 0.0
    %3302 = vmatprep.mubr.f32.mxu0 0.0
    %3303 = vmatmul.mubr.f32.gmra.mxu0 %v2516
    %v3304 = vpop.f32.mrf.mxu0
    %v3305 = vadd.f32 %v3235, %v3304
    %v3306 = vpop.f32.mrf.mxu0
    %3307 = vdwg.mxu0
    %v3308 = vmul.f32 %v3162, %v1102
    %3310 = vrot.lane.b32.xlu0 %v3308, 126
    %v3311 = vpop.permute.xlu0 %3310
    %3313 = vmatprep.subr.mxu0 0.0
    %3314 = vmatpush1.msra.mxu0 0.0
    %3315 = vmatprep.subr.mxu0 0.0
    %3316 = vmatpush1.msra.mxu0 0.0
    %3317 = vmatprep.subr.mxu0 0.0
    %3318 = vmatpush1.msra.mxu0 0.0
    %3319 = vmatprep.subr.mxu0 0.0
    %3320 = vmatpush1.msra.mxu0 0.0
    %3321 = vmatprep.subr.mxu0 0.0
    %3322 = vmatpush1.msra.mxu0 0.0
    %3323 = vmatprep.subr.mxu0 0.0
    %3324 = vmatpush1.msra.mxu0 0.0
    %3325 = vmatprep.subr.mxu0 0.0
    %3326 = vmatpush1.msra.mxu0 0.0
    %3327 = vmatprep.subr.mxu0 0.0
    %3328 = vmatpush1.msra.mxu0 0.0
    %3329 = vmatprep.subr.mxu0 0.0
    %3330 = vmatpush1.msra.mxu0 0.0
    %3331 = vmatprep.subr.mxu0 0.0
    %3332 = vmatpush1.msra.mxu0 0.0
    %3333 = vmatprep.subr.mxu0 0.0
    %3334 = vmatpush1.msra.mxu0 0.0
    %3335 = vmatprep.subr.mxu0 0.0
    %3336 = vmatpush1.msra.mxu0 0.0
    %3337 = vmatprep.subr.mxu0 0.0
    %3338 = vmatpush1.msra.mxu0 0.0
    %3339 = vmatprep.subr.mxu0 0.0
    %3340 = vmatpush1.msra.mxu0 0.0
    %3341 = vmatprep.subr.mxu0 0.0
    %3342 = vmatpush1.msra.mxu0 0.0
    %3343 = vmatprep.subr.mxu0 0.0
    %3344 = vmatpush1.msra.mxu0 %v3311
    %3345 = vmatprep.subr.mxu0 0.0
    %3346 = vmatpush2.msra.mxu0 0.0
    %3347 = vmatprep.subr.mxu0 0.0
    %3348 = vmatpush2.msra.mxu0 0.0
    %3349 = vmatprep.subr.mxu0 0.0
    %3350 = vmatpush2.msra.mxu0 0.0
    %3351 = vmatprep.subr.mxu0 0.0
    %3352 = vmatpush2.msra.mxu0 0.0
    %3353 = vmatprep.subr.mxu0 0.0
    %3354 = vmatpush2.msra.mxu0 0.0
    %3355 = vmatprep.subr.mxu0 0.0
    %3356 = vmatpush2.msra.mxu0 0.0
    %3357 = vmatprep.subr.mxu0 0.0
    %3358 = vmatpush2.msra.mxu0 0.0
    %3359 = vmatprep.subr.mxu0 0.0
    %3360 = vmatpush2.msra.mxu0 0.0
    %3361 = vmatprep.subr.mxu0 0.0
    %3362 = vmatpush2.msra.mxu0 0.0
    %3363 = vmatprep.subr.mxu0 0.0
    %3364 = vmatpush2.msra.mxu0 0.0
    %3365 = vmatprep.subr.mxu0 0.0
    %3366 = vmatpush2.msra.mxu0 0.0
    %3367 = vmatprep.subr.mxu0 0.0
    %3368 = vmatpush2.msra.mxu0 0.0
    %3369 = vmatprep.subr.mxu0 0.0
    %3370 = vmatpush2.msra.mxu0 0.0
    %3371 = vmatprep.subr.mxu0 0.0
    %3372 = vmatpush2.msra.mxu0 0.0
    %3373 = vmatprep.subr.mxu0 0.0
    %3374 = vmatpush2.msra.mxu0 0.0
    %3375 = vmatprep.subr.mxu0 0.0
    %3376 = vmatpush2.msra.mxu0 0.0
    %3377 = vmatprep.mubr.f32.mxu0 0.0
    %3378 = vmatmul.mubr.f32.gmra.mxu0 %v2596
    %v3379 = vpop.f32.mrf.mxu0
    %v3380 = vadd.f32 0.0, %v3379
    %v3381 = vpop.f32.mrf.mxu0
    %3382 = vdwg.mxu0
    %v3383 = vadd.f32 %v3305, %v3380
    %v3384 = vmul.f32 %v3162, %v1187
    %3386 = vrot.lane.b32.xlu0 %v3384, 120
    %v3387 = vpop.permute.xlu0 %3386
    %3389 = vmatprep.subr.mxu0 0.0
    %3390 = vmatpush1.msra.mxu0 0.0
    %3391 = vmatprep.subr.mxu0 0.0
    %3392 = vmatpush1.msra.mxu0 0.0
    %3393 = vmatprep.subr.mxu0 0.0
    %3394 = vmatpush1.msra.mxu0 0.0
    %3395 = vmatprep.subr.mxu0 0.0
    %3396 = vmatpush1.msra.mxu0 0.0
    %3397 = vmatprep.subr.mxu0 0.0
    %3398 = vmatpush1.msra.mxu0 0.0
    %3399 = vmatprep.subr.mxu0 0.0
    %3400 = vmatpush1.msra.mxu0 0.0
    %3401 = vmatprep.subr.mxu0 0.0
    %3402 = vmatpush1.msra.mxu0 0.0
    %3403 = vmatprep.subr.mxu0 0.0
    %3404 = vmatpush1.msra.mxu0 0.0
    %3405 = vmatprep.subr.mxu0 0.0
    %3406 = vmatpush1.msra.mxu0 0.0
    %3407 = vmatprep.subr.mxu0 0.0
    %3408 = vmatpush1.msra.mxu0 0.0
    %3409 = vmatprep.subr.mxu0 0.0
    %3410 = vmatpush1.msra.mxu0 0.0
    %3411 = vmatprep.subr.mxu0 0.0
    %3412 = vmatpush1.msra.mxu0 0.0
    %3413 = vmatprep.subr.mxu0 0.0
    %3414 = vmatpush1.msra.mxu0 0.0
    %3415 = vmatprep.subr.mxu0 0.0
    %3416 = vmatpush1.msra.mxu0 0.0
    %3417 = vmatprep.subr.mxu0 0.0
    %3418 = vmatpush1.msra.mxu0 0.0
    %3419 = vmatprep.subr.mxu0 0.0
    %3420 = vmatpush1.msra.mxu0 %v3387
    %3421 = vmatprep.subr.mxu0 0.0
    %3422 = vmatpush2.msra.mxu0 0.0
    %3423 = vmatprep.subr.mxu0 0.0
    %3424 = vmatpush2.msra.mxu0 0.0
    %3425 = vmatprep.subr.mxu0 0.0
    %3426 = vmatpush2.msra.mxu0 0.0
    %3427 = vmatprep.subr.mxu0 0.0
    %3428 = vmatpush2.msra.mxu0 0.0
    %3429 = vmatprep.subr.mxu0 0.0
    %3430 = vmatpush2.msra.mxu0 0.0
    %3431 = vmatprep.subr.mxu0 0.0
    %3432 = vmatpush2.msra.mxu0 0.0
    %3433 = vmatprep.subr.mxu0 0.0
    %3434 = vmatpush2.msra.mxu0 0.0
    %3435 = vmatprep.subr.mxu0 0.0
    %3436 = vmatpush2.msra.mxu0 0.0
    %3437 = vmatprep.subr.mxu0 0.0
    %3438 = vmatpush2.msra.mxu0 0.0
    %3439 = vmatprep.subr.mxu0 0.0
    %3440 = vmatpush2.msra.mxu0 0.0
    %3441 = vmatprep.subr.mxu0 0.0
    %3442 = vmatpush2.msra.mxu0 0.0
    %3443 = vmatprep.subr.mxu0 0.0
    %3444 = vmatpush2.msra.mxu0 0.0
    %3445 = vmatprep.subr.mxu0 0.0
    %3446 = vmatpush2.msra.mxu0 0.0
    %3447 = vmatprep.subr.mxu0 0.0
    %3448 = vmatpush2.msra.mxu0 0.0
    %3449 = vmatprep.subr.mxu0 0.0
    %3450 = vmatpush2.msra.mxu0 0.0
    %3451 = vmatprep.subr.mxu0 0.0
    %3452 = vmatpush2.msra.mxu0 0.0
    %3453 = vmatprep.mubr.f32.mxu0 0.0
    %3454 = vmatmul.mubr.f32.gmra.mxu0 %v2677
    %v3455 = vpop.f32.mrf.mxu0
    %v3456 = vadd.f32 0.0, %v3455
    %v3457 = vpop.f32.mrf.mxu0
    %3458 = vdwg.mxu0
    %v3459 = vadd.f32 %v3383, %v3456
    %3460 = vrot.lane.b32.xlu0 %v3162, 119
    %v3461 = vpop.permute.xlu0 %3460
    %3463 = vmatprep.subr.mxu0 0.0
    %3464 = vmatpush1.msra.mxu0 0.0
    %3465 = vmatprep.subr.mxu0 0.0
    %3466 = vmatpush1.msra.mxu0 0.0
    %3467 = vmatprep.subr.mxu0 0.0
    %3468 = vmatpush1.msra.mxu0 0.0
    %3469 = vmatprep.subr.mxu0 0.0
    %3470 = vmatpush1.msra.mxu0 0.0
    %3471 = vmatprep.subr.mxu0 0.0
    %3472 = vmatpush1.msra.mxu0 0.0
    %3473 = vmatprep.subr.mxu0 0.0
    %3474 = vmatpush1.msra.mxu0 0.0
    %3475 = vmatprep.subr.mxu0 0.0
    %3476 = vmatpush1.msra.mxu0 0.0
    %3477 = vmatprep.subr.mxu0 0.0
    %3478 = vmatpush1.msra.mxu0 0.0
    %3479 = vmatprep.subr.mxu0 0.0
    %3480 = vmatpush1.msra.mxu0 0.0
    %3481 = vmatprep.subr.mxu0 0.0
    %3482 = vmatpush1.msra.mxu0 0.0
    %3483 = vmatprep.subr.mxu0 0.0
    %3484 = vmatpush1.msra.mxu0 0.0
    %3485 = vmatprep.subr.mxu0 0.0
    %3486 = vmatpush1.msra.mxu0 0.0
    %3487 = vmatprep.subr.mxu0 0.0
    %3488 = vmatpush1.msra.mxu0 0.0
    %3489 = vmatprep.subr.mxu0 0.0
    %3490 = vmatpush1.msra.mxu0 0.0
    %3491 = vmatprep.subr.mxu0 0.0
    %3492 = vmatpush1.msra.mxu0 0.0
    %3493 = vmatprep.subr.mxu0 0.0
    %3494 = vmatpush1.msra.mxu0 %v3461
    %3495 = vmatprep.subr.mxu0 0.0
    %3496 = vmatpush2.msra.mxu0 0.0
    %3497 = vmatprep.subr.mxu0 0.0
    %3498 = vmatpush2.msra.mxu0 0.0
    %3499 = vmatprep.subr.mxu0 0.0
    %3500 = vmatpush2.msra.mxu0 0.0
    %3501 = vmatprep.subr.mxu0 0.0
    %3502 = vmatpush2.msra.mxu0 0.0
    %3503 = vmatprep.subr.mxu0 0.0
    %3504 = vmatpush2.msra.mxu0 0.0
    %3505 = vmatprep.subr.mxu0 0.0
    %3506 = vmatpush2.msra.mxu0 0.0
    %3507 = vmatprep.subr.mxu0 0.0
    %3508 = vmatpush2.msra.mxu0 0.0
    %3509 = vmatprep.subr.mxu0 0.0
    %3510 = vmatpush2.msra.mxu0 0.0
    %3511 = vmatprep.subr.mxu0 0.0
    %3512 = vmatpush2.msra.mxu0 0.0
    %3513 = vmatprep.subr.mxu0 0.0
    %3514 = vmatpush2.msra.mxu0 0.0
    %3515 = vmatprep.subr.mxu0 0.0
    %3516 = vmatpush2.msra.mxu0 0.0
    %3517 = vmatprep.subr.mxu0 0.0
    %3518 = vmatpush2.msra.mxu0 0.0
    %3519 = vmatprep.subr.mxu0 0.0
    %3520 = vmatpush2.msra.mxu0 0.0
    %3521 = vmatprep.subr.mxu0 0.0
    %3522 = vmatpush2.msra.mxu0 0.0
    %3523 = vmatprep.subr.mxu0 0.0
    %3524 = vmatpush2.msra.mxu0 0.0
    %3525 = vmatprep.subr.mxu0 0.0
    %3526 = vmatpush2.msra.mxu0 0.0
    %3527 = vmatprep.mubr.f32.mxu0 0.0
    %3528 = vmatmul.mubr.f32.gmra.mxu0 %v2756
    %v3529 = vpop.f32.mrf.mxu0
    %v3530 = vadd.f32 0.0, %v3529
    %v3531 = vpop.f32.mrf.mxu0
    %3532 = vdwg.mxu0
    %v3533 = vadd.f32 %v3459, %v3530
    %v3534 = vmul.f32 %v3162, %v1352
    %3536 = vrot.lane.b32.xlu0 %v3534, 118
    %v3537 = vpop.permute.xlu0 %3536
    %3539 = vmatprep.subr.mxu0 0.0
    %3540 = vmatpush1.msra.mxu0 0.0
    %3541 = vmatprep.subr.mxu0 0.0
    %3542 = vmatpush1.msra.mxu0 0.0
    %3543 = vmatprep.subr.mxu0 0.0
    %3544 = vmatpush1.msra.mxu0 0.0
    %3545 = vmatprep.subr.mxu0 0.0
    %3546 = vmatpush1.msra.mxu0 0.0
    %3547 = vmatprep.subr.mxu0 0.0
    %3548 = vmatpush1.msra.mxu0 0.0
    %3549 = vmatprep.subr.mxu0 0.0
    %3550 = vmatpush1.msra.mxu0 0.0
    %3551 = vmatprep.subr.mxu0 0.0
    %3552 = vmatpush1.msra.mxu0 0.0
    %3553 = vmatprep.subr.mxu0 0.0
    %3554 = vmatpush1.msra.mxu0 0.0
    %3555 = vmatprep.subr.mxu0 0.0
    %3556 = vmatpush1.msra.mxu0 0.0
    %3557 = vmatprep.subr.mxu0 0.0
    %3558 = vmatpush1.msra.mxu0 0.0
    %3559 = vmatprep.subr.mxu0 0.0
    %3560 = vmatpush1.msra.mxu0 0.0
    %3561 = vmatprep.subr.mxu0 0.0
    %3562 = vmatpush1.msra.mxu0 0.0
    %3563 = vmatprep.subr.mxu0 0.0
    %3564 = vmatpush1.msra.mxu0 0.0
    %3565 = vmatprep.subr.mxu0 0.0
    %3566 = vmatpush1.msra.mxu0 0.0
    %3567 = vmatprep.subr.mxu0 0.0
    %3568 = vmatpush1.msra.mxu0 0.0
    %3569 = vmatprep.subr.mxu0 0.0
    %3570 = vmatpush1.msra.mxu0 %v3537
    %3571 = vmatprep.subr.mxu0 0.0
    %3572 = vmatpush2.msra.mxu0 0.0
    %3573 = vmatprep.subr.mxu0 0.0
    %3574 = vmatpush2.msra.mxu0 0.0
    %3575 = vmatprep.subr.mxu0 0.0
    %3576 = vmatpush2.msra.mxu0 0.0
    %3577 = vmatprep.subr.mxu0 0.0
    %3578 = vmatpush2.msra.mxu0 0.0
    %3579 = vmatprep.subr.mxu0 0.0
    %3580 = vmatpush2.msra.mxu0 0.0
    %3581 = vmatprep.subr.mxu0 0.0
    %3582 = vmatpush2.msra.mxu0 0.0
    %3583 = vmatprep.subr.mxu0 0.0
    %3584 = vmatpush2.msra.mxu0 0.0
    %3585 = vmatprep.subr.mxu0 0.0
    %3586 = vmatpush2.msra.mxu0 0.0
    %3587 = vmatprep.subr.mxu0 0.0
    %3588 = vmatpush2.msra.mxu0 0.0
    %3589 = vmatprep.subr.mxu0 0.0
    %3590 = vmatpush2.msra.mxu0 0.0
    %3591 = vmatprep.subr.mxu0 0.0
    %3592 = vmatpush2.msra.mxu0 0.0
    %3593 = vmatprep.subr.mxu0 0.0
    %3594 = vmatpush2.msra.mxu0 0.0
    %3595 = vmatprep.subr.mxu0 0.0
    %3596 = vmatpush2.msra.mxu0 0.0
    %3597 = vmatprep.subr.mxu0 0.0
    %3598 = vmatpush2.msra.mxu0 0.0
    %3599 = vmatprep.subr.mxu0 0.0
    %3600 = vmatpush2.msra.mxu0 0.0
    %3601 = vmatprep.subr.mxu0 0.0
    %3602 = vmatpush2.msra.mxu0 0.0
    %3603 = vmatprep.mubr.f32.mxu0 0.0
    %3604 = vmatmul.mubr.f32.gmra.mxu0 %v2837
    %v3605 = vpop.f32.mrf.mxu0
    %v3606 = vadd.f32 0.0, %v3605
    %v3607 = vpop.f32.mrf.mxu0
    %3608 = vdwg.mxu0
    %v3609 = vadd.f32 %v3533, %v3606
    %v3610 = vmul.f32 %v3162, %v1437
    %3612 = vrot.lane.b32.xlu0 %v3610, 112
    %v3613 = vpop.permute.xlu0 %3612
    %3615 = vmatprep.subr.mxu0 0.0
    %3616 = vmatpush1.msra.mxu0 0.0
    %3617 = vmatprep.subr.mxu0 0.0
    %3618 = vmatpush1.msra.mxu0 0.0
    %3619 = vmatprep.subr.mxu0 0.0
    %3620 = vmatpush1.msra.mxu0 0.0
    %3621 = vmatprep.subr.mxu0 0.0
    %3622 = vmatpush1.msra.mxu0 0.0
    %3623 = vmatprep.subr.mxu0 0.0
    %3624 = vmatpush1.msra.mxu0 0.0
    %3625 = vmatprep.subr.mxu0 0.0
    %3626 = vmatpush1.msra.mxu0 0.0
    %3627 = vmatprep.subr.mxu0 0.0
    %3628 = vmatpush1.msra.mxu0 0.0
    %3629 = vmatprep.subr.mxu0 0.0
    %3630 = vmatpush1.msra.mxu0 0.0
    %3631 = vmatprep.subr.mxu0 0.0
    %3632 = vmatpush1.msra.mxu0 0.0
    %3633 = vmatprep.subr.mxu0 0.0
    %3634 = vmatpush1.msra.mxu0 0.0
    %3635 = vmatprep.subr.mxu0 0.0
    %3636 = vmatpush1.msra.mxu0 0.0
    %3637 = vmatprep.subr.mxu0 0.0
    %3638 = vmatpush1.msra.mxu0 0.0
    %3639 = vmatprep.subr.mxu0 0.0
    %3640 = vmatpush1.msra.mxu0 0.0
    %3641 = vmatprep.subr.mxu0 0.0
    %3642 = vmatpush1.msra.mxu0 0.0
    %3643 = vmatprep.subr.mxu0 0.0
    %3644 = vmatpush1.msra.mxu0 0.0
    %3645 = vmatprep.subr.mxu0 0.0
    %3646 = vmatpush1.msra.mxu0 %v3613
    %3647 = vmatprep.subr.mxu0 0.0
    %3648 = vmatpush2.msra.mxu0 0.0
    %3649 = vmatprep.subr.mxu0 0.0
    %3650 = vmatpush2.msra.mxu0 0.0
    %3651 = vmatprep.subr.mxu0 0.0
    %3652 = vmatpush2.msra.mxu0 0.0
    %3653 = vmatprep.subr.mxu0 0.0
    %3654 = vmatpush2.msra.mxu0 0.0
    %3655 = vmatprep.subr.mxu0 0.0
    %3656 = vmatpush2.msra.mxu0 0.0
    %3657 = vmatprep.subr.mxu0 0.0
    %3658 = vmatpush2.msra.mxu0 0.0
    %3659 = vmatprep.subr.mxu0 0.0
    %3660 = vmatpush2.msra.mxu0 0.0
    %3661 = vmatprep.subr.mxu0 0.0
    %3662 = vmatpush2.msra.mxu0 0.0
    %3663 = vmatprep.subr.mxu0 0.0
    %3664 = vmatpush2.msra.mxu0 0.0
    %3665 = vmatprep.subr.mxu0 0.0
    %3666 = vmatpush2.msra.mxu0 0.0
    %3667 = vmatprep.subr.mxu0 0.0
    %3668 = vmatpush2.msra.mxu0 0.0
    %3669 = vmatprep.subr.mxu0 0.0
    %3670 = vmatpush2.msra.mxu0 0.0
    %3671 = vmatprep.subr.mxu0 0.0
    %3672 = vmatpush2.msra.mxu0 0.0
    %3673 = vmatprep.subr.mxu0 0.0
    %3674 = vmatpush2.msra.mxu0 0.0
    %3675 = vmatprep.subr.mxu0 0.0
    %3676 = vmatpush2.msra.mxu0 0.0
    %3677 = vmatprep.subr.mxu0 0.0
    %3678 = vmatpush2.msra.mxu0 0.0
    %3679 = vmatprep.mubr.f32.mxu0 0.0
    %3680 = vmatmul.mubr.f32.gmra.mxu0 %v2918
    %v3681 = vpop.f32.mrf.mxu0
    %v3682 = vadd.f32 0.0, %v3681
    %v3683 = vpop.f32.mrf.mxu0
    %3684 = vdwg.mxu0
    %v3685 = vadd.f32 %v3609, %v3682
    %3686 = vrot.lane.b32.xlu0 %v3162, 111
    %v3687 = vpop.permute.xlu0 %3686
    %3689 = vmatprep.subr.mxu0 0.0
    %3690 = vmatpush1.msra.mxu0 0.0
    %3691 = vmatprep.subr.mxu0 0.0
    %3692 = vmatpush1.msra.mxu0 0.0
    %3693 = vmatprep.subr.mxu0 0.0
    %3694 = vmatpush1.msra.mxu0 0.0
    %3695 = vmatprep.subr.mxu0 0.0
    %3696 = vmatpush1.msra.mxu0 0.0
    %3697 = vmatprep.subr.mxu0 0.0
    %3698 = vmatpush1.msra.mxu0 0.0
    %3699 = vmatprep.subr.mxu0 0.0
    %3700 = vmatpush1.msra.mxu0 0.0
    %3701 = vmatprep.subr.mxu0 0.0
    %3702 = vmatpush1.msra.mxu0 0.0
    %3703 = vmatprep.subr.mxu0 0.0
    %3704 = vmatpush1.msra.mxu0 0.0
    %3705 = vmatprep.subr.mxu0 0.0
    %3706 = vmatpush1.msra.mxu0 0.0
    %3707 = vmatprep.subr.mxu0 0.0
    %3708 = vmatpush1.msra.mxu0 0.0
    %3709 = vmatprep.subr.mxu0 0.0
    %3710 = vmatpush1.msra.mxu0 0.0
    %3711 = vmatprep.subr.mxu0 0.0
    %3712 = vmatpush1.msra.mxu0 0.0
    %3713 = vmatprep.subr.mxu0 0.0
    %3714 = vmatpush1.msra.mxu0 0.0
    %3715 = vmatprep.subr.mxu0 0.0
    %3716 = vmatpush1.msra.mxu0 0.0
    %3717 = vmatprep.subr.mxu0 0.0
    %3718 = vmatpush1.msra.mxu0 0.0
    %3719 = vmatprep.subr.mxu0 0.0
    %3720 = vmatpush1.msra.mxu0 %v3687
    %3721 = vmatprep.subr.mxu0 0.0
    %3722 = vmatpush2.msra.mxu0 0.0
    %3723 = vmatprep.subr.mxu0 0.0
    %3724 = vmatpush2.msra.mxu0 0.0
    %3725 = vmatprep.subr.mxu0 0.0
    %3726 = vmatpush2.msra.mxu0 0.0
    %3727 = vmatprep.subr.mxu0 0.0
    %3728 = vmatpush2.msra.mxu0 0.0
    %3729 = vmatprep.subr.mxu0 0.0
    %3730 = vmatpush2.msra.mxu0 0.0
    %3731 = vmatprep.subr.mxu0 0.0
    %3732 = vmatpush2.msra.mxu0 0.0
    %3733 = vmatprep.subr.mxu0 0.0
    %3734 = vmatpush2.msra.mxu0 0.0
    %3735 = vmatprep.subr.mxu0 0.0
    %3736 = vmatpush2.msra.mxu0 0.0
    %3737 = vmatprep.subr.mxu0 0.0
    %3738 = vmatpush2.msra.mxu0 0.0
    %3739 = vmatprep.subr.mxu0 0.0
    %3740 = vmatpush2.msra.mxu0 0.0
    %3741 = vmatprep.subr.mxu0 0.0
    %3742 = vmatpush2.msra.mxu0 0.0
    %3743 = vmatprep.subr.mxu0 0.0
    %3744 = vmatpush2.msra.mxu0 0.0
    %3745 = vmatprep.subr.mxu0 0.0
    %3746 = vmatpush2.msra.mxu0 0.0
    %3747 = vmatprep.subr.mxu0 0.0
    %3748 = vmatpush2.msra.mxu0 0.0
    %3749 = vmatprep.subr.mxu0 0.0
    %3750 = vmatpush2.msra.mxu0 0.0
    %3751 = vmatprep.subr.mxu0 0.0
    %3752 = vmatpush2.msra.mxu0 0.0
    %3753 = vmatprep.mubr.f32.mxu0 0.0
    %3754 = vmatmul.mubr.f32.gmra.mxu0 %v2997
    %v3755 = vpop.f32.mrf.mxu0
    %v3756 = vadd.f32 0.0, %v3755
    %v3757 = vpop.f32.mrf.mxu0
    %3758 = vdwg.mxu0
    %v3759 = vadd.f32 %v3685, %v3756
    %v3760 = vmul.f32 %v3162, %v1602
    %3762 = vrot.lane.b32.xlu0 %v3760, 110
    %v3763 = vpop.permute.xlu0 %3762
    %3765 = vmatprep.subr.mxu0 0.0
    %3766 = vmatpush1.msra.mxu0 0.0
    %3767 = vmatprep.subr.mxu0 0.0
    %3768 = vmatpush1.msra.mxu0 0.0
    %3769 = vmatprep.subr.mxu0 0.0
    %3770 = vmatpush1.msra.mxu0 0.0
    %3771 = vmatprep.subr.mxu0 0.0
    %3772 = vmatpush1.msra.mxu0 0.0
    %3773 = vmatprep.subr.mxu0 0.0
    %3774 = vmatpush1.msra.mxu0 0.0
    %3775 = vmatprep.subr.mxu0 0.0
    %3776 = vmatpush1.msra.mxu0 0.0
    %3777 = vmatprep.subr.mxu0 0.0
    %3778 = vmatpush1.msra.mxu0 0.0
    %3779 = vmatprep.subr.mxu0 0.0
    %3780 = vmatpush1.msra.mxu0 0.0
    %3781 = vmatprep.subr.mxu0 0.0
    %3782 = vmatpush1.msra.mxu0 0.0
    %3783 = vmatprep.subr.mxu0 0.0
    %3784 = vmatpush1.msra.mxu0 0.0
    %3785 = vmatprep.subr.mxu0 0.0
    %3786 = vmatpush1.msra.mxu0 0.0
    %3787 = vmatprep.subr.mxu0 0.0
    %3788 = vmatpush1.msra.mxu0 0.0
    %3789 = vmatprep.subr.mxu0 0.0
    %3790 = vmatpush1.msra.mxu0 0.0
    %3791 = vmatprep.subr.mxu0 0.0
    %3792 = vmatpush1.msra.mxu0 0.0
    %3793 = vmatprep.subr.mxu0 0.0
    %3794 = vmatpush1.msra.mxu0 0.0
    %3795 = vmatprep.subr.mxu0 0.0
    %3796 = vmatpush1.msra.mxu0 %v3763
    %3797 = vmatprep.subr.mxu0 0.0
    %3798 = vmatpush2.msra.mxu0 0.0
    %3799 = vmatprep.subr.mxu0 0.0
    %3800 = vmatpush2.msra.mxu0 0.0
    %3801 = vmatprep.subr.mxu0 0.0
    %3802 = vmatpush2.msra.mxu0 0.0
    %3803 = vmatprep.subr.mxu0 0.0
    %3804 = vmatpush2.msra.mxu0 0.0
    %3805 = vmatprep.subr.mxu0 0.0
    %3806 = vmatpush2.msra.mxu0 0.0
    %3807 = vmatprep.subr.mxu0 0.0
    %3808 = vmatpush2.msra.mxu0 0.0
    %3809 = vmatprep.subr.mxu0 0.0
    %3810 = vmatpush2.msra.mxu0 0.0
    %3811 = vmatprep.subr.mxu0 0.0
    %3812 = vmatpush2.msra.mxu0 0.0
    %3813 = vmatprep.subr.mxu0 0.0
    %3814 = vmatpush2.msra.mxu0 0.0
    %3815 = vmatprep.subr.mxu0 0.0
    %3816 = vmatpush2.msra.mxu0 0.0
    %3817 = vmatprep.subr.mxu0 0.0
    %3818 = vmatpush2.msra.mxu0 0.0
    %3819 = vmatprep.subr.mxu0 0.0
    %3820 = vmatpush2.msra.mxu0 0.0
    %3821 = vmatprep.subr.mxu0 0.0
    %3822 = vmatpush2.msra.mxu0 0.0
    %3823 = vmatprep.subr.mxu0 0.0
    %3824 = vmatpush2.msra.mxu0 0.0
    %3825 = vmatprep.subr.mxu0 0.0
    %3826 = vmatpush2.msra.mxu0 0.0
    %3827 = vmatprep.subr.mxu0 0.0
    %3828 = vmatpush2.msra.mxu0 0.0
    %3829 = vmatprep.mubr.f32.mxu0 0.0
    %3830 = vmatmul.mubr.f32.gmra.mxu0 %v3078
    %v3831 = vpop.f32.mrf.mxu0
    %v3832 = vadd.f32 0.0, %v3831
    %v3833 = vpop.f32.mrf.mxu0
    %3834 = vdwg.mxu0
    %v3835 = vadd.f32 %v3759, %v3832
    %v3836 = vadd.f32 %v3835, %v3154
    %v3837 = vld [vmem:[%s9] sm:$0xff]
    %v3838 = vld [vmem:[%s10] sm:$0xff]
    %v3839 = vsel %vm2379, %v3156, 0.0
    %3840 = vadd.xlane.f32.xlu0 %v3839
    %v3841 = vpop.xlane.xlu0 %3840
    %v3842 = vadd.f32 %v3841, 0.0
    %v3843 = vsel %vm2379, %v3836, 0.0
    %3844 = vadd.xlane.f32.xlu0 %v3843
    %v3845 = vpop.xlane.xlu0 %3844
    %v3846 = vadd.f32 %v3842, %v3845
    %v3847 = vmul.f32 %v3846, %v2388
    %v3848 = vsub.f32 %v3156, %v3847
    %v3849 = vmul.f32 %v3848, %v3848
    %v3850 = vsel %vm2379, %v3849, 0.0
    %3851 = vadd.xlane.f32.xlu0 %v3850
    %v3852 = vpop.xlane.xlu0 %3851
    %v3853 = vadd.f32 %v3852, 0.0
    %v3854 = vsub.f32 %v3836, %v3847
    %v3855 = vmul.f32 %v3854, %v3854
    %v3856 = vsel %vm2379, %v3855, 0.0
    %3857 = vadd.xlane.f32.xlu0 %v3856
    %v3858 = vpop.xlane.xlu0 %3857
    %v3859 = vadd.f32 %v3853, %v3858
    %v3860 = vmul.f32 %v3859, %v2388
    %v3861 = vadd.f32 %v3860, 1e-05
    %v3862 = vrsqrt.pop %v3861
    %v3863 = vmul.f32 %v3837, %v3862
    %v3864 = vmul.f32 %v3847, %v3863
    %v3865 = vsub.f32 %v3838, %v3864
    %3867 = vset.pattern.permute.xlu0 0
    %3868 = vperm.xlu0 %3867, %v3863
    %v3869 = vpop.permute.xlu0 %3868
    %v3871 = vmul.f32 %v3156, %v3869
    %3873 = vset.pattern.permute.xlu0 0
    %3874 = vperm.xlu0 %3873, %v3865
    %v3875 = vpop.permute.xlu0 %3874
    %v3877 = vadd.f32 %v3871, %v3875
    %v3878 = vmax.f32 %v3877, 0.0
    %v3879 = vmul.f32 %v3836, %v3869
    %v3880 = vadd.f32 %v3879, %v3875
    %v3881 = vmax.f32 %v3880, 0.0
    %3882 = vst.msk [vmem:[#allocation2] sm:$0xff] %vm2379, %v3878
    %s3883 = scalar_lea.vmem [#allocation2], 8
    %3884 = vst.msk [vmem:[%s3883] sm:$0xff] %vm2379, %v3881
    // Predicated region
    $region46: #{tpu_custom_call.1} parent=1 // pred_check
      _
    $region47: #{tpu_custom_call.1} parent=1 // pred_check_branch
      %3886 = sbr.rel (0) target = $region49
    $region48: #{tpu_custom_call.1} parent=1 // pred_region
      %s3888 = ssub.s32 256, 256
      %3889 = vsyncadd [#allocation3], %s3888
      %s3890 = sshll.u32 [#allocation2], 4
      %s3891 = int_to_ptr.vmem [resolvable:$true] %s3890
      %3896 = dma.vmem_to_hbm [thread:$0]  %s3891, 256, %s11, [#allocation3], 128, 128, 8
    $region49: #{tpu_custom_call.1} parent=1 // pred_fallthru
      _
    // Predicated region
    $region50: #{tpu_custom_call.1} parent=1 // pred_check
      _
    $region51: #{tpu_custom_call.1} parent=1 // pred_check_branch
      %3898 = sbr.rel (0) target = $region53
    $region52: #{tpu_custom_call.1} parent=1 // pred_region
      %3899 = dma.done [#allocation3], 256
    $region53: #{tpu_custom_call.1} parent=1 // pred_fallthru
      _
    %3900 = vsyncpa [#allocation3], 1

</llo_original>
